<compile_context>
chip_gen: v5e
topology: v5e:2x2
jax: 0.10.0
libtpu: 0.0.40
codegen_flags: <defaults>
</compile_context>

<pallas_src>
import functools

import jax
import jax.numpy as jnp
from jax.experimental import pallas as pl
from jax.experimental.pallas import tpu as pltpu


def _dilconv_kernel(x_ref, wt_ref, o_ref, pad_ref, *, dilations, c_each,
                    group_width, num_groups, h, w, hw, pad_span):
    # x_ref  : (1, 1, c_each, H*W) VMEM   -- one image, one dilation branch
    # wt_ref : (num_splits*c_each*group_width*9,) f32 SMEM (flat OIHW weights)
    # o_ref  : (1, 1, c_each, H*W) VMEM
    # pad_ref: (c_each, H*W + 2*pad_span) VMEM scratch; zero margins emulate
    #          the conv's zero padding along the flattened height direction.

    # Zero the scratch (margins matter; interior is overwritten right after),
    # then stage all channels of this branch with one lane-aligned dense store.
    pad_ref[...] = jnp.zeros_like(pad_ref)
    pad_ref[:, pl.ds(pad_span, hw)] = x_ref[0, 0, :, :]

    # Column index of every flattened position (hoisted), for the two
    # width-border masks.  Height borders never need masking: those taps fall
    # into the zeroed scratch margins.
    col_idx = jax.lax.broadcasted_iota(jnp.int32, (1, hw), 1) % w

    branch = pl.program_id(1)
    for bi, d in enumerate(dilations):

        @pl.when(branch == bi)
        def _(bi=bi, d=d):
            # Width-validity masks for the left/right kw taps (kw==1 needs none).
            col_ok = {0: col_idx >= d, 1: None, 2: col_idx < (w - d)}

            # Build the 9 shifted (and width-masked) tap blocks once per step:
            # each is a static (c_each, hw) slice of the padded scratch, shared
            # by every group and output channel of this branch.
            rows = {}
            for kh in range(3):
                for kw in range(3):
                    off = (kh - 1) * d * w + (kw - 1) * d
                    p = pad_ref[:, pl.ds(pad_span + off, hw)]
                    m = col_ok[kw]
                    if m is not None:
                        p = jnp.where(m, p, 0.0)
                    for cin in range(c_each):
                        rows[(kh, kw, cin)] = p[cin:cin + 1, :]

            for g in range(num_groups):
                for co in range(group_width):
                    cout = g * group_width + co
                    # 3 partial accumulators (one per kh) -> shorter dependence
                    # chain, more VALU-slot ILP.
                    acc = [jnp.zeros((1, hw), jnp.float32) for _ in range(3)]
                    for ci in range(group_width):
                        cin = g * group_width + ci
                        for kh in range(3):
                            for kw in range(3):
                                widx = (((bi * c_each + cout) * group_width + ci)
                                        * 9 + kh * 3 + kw)
                                acc[kh] = acc[kh] + wt_ref[widx] * rows[(kh, kw, cin)]
                    total = (acc[0] + acc[1]) + acc[2]
                    # Lane-dense store of one full output row (H*W lanes).
                    o_ref[0, 0, pl.ds(cout, 1), :] = total.astype(o_ref.dtype)


def dilation_conv(x, weights, dilations, stride, group_width):
    """x: (N, in_ch, H, W) f32; weights: (num_splits, c_each, group_width, 3, 3)."""
    n, in_ch, h, w_sp = x.shape
    num_splits = len(dilations)
    assert in_ch % num_splits == 0
    c_each = in_ch // num_splits
    assert c_each % group_width == 0
    num_groups = c_each // group_width
    max_d = max(int(d) for d in dilations)
    assert max_d < h and max_d < w_sp, "dilation must be smaller than H and W"

    hw = h * w_sp
    # Scratch margin: largest |flat tap offset| is max_d*(W+1); round up to a
    # 128 multiple so the interior staging store stays lane-aligned.
    pad_span = ((max_d * (w_sp + 1) + 127) // 128) * 128

    # Metadata-only reshapes (no padded HBM copy).
    x_flat = x.reshape(n, num_splits, c_each, hw)
    w_flat = weights.reshape(-1)

    kernel = functools.partial(
        _dilconv_kernel,
        dilations=tuple(int(d) for d in dilations),
        c_each=c_each, group_width=group_width, num_groups=num_groups,
        h=h, w=w_sp, hw=hw, pad_span=pad_span)

    out_flat = pl.pallas_call(
        kernel,
        out_shape=jax.ShapeDtypeStruct((n, num_splits, c_each, hw), x.dtype),
        grid=(n, num_splits),
        in_specs=[
            pl.BlockSpec((1, 1, c_each, hw), lambda i, j: (i, j, 0, 0)),
            pl.BlockSpec(memory_space=pltpu.MemorySpace.SMEM),
        ],
        out_specs=pl.BlockSpec((1, 1, c_each, hw), lambda i, j: (i, j, 0, 0)),
        scratch_shapes=[pltpu.VMEM((c_each, hw + 2 * pad_span), jnp.float32)],
        compiler_params=pltpu.CompilerParams(
            dimension_semantics=("parallel", "parallel")),
    )(x_flat, w_flat)

    out = out_flat.reshape(n, in_ch, h, w_sp)
    if stride > 1:
        # Dense conv with padding==dilation and kernel 3 has the same receptive
        # field; the strided result is its decimation.
        out = out[:, :, ::stride, ::stride]
    return out


def ref_forward(x, weights, dilations, stride, group_width):
    """Pure-JAX reference matching the PyTorch DilationConv forward."""
    num_splits = len(dilations)
    c_each = x.shape[1] // num_splits
    num_groups = c_each // group_width
    splits = jnp.split(x, num_splits, axis=1)
    outs = []
    for i, d in enumerate(dilations):
        o = jax.lax.conv_general_dilated(
            splits[i], weights[i],
            window_strides=(stride, stride),
            padding=[(d, d), (d, d)],
            rhs_dilation=(d, d),
            dimension_numbers=("NCHW", "OIHW", "NCHW"),
            feature_group_count=num_groups)
        outs.append(o)
    return jnp.concatenate(outs, axis=1)


if __name__ == "__main__":
    # in_ch=8, dilations=(1,2) -> 2 branches of 4 ch, group_width=2 -> 2 groups
    # per branch, bias=False (module default).
    N, in_ch, H, W = 2, 8, 16, 16
    dilations = (1, 2)
    group_width = 2
    num_splits = len(dilations)
    c_each = in_ch // num_splits

    key = jax.random.PRNGKey(0)
    kx, kw_key = jax.random.split(key)
    x = jax.random.normal(kx, (N, in_ch, H, W), dtype=jnp.float32)
    weights = 0.1 * jax.random.normal(
        kw_key, (num_splits, c_each, group_width, 3, 3), dtype=jnp.float32)

    # stride = 1
    out = dilation_conv(x, weights, dilations, 1, group_width)
    out = jax.block_until_ready(out)
    ref = ref_forward(x, weights, dilations, 1, group_width)
    assert out.shape == ref.shape, (out.shape, ref.shape)
    assert jnp.allclose(out, ref, atol=1e-4, rtol=1e-4), float(
        jnp.max(jnp.abs(out - ref)))

    # stride = 2 (dense kernel output, decimated in the wrapper)
    out2 = dilation_conv(x, weights, dilations, 2, group_width)
    out2 = jax.block_until_ready(out2)
    ref2 = ref_forward(x, weights, dilations, 2, group_width)
    assert out2.shape == ref2.shape, (out2.shape, ref2.shape)
    assert jnp.allclose(out2, ref2, atol=1e-4, rtol=1e-4), float(
        jnp.max(jnp.abs(out2 - ref2)))

    print("KERNEL_OK")
</pallas_src>

<mosaic_0001>
module attributes {stable_mosaic.version = 11 : i64} {
  func.func @_dilconv_kernel(%arg0: i32, %arg1: i32, %arg2: memref<1x1x4x256xf32, #tpu.memory_space<vmem>>, %arg3: memref<144xf32, #tpu.memory_space<smem>>, %arg4: memref<1x1x4x256xf32, #tpu.memory_space<vmem>>, %arg5: memref<4x512xf32, #tpu.memory_space<vmem>>) attributes {dimension_semantics = [#tpu.dimension_semantics<parallel>, #tpu.dimension_semantics<parallel>], iteration_bounds = array<i64: 2, 2>, scalar_prefetch = 0 : i64, scratch_operands = 1 : i64, tpu.core_type = #tpu.core_type<tc>, window_params = [{transform_indices = @transform_0, window_bounds = array<i64: 1, 1, 4, 256>}, {transform_indices = @transform_1, window_bounds = array<i64: 144>}, {transform_indices = @transform_2, window_bounds = array<i64: 1, 1, 4, 256>}]} {
    %cst = arith.constant 0.000000e+00 : f32
    %0 = vector.broadcast %cst : f32 to vector<4x512xf32>
    %c0 = arith.constant 0 : index
    %c0_0 = arith.constant 0 : index
    %1 = vector.load %arg5[%c0, %c0_0] : memref<4x512xf32, #tpu.memory_space<vmem>>, vector<4x512xf32>
    tpu.vector_store %arg5[%c0, %c0_0], %0 {strides = array<i32>} : memref<4x512xf32, #tpu.memory_space<vmem>>, vector<4x512xf32>,
    %c0_1 = arith.constant 0 : index
    %c0_2 = arith.constant 0 : index
    %c0_3 = arith.constant 0 : index
    %c0_4 = arith.constant 0 : index
    %2 = vector.load %arg2[%c0_1, %c0_2, %c0_3, %c0_4] : memref<1x1x4x256xf32, #tpu.memory_space<vmem>>, vector<1x1x4x256xf32>
    %3 = vector.shape_cast %2 : vector<1x1x4x256xf32> to vector<4x256xf32>
    %c0_5 = arith.constant 0 : index
    %c128 = arith.constant 128 : index
    %4 = vector.load %arg5[%c0_5, %c128] : memref<4x512xf32, #tpu.memory_space<vmem>>, vector<4x256xf32>
    tpu.vector_store %arg5[%c0_5, %c128], %3 {strides = array<i32>} : memref<4x512xf32, #tpu.memory_space<vmem>>, vector<4x256xf32>,
    %5 = tpu.iota {dimensions = array<i32: 1>} : vector<1x256xi32>
    %c16_i32 = arith.constant 16 : i32
    %c0_i32 = arith.constant 0 : i32
    %6 = arith.cmpi eq, %c16_i32, %c0_i32 : i32
    %c1_i32 = arith.constant 1 : i32
    %7 = arith.select %6, %c1_i32, %c16_i32 : i32
    %8 = vector.broadcast %7 : i32 to vector<1x256xi32>
    %9 = arith.remsi %5, %8 : vector<1x256xi32>
    %c0_i32_6 = arith.constant 0 : i32
    %10 = vector.broadcast %c0_i32_6 : i32 to vector<1x256xi32>
    %11 = arith.cmpi ne, %9, %10 : vector<1x256xi32>
    %c0_i32_7 = arith.constant 0 : i32
    %12 = vector.broadcast %c0_i32_7 : i32 to vector<1x256xi32>
    %13 = arith.cmpi slt, %9, %12 : vector<1x256xi32>
    %c0_i32_8 = arith.constant 0 : i32
    %14 = arith.cmpi slt, %7, %c0_i32_8 : i32
    %15 = vector.broadcast %14 : i1 to vector<1x256xi1>
    %16 = vector.broadcast %15 : vector<1x256xi1> to vector<1x256xi1>
    %17 = arith.xori %13, %16 : vector<1x256xi1>
    %18 = arith.andi %17, %11 : vector<1x256xi1>
    %19 = vector.broadcast %7 : i32 to vector<1x256xi32>
    %20 = arith.addi %9, %19 : vector<1x256xi32>
    %21 = arith.select %18, %20, %9 : vector<1x256xi1>, vector<1x256xi32>
    %c0_i32_9 = arith.constant 0 : i32
    %22 = arith.cmpi eq, %arg1, %c0_i32_9 : i32
    %23 = arith.extui %22 : i1 to i32
    %c0_i32_10 = arith.constant 0 : i32
    %24 = arith.cmpi ne, %23, %c0_i32_10 : i32
    scf.if %24 {
      %c1_i32_13 = arith.constant 1 : i32
      %28 = vector.broadcast %c1_i32_13 : i32 to vector<1x256xi32>
      %29 = arith.cmpi sge, %21, %28 : vector<1x256xi32>
      %c15_i32 = arith.constant 15 : i32
      %30 = vector.broadcast %c15_i32 : i32 to vector<1x256xi32>
      %31 = arith.cmpi slt, %21, %30 : vector<1x256xi32>
      %c0_14 = arith.constant 0 : index
      %c111 = arith.constant 111 : index
      %32 = vector.load %arg5[%c0_14, %c111] : memref<4x512xf32, #tpu.memory_space<vmem>>, vector<4x256xf32>
      %cst_15 = arith.constant 0.000000e+00 : f32
      %33 = vector.shape_cast %29 : vector<1x256xi1> to vector<1x256xi1>
      %34 = vector.broadcast %33 : vector<1x256xi1> to vector<4x256xi1>
      %35 = vector.broadcast %cst_15 : f32 to vector<4x256xf32>
      %36 = arith.select %34, %32, %35 : vector<4x256xi1>, vector<4x256xf32>
      %37 = vector.extract_strided_slice %36 {offsets = [0, 0], sizes = [1, 256], strides = [1, 1]} : vector<4x256xf32> to vector<1x256xf32>
      %38 = vector.extract_strided_slice %36 {offsets = [1, 0], sizes = [1, 256], strides = [1, 1]} : vector<4x256xf32> to vector<1x256xf32>
      %39 = vector.extract_strided_slice %36 {offsets = [2, 0], sizes = [1, 256], strides = [1, 1]} : vector<4x256xf32> to vector<1x256xf32>
      %40 = vector.extract_strided_slice %36 {offsets = [3, 0], sizes = [1, 256], strides = [1, 1]} : vector<4x256xf32> to vector<1x256xf32>
      %c0_16 = arith.constant 0 : index
      %c112 = arith.constant 112 : index
      %41 = vector.load %arg5[%c0_16, %c112] : memref<4x512xf32, #tpu.memory_space<vmem>>, vector<4x256xf32>
      %42 = vector.extract_strided_slice %41 {offsets = [0, 0], sizes = [1, 256], strides = [1, 1]} : vector<4x256xf32> to vector<1x256xf32>
      %43 = vector.extract_strided_slice %41 {offsets = [1, 0], sizes = [1, 256], strides = [1, 1]} : vector<4x256xf32> to vector<1x256xf32>
      %44 = vector.extract_strided_slice %41 {offsets = [2, 0], sizes = [1, 256], strides = [1, 1]} : vector<4x256xf32> to vector<1x256xf32>
      %45 = vector.extract_strided_slice %41 {offsets = [3, 0], sizes = [1, 256], strides = [1, 1]} : vector<4x256xf32> to vector<1x256xf32>
      %c0_17 = arith.constant 0 : index
      %c113 = arith.constant 113 : index
      %46 = vector.load %arg5[%c0_17, %c113] : memref<4x512xf32, #tpu.memory_space<vmem>>, vector<4x256xf32>
      %cst_18 = arith.constant 0.000000e+00 : f32
      %47 = vector.shape_cast %31 : vector<1x256xi1> to vector<1x256xi1>
      %48 = vector.broadcast %47 : vector<1x256xi1> to vector<4x256xi1>
      %49 = vector.broadcast %cst_18 : f32 to vector<4x256xf32>
      %50 = arith.select %48, %46, %49 : vector<4x256xi1>, vector<4x256xf32>
      %51 = vector.extract_strided_slice %50 {offsets = [0, 0], sizes = [1, 256], strides = [1, 1]} : vector<4x256xf32> to vector<1x256xf32>
      %52 = vector.extract_strided_slice %50 {offsets = [1, 0], sizes = [1, 256], strides = [1, 1]} : vector<4x256xf32> to vector<1x256xf32>
      %53 = vector.extract_strided_slice %50 {offsets = [2, 0], sizes = [1, 256], strides = [1, 1]} : vector<4x256xf32> to vector<1x256xf32>
      %54 = vector.extract_strided_slice %50 {offsets = [3, 0], sizes = [1, 256], strides = [1, 1]} : vector<4x256xf32> to vector<1x256xf32>
      %c0_19 = arith.constant 0 : index
      %c127 = arith.constant 127 : index
      %55 = vector.load %arg5[%c0_19, %c127] : memref<4x512xf32, #tpu.memory_space<vmem>>, vector<4x256xf32>
      %cst_20 = arith.constant 0.000000e+00 : f32
      %56 = vector.shape_cast %29 : vector<1x256xi1> to vector<1x256xi1>
      %57 = vector.broadcast %56 : vector<1x256xi1> to vector<4x256xi1>
      %58 = vector.broadcast %cst_20 : f32 to vector<4x256xf32>
      %59 = arith.select %57, %55, %58 : vector<4x256xi1>, vector<4x256xf32>
      %60 = vector.extract_strided_slice %59 {offsets = [0, 0], sizes = [1, 256], strides = [1, 1]} : vector<4x256xf32> to vector<1x256xf32>
      %61 = vector.extract_strided_slice %59 {offsets = [1, 0], sizes = [1, 256], strides = [1, 1]} : vector<4x256xf32> to vector<1x256xf32>
      %62 = vector.extract_strided_slice %59 {offsets = [2, 0], sizes = [1, 256], strides = [1, 1]} : vector<4x256xf32> to vector<1x256xf32>
      %63 = vector.extract_strided_slice %59 {offsets = [3, 0], sizes = [1, 256], strides = [1, 1]} : vector<4x256xf32> to vector<1x256xf32>
      %c0_21 = arith.constant 0 : index
      %c128_22 = arith.constant 128 : index
      %64 = vector.load %arg5[%c0_21, %c128_22] : memref<4x512xf32, #tpu.memory_space<vmem>>, vector<4x256xf32>
      %65 = vector.extract_strided_slice %64 {offsets = [0, 0], sizes = [1, 256], strides = [1, 1]} : vector<4x256xf32> to vector<1x256xf32>
      %66 = vector.extract_strided_slice %64 {offsets = [1, 0], sizes = [1, 256], strides = [1, 1]} : vector<4x256xf32> to vector<1x256xf32>
      %67 = vector.extract_strided_slice %64 {offsets = [2, 0], sizes = [1, 256], strides = [1, 1]} : vector<4x256xf32> to vector<1x256xf32>
      %68 = vector.extract_strided_slice %64 {offsets = [3, 0], sizes = [1, 256], strides = [1, 1]} : vector<4x256xf32> to vector<1x256xf32>
      %c0_23 = arith.constant 0 : index
      %c129 = arith.constant 129 : index
      %69 = vector.load %arg5[%c0_23, %c129] : memref<4x512xf32, #tpu.memory_space<vmem>>, vector<4x256xf32>
      %cst_24 = arith.constant 0.000000e+00 : f32
      %70 = vector.shape_cast %31 : vector<1x256xi1> to vector<1x256xi1>
      %71 = vector.broadcast %70 : vector<1x256xi1> to vector<4x256xi1>
      %72 = vector.broadcast %cst_24 : f32 to vector<4x256xf32>
      %73 = arith.select %71, %69, %72 : vector<4x256xi1>, vector<4x256xf32>
      %74 = vector.extract_strided_slice %73 {offsets = [0, 0], sizes = [1, 256], strides = [1, 1]} : vector<4x256xf32> to vector<1x256xf32>
      %75 = vector.extract_strided_slice %73 {offsets = [1, 0], sizes = [1, 256], strides = [1, 1]} : vector<4x256xf32> to vector<1x256xf32>
      %76 = vector.extract_strided_slice %73 {offsets = [2, 0], sizes = [1, 256], strides = [1, 1]} : vector<4x256xf32> to vector<1x256xf32>
      %77 = vector.extract_strided_slice %73 {offsets = [3, 0], sizes = [1, 256], strides = [1, 1]} : vector<4x256xf32> to vector<1x256xf32>
      %c0_25 = arith.constant 0 : index
      %c143 = arith.constant 143 : index
      %78 = vector.load %arg5[%c0_25, %c143] : memref<4x512xf32, #tpu.memory_space<vmem>>, vector<4x256xf32>
      %cst_26 = arith.constant 0.000000e+00 : f32
      %79 = vector.shape_cast %29 : vector<1x256xi1> to vector<1x256xi1>
      %80 = vector.broadcast %79 : vector<1x256xi1> to vector<4x256xi1>
      %81 = vector.broadcast %cst_26 : f32 to vector<4x256xf32>
      %82 = arith.select %80, %78, %81 : vector<4x256xi1>, vector<4x256xf32>
      %83 = vector.extract_strided_slice %82 {offsets = [0, 0], sizes = [1, 256], strides = [1, 1]} : vector<4x256xf32> to vector<1x256xf32>
      %84 = vector.extract_strided_slice %82 {offsets = [1, 0], sizes = [1, 256], strides = [1, 1]} : vector<4x256xf32> to vector<1x256xf32>
      %85 = vector.extract_strided_slice %82 {offsets = [2, 0], sizes = [1, 256], strides = [1, 1]} : vector<4x256xf32> to vector<1x256xf32>
      %86 = vector.extract_strided_slice %82 {offsets = [3, 0], sizes = [1, 256], strides = [1, 1]} : vector<4x256xf32> to vector<1x256xf32>
      %c0_27 = arith.constant 0 : index
      %c144 = arith.constant 144 : index
      %87 = vector.load %arg5[%c0_27, %c144] : memref<4x512xf32, #tpu.memory_space<vmem>>, vector<4x256xf32>
      %88 = vector.extract_strided_slice %87 {offsets = [0, 0], sizes = [1, 256], strides = [1, 1]} : vector<4x256xf32> to vector<1x256xf32>
      %89 = vector.extract_strided_slice %87 {offsets = [1, 0], sizes = [1, 256], strides = [1, 1]} : vector<4x256xf32> to vector<1x256xf32>
      %90 = vector.extract_strided_slice %87 {offsets = [2, 0], sizes = [1, 256], strides = [1, 1]} : vector<4x256xf32> to vector<1x256xf32>
      %91 = vector.extract_strided_slice %87 {offsets = [3, 0], sizes = [1, 256], strides = [1, 1]} : vector<4x256xf32> to vector<1x256xf32>
      %c0_28 = arith.constant 0 : index
      %c145 = arith.constant 145 : index
      %92 = vector.load %arg5[%c0_28, %c145] : memref<4x512xf32, #tpu.memory_space<vmem>>, vector<4x256xf32>
      %cst_29 = arith.constant 0.000000e+00 : f32
      %93 = vector.shape_cast %31 : vector<1x256xi1> to vector<1x256xi1>
      %94 = vector.broadcast %93 : vector<1x256xi1> to vector<4x256xi1>
      %95 = vector.broadcast %cst_29 : f32 to vector<4x256xf32>
      %96 = arith.select %94, %92, %95 : vector<4x256xi1>, vector<4x256xf32>
      %97 = vector.extract_strided_slice %96 {offsets = [0, 0], sizes = [1, 256], strides = [1, 1]} : vector<4x256xf32> to vector<1x256xf32>
      %98 = vector.extract_strided_slice %96 {offsets = [1, 0], sizes = [1, 256], strides = [1, 1]} : vector<4x256xf32> to vector<1x256xf32>
      %99 = vector.extract_strided_slice %96 {offsets = [2, 0], sizes = [1, 256], strides = [1, 1]} : vector<4x256xf32> to vector<1x256xf32>
      %100 = vector.extract_strided_slice %96 {offsets = [3, 0], sizes = [1, 256], strides = [1, 1]} : vector<4x256xf32> to vector<1x256xf32>
      %cst_30 = arith.constant 0.000000e+00 : f32
      %101 = vector.broadcast %cst_30 : f32 to vector<1x256xf32>
      %cst_31 = arith.constant 0.000000e+00 : f32
      %102 = vector.broadcast %cst_31 : f32 to vector<1x256xf32>
      %cst_32 = arith.constant 0.000000e+00 : f32
      %103 = vector.broadcast %cst_32 : f32 to vector<1x256xf32>
      %c0_33 = arith.constant 0 : index
      %104 = memref.load %arg3[%c0_33] : memref<144xf32, #tpu.memory_space<smem>>
      %105 = vector.broadcast %104 : f32 to vector<1x256xf32>
      %106 = arith.mulf %105, %37 : vector<1x256xf32>
      %107 = arith.addf %101, %106 : vector<1x256xf32>
      %c1 = arith.constant 1 : index
      %108 = memref.load %arg3[%c1] : memref<144xf32, #tpu.memory_space<smem>>
      %109 = vector.broadcast %108 : f32 to vector<1x256xf32>
      %110 = arith.mulf %109, %42 : vector<1x256xf32>
      %111 = arith.addf %107, %110 : vector<1x256xf32>
      %c2 = arith.constant 2 : index
      %112 = memref.load %arg3[%c2] : memref<144xf32, #tpu.memory_space<smem>>
      %113 = vector.broadcast %112 : f32 to vector<1x256xf32>
      %114 = arith.mulf %113, %51 : vector<1x256xf32>
      %115 = arith.addf %111, %114 : vector<1x256xf32>
      %c3 = arith.constant 3 : index
      %116 = memref.load %arg3[%c3] : memref<144xf32, #tpu.memory_space<smem>>
      %117 = vector.broadcast %116 : f32 to vector<1x256xf32>
      %118 = arith.mulf %117, %60 : vector<1x256xf32>
      %119 = arith.addf %102, %118 : vector<1x256xf32>
      %c4 = arith.constant 4 : index
      %120 = memref.load %arg3[%c4] : memref<144xf32, #tpu.memory_space<smem>>
      %121 = vector.broadcast %120 : f32 to vector<1x256xf32>
      %122 = arith.mulf %121, %65 : vector<1x256xf32>
      %123 = arith.addf %119, %122 : vector<1x256xf32>
      %c5 = arith.constant 5 : index
      %124 = memref.load %arg3[%c5] : memref<144xf32, #tpu.memory_space<smem>>
      %125 = vector.broadcast %124 : f32 to vector<1x256xf32>
      %126 = arith.mulf %125, %74 : vector<1x256xf32>
      %127 = arith.addf %123, %126 : vector<1x256xf32>
      %c6 = arith.constant 6 : index
      %128 = memref.load %arg3[%c6] : memref<144xf32, #tpu.memory_space<smem>>
      %129 = vector.broadcast %128 : f32 to vector<1x256xf32>
      %130 = arith.mulf %129, %83 : vector<1x256xf32>
      %131 = arith.addf %103, %130 : vector<1x256xf32>
      %c7 = arith.constant 7 : index
      %132 = memref.load %arg3[%c7] : memref<144xf32, #tpu.memory_space<smem>>
      %133 = vector.broadcast %132 : f32 to vector<1x256xf32>
      %134 = arith.mulf %133, %88 : vector<1x256xf32>
      %135 = arith.addf %131, %134 : vector<1x256xf32>
      %c8 = arith.constant 8 : index
      %136 = memref.load %arg3[%c8] : memref<144xf32, #tpu.memory_space<smem>>
      %137 = vector.broadcast %136 : f32 to vector<1x256xf32>
      %138 = arith.mulf %137, %97 : vector<1x256xf32>
      %139 = arith.addf %135, %138 : vector<1x256xf32>
      %c9 = arith.constant 9 : index
      %140 = memref.load %arg3[%c9] : memref<144xf32, #tpu.memory_space<smem>>
      %141 = vector.broadcast %140 : f32 to vector<1x256xf32>
      %142 = arith.mulf %141, %38 : vector<1x256xf32>
      %143 = arith.addf %115, %142 : vector<1x256xf32>
      %c10 = arith.constant 10 : index
      %144 = memref.load %arg3[%c10] : memref<144xf32, #tpu.memory_space<smem>>
      %145 = vector.broadcast %144 : f32 to vector<1x256xf32>
      %146 = arith.mulf %145, %43 : vector<1x256xf32>
      %147 = arith.addf %143, %146 : vector<1x256xf32>
      %c11 = arith.constant 11 : index
      %148 = memref.load %arg3[%c11] : memref<144xf32, #tpu.memory_space<smem>>
      %149 = vector.broadcast %148 : f32 to vector<1x256xf32>
      %150 = arith.mulf %149, %52 : vector<1x256xf32>
      %151 = arith.addf %147, %150 : vector<1x256xf32>
      %c12 = arith.constant 12 : index
      %152 = memref.load %arg3[%c12] : memref<144xf32, #tpu.memory_space<smem>>
      %153 = vector.broadcast %152 : f32 to vector<1x256xf32>
      %154 = arith.mulf %153, %61 : vector<1x256xf32>
      %155 = arith.addf %127, %154 : vector<1x256xf32>
      %c13 = arith.constant 13 : index
      %156 = memref.load %arg3[%c13] : memref<144xf32, #tpu.memory_space<smem>>
      %157 = vector.broadcast %156 : f32 to vector<1x256xf32>
      %158 = arith.mulf %157, %66 : vector<1x256xf32>
      %159 = arith.addf %155, %158 : vector<1x256xf32>
      %c14 = arith.constant 14 : index
      %160 = memref.load %arg3[%c14] : memref<144xf32, #tpu.memory_space<smem>>
      %161 = vector.broadcast %160 : f32 to vector<1x256xf32>
      %162 = arith.mulf %161, %75 : vector<1x256xf32>
      %163 = arith.addf %159, %162 : vector<1x256xf32>
      %c15 = arith.constant 15 : index
      %164 = memref.load %arg3[%c15] : memref<144xf32, #tpu.memory_space<smem>>
      %165 = vector.broadcast %164 : f32 to vector<1x256xf32>
      %166 = arith.mulf %165, %84 : vector<1x256xf32>
      %167 = arith.addf %139, %166 : vector<1x256xf32>
      %c16 = arith.constant 16 : index
      %168 = memref.load %arg3[%c16] : memref<144xf32, #tpu.memory_space<smem>>
      %169 = vector.broadcast %168 : f32 to vector<1x256xf32>
      %170 = arith.mulf %169, %89 : vector<1x256xf32>
      %171 = arith.addf %167, %170 : vector<1x256xf32>
      %c17 = arith.constant 17 : index
      %172 = memref.load %arg3[%c17] : memref<144xf32, #tpu.memory_space<smem>>
      %173 = vector.broadcast %172 : f32 to vector<1x256xf32>
      %174 = arith.mulf %173, %98 : vector<1x256xf32>
      %175 = arith.addf %171, %174 : vector<1x256xf32>
      %176 = arith.addf %151, %163 : vector<1x256xf32>
      %177 = arith.addf %176, %175 : vector<1x256xf32>
      %c0_34 = arith.constant 0 : index
      %c0_35 = arith.constant 0 : index
      %c0_36 = arith.constant 0 : index
      %c0_37 = arith.constant 0 : index
      %178 = vector.load %arg4[%c0_34, %c0_35, %c0_36, %c0_37] : memref<1x1x4x256xf32, #tpu.memory_space<vmem>>, vector<1x1x1x256xf32>
      %179 = vector.shape_cast %178 : vector<1x1x1x256xf32> to vector<1x256xf32>
      %180 = vector.shape_cast %177 : vector<1x256xf32> to vector<1x1x1x256xf32>
      tpu.vector_store %arg4[%c0_34, %c0_35, %c0_36, %c0_37], %180 {strides = array<i32>} : memref<1x1x4x256xf32, #tpu.memory_space<vmem>>, vector<1x1x1x256xf32>,
      %cst_38 = arith.constant 0.000000e+00 : f32
      %181 = vector.broadcast %cst_38 : f32 to vector<1x256xf32>
      %cst_39 = arith.constant 0.000000e+00 : f32
      %182 = vector.broadcast %cst_39 : f32 to vector<1x256xf32>
      %cst_40 = arith.constant 0.000000e+00 : f32
      %183 = vector.broadcast %cst_40 : f32 to vector<1x256xf32>
      %c18 = arith.constant 18 : index
      %184 = memref.load %arg3[%c18] : memref<144xf32, #tpu.memory_space<smem>>
      %185 = vector.broadcast %184 : f32 to vector<1x256xf32>
      %186 = arith.mulf %185, %37 : vector<1x256xf32>
      %187 = arith.addf %181, %186 : vector<1x256xf32>
      %c19 = arith.constant 19 : index
      %188 = memref.load %arg3[%c19] : memref<144xf32, #tpu.memory_space<smem>>
      %189 = vector.broadcast %188 : f32 to vector<1x256xf32>
      %190 = arith.mulf %189, %42 : vector<1x256xf32>
      %191 = arith.addf %187, %190 : vector<1x256xf32>
      %c20 = arith.constant 20 : index
      %192 = memref.load %arg3[%c20] : memref<144xf32, #tpu.memory_space<smem>>
      %193 = vector.broadcast %192 : f32 to vector<1x256xf32>
      %194 = arith.mulf %193, %51 : vector<1x256xf32>
      %195 = arith.addf %191, %194 : vector<1x256xf32>
      %c21 = arith.constant 21 : index
      %196 = memref.load %arg3[%c21] : memref<144xf32, #tpu.memory_space<smem>>
      %197 = vector.broadcast %196 : f32 to vector<1x256xf32>
      %198 = arith.mulf %197, %60 : vector<1x256xf32>
      %199 = arith.addf %182, %198 : vector<1x256xf32>
      %c22 = arith.constant 22 : index
      %200 = memref.load %arg3[%c22] : memref<144xf32, #tpu.memory_space<smem>>
      %201 = vector.broadcast %200 : f32 to vector<1x256xf32>
      %202 = arith.mulf %201, %65 : vector<1x256xf32>
      %203 = arith.addf %199, %202 : vector<1x256xf32>
      %c23 = arith.constant 23 : index
      %204 = memref.load %arg3[%c23] : memref<144xf32, #tpu.memory_space<smem>>
      %205 = vector.broadcast %204 : f32 to vector<1x256xf32>
      %206 = arith.mulf %205, %74 : vector<1x256xf32>
      %207 = arith.addf %203, %206 : vector<1x256xf32>
      %c24 = arith.constant 24 : index
      %208 = memref.load %arg3[%c24] : memref<144xf32, #tpu.memory_space<smem>>
      %209 = vector.broadcast %208 : f32 to vector<1x256xf32>
      %210 = arith.mulf %209, %83 : vector<1x256xf32>
      %211 = arith.addf %183, %210 : vector<1x256xf32>
      %c25 = arith.constant 25 : index
      %212 = memref.load %arg3[%c25] : memref<144xf32, #tpu.memory_space<smem>>
      %213 = vector.broadcast %212 : f32 to vector<1x256xf32>
      %214 = arith.mulf %213, %88 : vector<1x256xf32>
      %215 = arith.addf %211, %214 : vector<1x256xf32>
      %c26 = arith.constant 26 : index
      %216 = memref.load %arg3[%c26] : memref<144xf32, #tpu.memory_space<smem>>
      %217 = vector.broadcast %216 : f32 to vector<1x256xf32>
      %218 = arith.mulf %217, %97 : vector<1x256xf32>
      %219 = arith.addf %215, %218 : vector<1x256xf32>
      %c27 = arith.constant 27 : index
      %220 = memref.load %arg3[%c27] : memref<144xf32, #tpu.memory_space<smem>>
      %221 = vector.broadcast %220 : f32 to vector<1x256xf32>
      %222 = arith.mulf %221, %38 : vector<1x256xf32>
      %223 = arith.addf %195, %222 : vector<1x256xf32>
      %c28 = arith.constant 28 : index
      %224 = memref.load %arg3[%c28] : memref<144xf32, #tpu.memory_space<smem>>
      %225 = vector.broadcast %224 : f32 to vector<1x256xf32>
      %226 = arith.mulf %225, %43 : vector<1x256xf32>
      %227 = arith.addf %223, %226 : vector<1x256xf32>
      %c29 = arith.constant 29 : index
      %228 = memref.load %arg3[%c29] : memref<144xf32, #tpu.memory_space<smem>>
      %229 = vector.broadcast %228 : f32 to vector<1x256xf32>
      %230 = arith.mulf %229, %52 : vector<1x256xf32>
      %231 = arith.addf %227, %230 : vector<1x256xf32>
      %c30 = arith.constant 30 : index
      %232 = memref.load %arg3[%c30] : memref<144xf32, #tpu.memory_space<smem>>
      %233 = vector.broadcast %232 : f32 to vector<1x256xf32>
      %234 = arith.mulf %233, %61 : vector<1x256xf32>
      %235 = arith.addf %207, %234 : vector<1x256xf32>
      %c31 = arith.constant 31 : index
      %236 = memref.load %arg3[%c31] : memref<144xf32, #tpu.memory_space<smem>>
      %237 = vector.broadcast %236 : f32 to vector<1x256xf32>
      %238 = arith.mulf %237, %66 : vector<1x256xf32>
      %239 = arith.addf %235, %238 : vector<1x256xf32>
      %c32 = arith.constant 32 : index
      %240 = memref.load %arg3[%c32] : memref<144xf32, #tpu.memory_space<smem>>
      %241 = vector.broadcast %240 : f32 to vector<1x256xf32>
      %242 = arith.mulf %241, %75 : vector<1x256xf32>
      %243 = arith.addf %239, %242 : vector<1x256xf32>
      %c33 = arith.constant 33 : index
      %244 = memref.load %arg3[%c33] : memref<144xf32, #tpu.memory_space<smem>>
      %245 = vector.broadcast %244 : f32 to vector<1x256xf32>
      %246 = arith.mulf %245, %84 : vector<1x256xf32>
      %247 = arith.addf %219, %246 : vector<1x256xf32>
      %c34 = arith.constant 34 : index
      %248 = memref.load %arg3[%c34] : memref<144xf32, #tpu.memory_space<smem>>
      %249 = vector.broadcast %248 : f32 to vector<1x256xf32>
      %250 = arith.mulf %249, %89 : vector<1x256xf32>
      %251 = arith.addf %247, %250 : vector<1x256xf32>
      %c35 = arith.constant 35 : index
      %252 = memref.load %arg3[%c35] : memref<144xf32, #tpu.memory_space<smem>>
      %253 = vector.broadcast %252 : f32 to vector<1x256xf32>
      %254 = arith.mulf %253, %98 : vector<1x256xf32>
      %255 = arith.addf %251, %254 : vector<1x256xf32>
      %256 = arith.addf %231, %243 : vector<1x256xf32>
      %257 = arith.addf %256, %255 : vector<1x256xf32>
      %c0_41 = arith.constant 0 : index
      %c0_42 = arith.constant 0 : index
      %c1_43 = arith.constant 1 : index
      %c0_44 = arith.constant 0 : index
      %258 = vector.load %arg4[%c0_41, %c0_42, %c1_43, %c0_44] : memref<1x1x4x256xf32, #tpu.memory_space<vmem>>, vector<1x1x1x256xf32>
      %259 = vector.shape_cast %258 : vector<1x1x1x256xf32> to vector<1x256xf32>
      %260 = vector.shape_cast %257 : vector<1x256xf32> to vector<1x1x1x256xf32>
      tpu.vector_store %arg4[%c0_41, %c0_42, %c1_43, %c0_44], %260 {strides = array<i32>} : memref<1x1x4x256xf32, #tpu.memory_space<vmem>>, vector<1x1x1x256xf32>,
      %cst_45 = arith.constant 0.000000e+00 : f32
      %261 = vector.broadcast %cst_45 : f32 to vector<1x256xf32>
      %cst_46 = arith.constant 0.000000e+00 : f32
      %262 = vector.broadcast %cst_46 : f32 to vector<1x256xf32>
      %cst_47 = arith.constant 0.000000e+00 : f32
      %263 = vector.broadcast %cst_47 : f32 to vector<1x256xf32>
      %c36 = arith.constant 36 : index
      %264 = memref.load %arg3[%c36] : memref<144xf32, #tpu.memory_space<smem>>
      %265 = vector.broadcast %264 : f32 to vector<1x256xf32>
      %266 = arith.mulf %265, %39 : vector<1x256xf32>
      %267 = arith.addf %261, %266 : vector<1x256xf32>
      %c37 = arith.constant 37 : index
      %268 = memref.load %arg3[%c37] : memref<144xf32, #tpu.memory_space<smem>>
      %269 = vector.broadcast %268 : f32 to vector<1x256xf32>
      %270 = arith.mulf %269, %44 : vector<1x256xf32>
      %271 = arith.addf %267, %270 : vector<1x256xf32>
      %c38 = arith.constant 38 : index
      %272 = memref.load %arg3[%c38] : memref<144xf32, #tpu.memory_space<smem>>
      %273 = vector.broadcast %272 : f32 to vector<1x256xf32>
      %274 = arith.mulf %273, %53 : vector<1x256xf32>
      %275 = arith.addf %271, %274 : vector<1x256xf32>
      %c39 = arith.constant 39 : index
      %276 = memref.load %arg3[%c39] : memref<144xf32, #tpu.memory_space<smem>>
      %277 = vector.broadcast %276 : f32 to vector<1x256xf32>
      %278 = arith.mulf %277, %62 : vector<1x256xf32>
      %279 = arith.addf %262, %278 : vector<1x256xf32>
      %c40 = arith.constant 40 : index
      %280 = memref.load %arg3[%c40] : memref<144xf32, #tpu.memory_space<smem>>
      %281 = vector.broadcast %280 : f32 to vector<1x256xf32>
      %282 = arith.mulf %281, %67 : vector<1x256xf32>
      %283 = arith.addf %279, %282 : vector<1x256xf32>
      %c41 = arith.constant 41 : index
      %284 = memref.load %arg3[%c41] : memref<144xf32, #tpu.memory_space<smem>>
      %285 = vector.broadcast %284 : f32 to vector<1x256xf32>
      %286 = arith.mulf %285, %76 : vector<1x256xf32>
      %287 = arith.addf %283, %286 : vector<1x256xf32>
      %c42 = arith.constant 42 : index
      %288 = memref.load %arg3[%c42] : memref<144xf32, #tpu.memory_space<smem>>
      %289 = vector.broadcast %288 : f32 to vector<1x256xf32>
      %290 = arith.mulf %289, %85 : vector<1x256xf32>
      %291 = arith.addf %263, %290 : vector<1x256xf32>
      %c43 = arith.constant 43 : index
      %292 = memref.load %arg3[%c43] : memref<144xf32, #tpu.memory_space<smem>>
      %293 = vector.broadcast %292 : f32 to vector<1x256xf32>
      %294 = arith.mulf %293, %90 : vector<1x256xf32>
      %295 = arith.addf %291, %294 : vector<1x256xf32>
      %c44 = arith.constant 44 : index
      %296 = memref.load %arg3[%c44] : memref<144xf32, #tpu.memory_space<smem>>
      %297 = vector.broadcast %296 : f32 to vector<1x256xf32>
      %298 = arith.mulf %297, %99 : vector<1x256xf32>
      %299 = arith.addf %295, %298 : vector<1x256xf32>
      %c45 = arith.constant 45 : index
      %300 = memref.load %arg3[%c45] : memref<144xf32, #tpu.memory_space<smem>>
      %301 = vector.broadcast %300 : f32 to vector<1x256xf32>
      %302 = arith.mulf %301, %40 : vector<1x256xf32>
      %303 = arith.addf %275, %302 : vector<1x256xf32>
      %c46 = arith.constant 46 : index
      %304 = memref.load %arg3[%c46] : memref<144xf32, #tpu.memory_space<smem>>
      %305 = vector.broadcast %304 : f32 to vector<1x256xf32>
      %306 = arith.mulf %305, %45 : vector<1x256xf32>
      %307 = arith.addf %303, %306 : vector<1x256xf32>
      %c47 = arith.constant 47 : index
      %308 = memref.load %arg3[%c47] : memref<144xf32, #tpu.memory_space<smem>>
      %309 = vector.broadcast %308 : f32 to vector<1x256xf32>
      %310 = arith.mulf %309, %54 : vector<1x256xf32>
      %311 = arith.addf %307, %310 : vector<1x256xf32>
      %c48 = arith.constant 48 : index
      %312 = memref.load %arg3[%c48] : memref<144xf32, #tpu.memory_space<smem>>
      %313 = vector.broadcast %312 : f32 to vector<1x256xf32>
      %314 = arith.mulf %313, %63 : vector<1x256xf32>
      %315 = arith.addf %287, %314 : vector<1x256xf32>
      %c49 = arith.constant 49 : index
      %316 = memref.load %arg3[%c49] : memref<144xf32, #tpu.memory_space<smem>>
      %317 = vector.broadcast %316 : f32 to vector<1x256xf32>
      %318 = arith.mulf %317, %68 : vector<1x256xf32>
      %319 = arith.addf %315, %318 : vector<1x256xf32>
      %c50 = arith.constant 50 : index
      %320 = memref.load %arg3[%c50] : memref<144xf32, #tpu.memory_space<smem>>
      %321 = vector.broadcast %320 : f32 to vector<1x256xf32>
      %322 = arith.mulf %321, %77 : vector<1x256xf32>
      %323 = arith.addf %319, %322 : vector<1x256xf32>
      %c51 = arith.constant 51 : index
      %324 = memref.load %arg3[%c51] : memref<144xf32, #tpu.memory_space<smem>>
      %325 = vector.broadcast %324 : f32 to vector<1x256xf32>
      %326 = arith.mulf %325, %86 : vector<1x256xf32>
      %327 = arith.addf %299, %326 : vector<1x256xf32>
      %c52 = arith.constant 52 : index
      %328 = memref.load %arg3[%c52] : memref<144xf32, #tpu.memory_space<smem>>
      %329 = vector.broadcast %328 : f32 to vector<1x256xf32>
      %330 = arith.mulf %329, %91 : vector<1x256xf32>
      %331 = arith.addf %327, %330 : vector<1x256xf32>
      %c53 = arith.constant 53 : index
      %332 = memref.load %arg3[%c53] : memref<144xf32, #tpu.memory_space<smem>>
      %333 = vector.broadcast %332 : f32 to vector<1x256xf32>
      %334 = arith.mulf %333, %100 : vector<1x256xf32>
      %335 = arith.addf %331, %334 : vector<1x256xf32>
      %336 = arith.addf %311, %323 : vector<1x256xf32>
      %337 = arith.addf %336, %335 : vector<1x256xf32>
      %c0_48 = arith.constant 0 : index
      %c0_49 = arith.constant 0 : index
      %c2_50 = arith.constant 2 : index
      %c0_51 = arith.constant 0 : index
      %338 = vector.load %arg4[%c0_48, %c0_49, %c2_50, %c0_51] : memref<1x1x4x256xf32, #tpu.memory_space<vmem>>, vector<1x1x1x256xf32>
      %339 = vector.shape_cast %338 : vector<1x1x1x256xf32> to vector<1x256xf32>
      %340 = vector.shape_cast %337 : vector<1x256xf32> to vector<1x1x1x256xf32>
      tpu.vector_store %arg4[%c0_48, %c0_49, %c2_50, %c0_51], %340 {strides = array<i32>} : memref<1x1x4x256xf32, #tpu.memory_space<vmem>>, vector<1x1x1x256xf32>,
      %cst_52 = arith.constant 0.000000e+00 : f32
      %341 = vector.broadcast %cst_52 : f32 to vector<1x256xf32>
      %cst_53 = arith.constant 0.000000e+00 : f32
      %342 = vector.broadcast %cst_53 : f32 to vector<1x256xf32>
      %cst_54 = arith.constant 0.000000e+00 : f32
      %343 = vector.broadcast %cst_54 : f32 to vector<1x256xf32>
      %c54 = arith.constant 54 : index
      %344 = memref.load %arg3[%c54] : memref<144xf32, #tpu.memory_space<smem>>
      %345 = vector.broadcast %344 : f32 to vector<1x256xf32>
      %346 = arith.mulf %345, %39 : vector<1x256xf32>
      %347 = arith.addf %341, %346 : vector<1x256xf32>
      %c55 = arith.constant 55 : index
      %348 = memref.load %arg3[%c55] : memref<144xf32, #tpu.memory_space<smem>>
      %349 = vector.broadcast %348 : f32 to vector<1x256xf32>
      %350 = arith.mulf %349, %44 : vector<1x256xf32>
      %351 = arith.addf %347, %350 : vector<1x256xf32>
      %c56 = arith.constant 56 : index
      %352 = memref.load %arg3[%c56] : memref<144xf32, #tpu.memory_space<smem>>
      %353 = vector.broadcast %352 : f32 to vector<1x256xf32>
      %354 = arith.mulf %353, %53 : vector<1x256xf32>
      %355 = arith.addf %351, %354 : vector<1x256xf32>
      %c57 = arith.constant 57 : index
      %356 = memref.load %arg3[%c57] : memref<144xf32, #tpu.memory_space<smem>>
      %357 = vector.broadcast %356 : f32 to vector<1x256xf32>
      %358 = arith.mulf %357, %62 : vector<1x256xf32>
      %359 = arith.addf %342, %358 : vector<1x256xf32>
      %c58 = arith.constant 58 : index
      %360 = memref.load %arg3[%c58] : memref<144xf32, #tpu.memory_space<smem>>
      %361 = vector.broadcast %360 : f32 to vector<1x256xf32>
      %362 = arith.mulf %361, %67 : vector<1x256xf32>
      %363 = arith.addf %359, %362 : vector<1x256xf32>
      %c59 = arith.constant 59 : index
      %364 = memref.load %arg3[%c59] : memref<144xf32, #tpu.memory_space<smem>>
      %365 = vector.broadcast %364 : f32 to vector<1x256xf32>
      %366 = arith.mulf %365, %76 : vector<1x256xf32>
      %367 = arith.addf %363, %366 : vector<1x256xf32>
      %c60 = arith.constant 60 : index
      %368 = memref.load %arg3[%c60] : memref<144xf32, #tpu.memory_space<smem>>
      %369 = vector.broadcast %368 : f32 to vector<1x256xf32>
      %370 = arith.mulf %369, %85 : vector<1x256xf32>
      %371 = arith.addf %343, %370 : vector<1x256xf32>
      %c61 = arith.constant 61 : index
      %372 = memref.load %arg3[%c61] : memref<144xf32, #tpu.memory_space<smem>>
      %373 = vector.broadcast %372 : f32 to vector<1x256xf32>
      %374 = arith.mulf %373, %90 : vector<1x256xf32>
      %375 = arith.addf %371, %374 : vector<1x256xf32>
      %c62 = arith.constant 62 : index
      %376 = memref.load %arg3[%c62] : memref<144xf32, #tpu.memory_space<smem>>
      %377 = vector.broadcast %376 : f32 to vector<1x256xf32>
      %378 = arith.mulf %377, %99 : vector<1x256xf32>
      %379 = arith.addf %375, %378 : vector<1x256xf32>
      %c63 = arith.constant 63 : index
      %380 = memref.load %arg3[%c63] : memref<144xf32, #tpu.memory_space<smem>>
      %381 = vector.broadcast %380 : f32 to vector<1x256xf32>
      %382 = arith.mulf %381, %40 : vector<1x256xf32>
      %383 = arith.addf %355, %382 : vector<1x256xf32>
      %c64 = arith.constant 64 : index
      %384 = memref.load %arg3[%c64] : memref<144xf32, #tpu.memory_space<smem>>
      %385 = vector.broadcast %384 : f32 to vector<1x256xf32>
      %386 = arith.mulf %385, %45 : vector<1x256xf32>
      %387 = arith.addf %383, %386 : vector<1x256xf32>
      %c65 = arith.constant 65 : index
      %388 = memref.load %arg3[%c65] : memref<144xf32, #tpu.memory_space<smem>>
      %389 = vector.broadcast %388 : f32 to vector<1x256xf32>
      %390 = arith.mulf %389, %54 : vector<1x256xf32>
      %391 = arith.addf %387, %390 : vector<1x256xf32>
      %c66 = arith.constant 66 : index
      %392 = memref.load %arg3[%c66] : memref<144xf32, #tpu.memory_space<smem>>
      %393 = vector.broadcast %392 : f32 to vector<1x256xf32>
      %394 = arith.mulf %393, %63 : vector<1x256xf32>
      %395 = arith.addf %367, %394 : vector<1x256xf32>
      %c67 = arith.constant 67 : index
      %396 = memref.load %arg3[%c67] : memref<144xf32, #tpu.memory_space<smem>>
      %397 = vector.broadcast %396 : f32 to vector<1x256xf32>
      %398 = arith.mulf %397, %68 : vector<1x256xf32>
      %399 = arith.addf %395, %398 : vector<1x256xf32>
      %c68 = arith.constant 68 : index
      %400 = memref.load %arg3[%c68] : memref<144xf32, #tpu.memory_space<smem>>
      %401 = vector.broadcast %400 : f32 to vector<1x256xf32>
      %402 = arith.mulf %401, %77 : vector<1x256xf32>
      %403 = arith.addf %399, %402 : vector<1x256xf32>
      %c69 = arith.constant 69 : index
      %404 = memref.load %arg3[%c69] : memref<144xf32, #tpu.memory_space<smem>>
      %405 = vector.broadcast %404 : f32 to vector<1x256xf32>
      %406 = arith.mulf %405, %86 : vector<1x256xf32>
      %407 = arith.addf %379, %406 : vector<1x256xf32>
      %c70 = arith.constant 70 : index
      %408 = memref.load %arg3[%c70] : memref<144xf32, #tpu.memory_space<smem>>
      %409 = vector.broadcast %408 : f32 to vector<1x256xf32>
      %410 = arith.mulf %409, %91 : vector<1x256xf32>
      %411 = arith.addf %407, %410 : vector<1x256xf32>
      %c71 = arith.constant 71 : index
      %412 = memref.load %arg3[%c71] : memref<144xf32, #tpu.memory_space<smem>>
      %413 = vector.broadcast %412 : f32 to vector<1x256xf32>
      %414 = arith.mulf %413, %100 : vector<1x256xf32>
      %415 = arith.addf %411, %414 : vector<1x256xf32>
      %416 = arith.addf %391, %403 : vector<1x256xf32>
      %417 = arith.addf %416, %415 : vector<1x256xf32>
      %c0_55 = arith.constant 0 : index
      %c0_56 = arith.constant 0 : index
      %c3_57 = arith.constant 3 : index
      %c0_58 = arith.constant 0 : index
      %418 = vector.load %arg4[%c0_55, %c0_56, %c3_57, %c0_58] : memref<1x1x4x256xf32, #tpu.memory_space<vmem>>, vector<1x1x1x256xf32>
      %419 = vector.shape_cast %418 : vector<1x1x1x256xf32> to vector<1x256xf32>
      %420 = vector.shape_cast %417 : vector<1x256xf32> to vector<1x1x1x256xf32>
      tpu.vector_store %arg4[%c0_55, %c0_56, %c3_57, %c0_58], %420 {strides = array<i32>} : memref<1x1x4x256xf32, #tpu.memory_space<vmem>>, vector<1x1x1x256xf32>,
    } else {
    }
    %c1_i32_11 = arith.constant 1 : i32
    %25 = arith.cmpi eq, %arg1, %c1_i32_11 : i32
    %26 = arith.extui %25 : i1 to i32
    %c0_i32_12 = arith.constant 0 : i32
    %27 = arith.cmpi ne, %26, %c0_i32_12 : i32
    scf.if %27 {
      %c2_i32 = arith.constant 2 : i32
      %28 = vector.broadcast %c2_i32 : i32 to vector<1x256xi32>
      %29 = arith.cmpi sge, %21, %28 : vector<1x256xi32>
      %c14_i32 = arith.constant 14 : i32
      %30 = vector.broadcast %c14_i32 : i32 to vector<1x256xi32>
      %31 = arith.cmpi slt, %21, %30 : vector<1x256xi32>
      %c0_13 = arith.constant 0 : index
      %c94 = arith.constant 94 : index
      %32 = vector.load %arg5[%c0_13, %c94] : memref<4x512xf32, #tpu.memory_space<vmem>>, vector<4x256xf32>
      %cst_14 = arith.constant 0.000000e+00 : f32
      %33 = vector.shape_cast %29 : vector<1x256xi1> to vector<1x256xi1>
      %34 = vector.broadcast %33 : vector<1x256xi1> to vector<4x256xi1>
      %35 = vector.broadcast %cst_14 : f32 to vector<4x256xf32>
      %36 = arith.select %34, %32, %35 : vector<4x256xi1>, vector<4x256xf32>
      %37 = vector.extract_strided_slice %36 {offsets = [0, 0], sizes = [1, 256], strides = [1, 1]} : vector<4x256xf32> to vector<1x256xf32>
      %38 = vector.extract_strided_slice %36 {offsets = [1, 0], sizes = [1, 256], strides = [1, 1]} : vector<4x256xf32> to vector<1x256xf32>
      %39 = vector.extract_strided_slice %36 {offsets = [2, 0], sizes = [1, 256], strides = [1, 1]} : vector<4x256xf32> to vector<1x256xf32>
      %40 = vector.extract_strided_slice %36 {offsets = [3, 0], sizes = [1, 256], strides = [1, 1]} : vector<4x256xf32> to vector<1x256xf32>
      %c0_15 = arith.constant 0 : index
      %c96 = arith.constant 96 : index
      %41 = vector.load %arg5[%c0_15, %c96] : memref<4x512xf32, #tpu.memory_space<vmem>>, vector<4x256xf32>
      %42 = vector.extract_strided_slice %41 {offsets = [0, 0], sizes = [1, 256], strides = [1, 1]} : vector<4x256xf32> to vector<1x256xf32>
      %43 = vector.extract_strided_slice %41 {offsets = [1, 0], sizes = [1, 256], strides = [1, 1]} : vector<4x256xf32> to vector<1x256xf32>
      %44 = vector.extract_strided_slice %41 {offsets = [2, 0], sizes = [1, 256], strides = [1, 1]} : vector<4x256xf32> to vector<1x256xf32>
      %45 = vector.extract_strided_slice %41 {offsets = [3, 0], sizes = [1, 256], strides = [1, 1]} : vector<4x256xf32> to vector<1x256xf32>
      %c0_16 = arith.constant 0 : index
      %c98 = arith.constant 98 : index
      %46 = vector.load %arg5[%c0_16, %c98] : memref<4x512xf32, #tpu.memory_space<vmem>>, vector<4x256xf32>
      %cst_17 = arith.constant 0.000000e+00 : f32
      %47 = vector.shape_cast %31 : vector<1x256xi1> to vector<1x256xi1>
      %48 = vector.broadcast %47 : vector<1x256xi1> to vector<4x256xi1>
      %49 = vector.broadcast %cst_17 : f32 to vector<4x256xf32>
      %50 = arith.select %48, %46, %49 : vector<4x256xi1>, vector<4x256xf32>
      %51 = vector.extract_strided_slice %50 {offsets = [0, 0], sizes = [1, 256], strides = [1, 1]} : vector<4x256xf32> to vector<1x256xf32>
      %52 = vector.extract_strided_slice %50 {offsets = [1, 0], sizes = [1, 256], strides = [1, 1]} : vector<4x256xf32> to vector<1x256xf32>
      %53 = vector.extract_strided_slice %50 {offsets = [2, 0], sizes = [1, 256], strides = [1, 1]} : vector<4x256xf32> to vector<1x256xf32>
      %54 = vector.extract_strided_slice %50 {offsets = [3, 0], sizes = [1, 256], strides = [1, 1]} : vector<4x256xf32> to vector<1x256xf32>
      %c0_18 = arith.constant 0 : index
      %c126 = arith.constant 126 : index
      %55 = vector.load %arg5[%c0_18, %c126] : memref<4x512xf32, #tpu.memory_space<vmem>>, vector<4x256xf32>
      %cst_19 = arith.constant 0.000000e+00 : f32
      %56 = vector.shape_cast %29 : vector<1x256xi1> to vector<1x256xi1>
      %57 = vector.broadcast %56 : vector<1x256xi1> to vector<4x256xi1>
      %58 = vector.broadcast %cst_19 : f32 to vector<4x256xf32>
      %59 = arith.select %57, %55, %58 : vector<4x256xi1>, vector<4x256xf32>
      %60 = vector.extract_strided_slice %59 {offsets = [0, 0], sizes = [1, 256], strides = [1, 1]} : vector<4x256xf32> to vector<1x256xf32>
      %61 = vector.extract_strided_slice %59 {offsets = [1, 0], sizes = [1, 256], strides = [1, 1]} : vector<4x256xf32> to vector<1x256xf32>
      %62 = vector.extract_strided_slice %59 {offsets = [2, 0], sizes = [1, 256], strides = [1, 1]} : vector<4x256xf32> to vector<1x256xf32>
      %63 = vector.extract_strided_slice %59 {offsets = [3, 0], sizes = [1, 256], strides = [1, 1]} : vector<4x256xf32> to vector<1x256xf32>
      %c0_20 = arith.constant 0 : index
      %c128_21 = arith.constant 128 : index
      %64 = vector.load %arg5[%c0_20, %c128_21] : memref<4x512xf32, #tpu.memory_space<vmem>>, vector<4x256xf32>
      %65 = vector.extract_strided_slice %64 {offsets = [0, 0], sizes = [1, 256], strides = [1, 1]} : vector<4x256xf32> to vector<1x256xf32>
      %66 = vector.extract_strided_slice %64 {offsets = [1, 0], sizes = [1, 256], strides = [1, 1]} : vector<4x256xf32> to vector<1x256xf32>
      %67 = vector.extract_strided_slice %64 {offsets = [2, 0], sizes = [1, 256], strides = [1, 1]} : vector<4x256xf32> to vector<1x256xf32>
      %68 = vector.extract_strided_slice %64 {offsets = [3, 0], sizes = [1, 256], strides = [1, 1]} : vector<4x256xf32> to vector<1x256xf32>
      %c0_22 = arith.constant 0 : index
      %c130 = arith.constant 130 : index
      %69 = vector.load %arg5[%c0_22, %c130] : memref<4x512xf32, #tpu.memory_space<vmem>>, vector<4x256xf32>
      %cst_23 = arith.constant 0.000000e+00 : f32
      %70 = vector.shape_cast %31 : vector<1x256xi1> to vector<1x256xi1>
      %71 = vector.broadcast %70 : vector<1x256xi1> to vector<4x256xi1>
      %72 = vector.broadcast %cst_23 : f32 to vector<4x256xf32>
      %73 = arith.select %71, %69, %72 : vector<4x256xi1>, vector<4x256xf32>
      %74 = vector.extract_strided_slice %73 {offsets = [0, 0], sizes = [1, 256], strides = [1, 1]} : vector<4x256xf32> to vector<1x256xf32>
      %75 = vector.extract_strided_slice %73 {offsets = [1, 0], sizes = [1, 256], strides = [1, 1]} : vector<4x256xf32> to vector<1x256xf32>
      %76 = vector.extract_strided_slice %73 {offsets = [2, 0], sizes = [1, 256], strides = [1, 1]} : vector<4x256xf32> to vector<1x256xf32>
      %77 = vector.extract_strided_slice %73 {offsets = [3, 0], sizes = [1, 256], strides = [1, 1]} : vector<4x256xf32> to vector<1x256xf32>
      %c0_24 = arith.constant 0 : index
      %c158 = arith.constant 158 : index
      %78 = vector.load %arg5[%c0_24, %c158] : memref<4x512xf32, #tpu.memory_space<vmem>>, vector<4x256xf32>
      %cst_25 = arith.constant 0.000000e+00 : f32
      %79 = vector.shape_cast %29 : vector<1x256xi1> to vector<1x256xi1>
      %80 = vector.broadcast %79 : vector<1x256xi1> to vector<4x256xi1>
      %81 = vector.broadcast %cst_25 : f32 to vector<4x256xf32>
      %82 = arith.select %80, %78, %81 : vector<4x256xi1>, vector<4x256xf32>
      %83 = vector.extract_strided_slice %82 {offsets = [0, 0], sizes = [1, 256], strides = [1, 1]} : vector<4x256xf32> to vector<1x256xf32>
      %84 = vector.extract_strided_slice %82 {offsets = [1, 0], sizes = [1, 256], strides = [1, 1]} : vector<4x256xf32> to vector<1x256xf32>
      %85 = vector.extract_strided_slice %82 {offsets = [2, 0], sizes = [1, 256], strides = [1, 1]} : vector<4x256xf32> to vector<1x256xf32>
      %86 = vector.extract_strided_slice %82 {offsets = [3, 0], sizes = [1, 256], strides = [1, 1]} : vector<4x256xf32> to vector<1x256xf32>
      %c0_26 = arith.constant 0 : index
      %c160 = arith.constant 160 : index
      %87 = vector.load %arg5[%c0_26, %c160] : memref<4x512xf32, #tpu.memory_space<vmem>>, vector<4x256xf32>
      %88 = vector.extract_strided_slice %87 {offsets = [0, 0], sizes = [1, 256], strides = [1, 1]} : vector<4x256xf32> to vector<1x256xf32>
      %89 = vector.extract_strided_slice %87 {offsets = [1, 0], sizes = [1, 256], strides = [1, 1]} : vector<4x256xf32> to vector<1x256xf32>
      %90 = vector.extract_strided_slice %87 {offsets = [2, 0], sizes = [1, 256], strides = [1, 1]} : vector<4x256xf32> to vector<1x256xf32>
      %91 = vector.extract_strided_slice %87 {offsets = [3, 0], sizes = [1, 256], strides = [1, 1]} : vector<4x256xf32> to vector<1x256xf32>
      %c0_27 = arith.constant 0 : index
      %c162 = arith.constant 162 : index
      %92 = vector.load %arg5[%c0_27, %c162] : memref<4x512xf32, #tpu.memory_space<vmem>>, vector<4x256xf32>
      %cst_28 = arith.constant 0.000000e+00 : f32
      %93 = vector.shape_cast %31 : vector<1x256xi1> to vector<1x256xi1>
      %94 = vector.broadcast %93 : vector<1x256xi1> to vector<4x256xi1>
      %95 = vector.broadcast %cst_28 : f32 to vector<4x256xf32>
      %96 = arith.select %94, %92, %95 : vector<4x256xi1>, vector<4x256xf32>
      %97 = vector.extract_strided_slice %96 {offsets = [0, 0], sizes = [1, 256], strides = [1, 1]} : vector<4x256xf32> to vector<1x256xf32>
      %98 = vector.extract_strided_slice %96 {offsets = [1, 0], sizes = [1, 256], strides = [1, 1]} : vector<4x256xf32> to vector<1x256xf32>
      %99 = vector.extract_strided_slice %96 {offsets = [2, 0], sizes = [1, 256], strides = [1, 1]} : vector<4x256xf32> to vector<1x256xf32>
      %100 = vector.extract_strided_slice %96 {offsets = [3, 0], sizes = [1, 256], strides = [1, 1]} : vector<4x256xf32> to vector<1x256xf32>
      %cst_29 = arith.constant 0.000000e+00 : f32
      %101 = vector.broadcast %cst_29 : f32 to vector<1x256xf32>
      %cst_30 = arith.constant 0.000000e+00 : f32
      %102 = vector.broadcast %cst_30 : f32 to vector<1x256xf32>
      %cst_31 = arith.constant 0.000000e+00 : f32
      %103 = vector.broadcast %cst_31 : f32 to vector<1x256xf32>
      %c72 = arith.constant 72 : index
      %104 = memref.load %arg3[%c72] : memref<144xf32, #tpu.memory_space<smem>>
      %105 = vector.broadcast %104 : f32 to vector<1x256xf32>
      %106 = arith.mulf %105, %37 : vector<1x256xf32>
      %107 = arith.addf %101, %106 : vector<1x256xf32>
      %c73 = arith.constant 73 : index
      %108 = memref.load %arg3[%c73] : memref<144xf32, #tpu.memory_space<smem>>
      %109 = vector.broadcast %108 : f32 to vector<1x256xf32>
      %110 = arith.mulf %109, %42 : vector<1x256xf32>
      %111 = arith.addf %107, %110 : vector<1x256xf32>
      %c74 = arith.constant 74 : index
      %112 = memref.load %arg3[%c74] : memref<144xf32, #tpu.memory_space<smem>>
      %113 = vector.broadcast %112 : f32 to vector<1x256xf32>
      %114 = arith.mulf %113, %51 : vector<1x256xf32>
      %115 = arith.addf %111, %114 : vector<1x256xf32>
      %c75 = arith.constant 75 : index
      %116 = memref.load %arg3[%c75] : memref<144xf32, #tpu.memory_space<smem>>
      %117 = vector.broadcast %116 : f32 to vector<1x256xf32>
      %118 = arith.mulf %117, %60 : vector<1x256xf32>
      %119 = arith.addf %102, %118 : vector<1x256xf32>
      %c76 = arith.constant 76 : index
      %120 = memref.load %arg3[%c76] : memref<144xf32, #tpu.memory_space<smem>>
      %121 = vector.broadcast %120 : f32 to vector<1x256xf32>
      %122 = arith.mulf %121, %65 : vector<1x256xf32>
      %123 = arith.addf %119, %122 : vector<1x256xf32>
      %c77 = arith.constant 77 : index
      %124 = memref.load %arg3[%c77] : memref<144xf32, #tpu.memory_space<smem>>
      %125 = vector.broadcast %124 : f32 to vector<1x256xf32>
      %126 = arith.mulf %125, %74 : vector<1x256xf32>
      %127 = arith.addf %123, %126 : vector<1x256xf32>
      %c78 = arith.constant 78 : index
      %128 = memref.load %arg3[%c78] : memref<144xf32, #tpu.memory_space<smem>>
      %129 = vector.broadcast %128 : f32 to vector<1x256xf32>
      %130 = arith.mulf %129, %83 : vector<1x256xf32>
      %131 = arith.addf %103, %130 : vector<1x256xf32>
      %c79 = arith.constant 79 : index
      %132 = memref.load %arg3[%c79] : memref<144xf32, #tpu.memory_space<smem>>
      %133 = vector.broadcast %132 : f32 to vector<1x256xf32>
      %134 = arith.mulf %133, %88 : vector<1x256xf32>
      %135 = arith.addf %131, %134 : vector<1x256xf32>
      %c80 = arith.constant 80 : index
      %136 = memref.load %arg3[%c80] : memref<144xf32, #tpu.memory_space<smem>>
      %137 = vector.broadcast %136 : f32 to vector<1x256xf32>
      %138 = arith.mulf %137, %97 : vector<1x256xf32>
      %139 = arith.addf %135, %138 : vector<1x256xf32>
      %c81 = arith.constant 81 : index
      %140 = memref.load %arg3[%c81] : memref<144xf32, #tpu.memory_space<smem>>
      %141 = vector.broadcast %140 : f32 to vector<1x256xf32>
      %142 = arith.mulf %141, %38 : vector<1x256xf32>
      %143 = arith.addf %115, %142 : vector<1x256xf32>
      %c82 = arith.constant 82 : index
      %144 = memref.load %arg3[%c82] : memref<144xf32, #tpu.memory_space<smem>>
      %145 = vector.broadcast %144 : f32 to vector<1x256xf32>
      %146 = arith.mulf %145, %43 : vector<1x256xf32>
      %147 = arith.addf %143, %146 : vector<1x256xf32>
      %c83 = arith.constant 83 : index
      %148 = memref.load %arg3[%c83] : memref<144xf32, #tpu.memory_space<smem>>
      %149 = vector.broadcast %148 : f32 to vector<1x256xf32>
      %150 = arith.mulf %149, %52 : vector<1x256xf32>
      %151 = arith.addf %147, %150 : vector<1x256xf32>
      %c84 = arith.constant 84 : index
      %152 = memref.load %arg3[%c84] : memref<144xf32, #tpu.memory_space<smem>>
      %153 = vector.broadcast %152 : f32 to vector<1x256xf32>
      %154 = arith.mulf %153, %61 : vector<1x256xf32>
      %155 = arith.addf %127, %154 : vector<1x256xf32>
      %c85 = arith.constant 85 : index
      %156 = memref.load %arg3[%c85] : memref<144xf32, #tpu.memory_space<smem>>
      %157 = vector.broadcast %156 : f32 to vector<1x256xf32>
      %158 = arith.mulf %157, %66 : vector<1x256xf32>
      %159 = arith.addf %155, %158 : vector<1x256xf32>
      %c86 = arith.constant 86 : index
      %160 = memref.load %arg3[%c86] : memref<144xf32, #tpu.memory_space<smem>>
      %161 = vector.broadcast %160 : f32 to vector<1x256xf32>
      %162 = arith.mulf %161, %75 : vector<1x256xf32>
      %163 = arith.addf %159, %162 : vector<1x256xf32>
      %c87 = arith.constant 87 : index
      %164 = memref.load %arg3[%c87] : memref<144xf32, #tpu.memory_space<smem>>
      %165 = vector.broadcast %164 : f32 to vector<1x256xf32>
      %166 = arith.mulf %165, %84 : vector<1x256xf32>
      %167 = arith.addf %139, %166 : vector<1x256xf32>
      %c88 = arith.constant 88 : index
      %168 = memref.load %arg3[%c88] : memref<144xf32, #tpu.memory_space<smem>>
      %169 = vector.broadcast %168 : f32 to vector<1x256xf32>
      %170 = arith.mulf %169, %89 : vector<1x256xf32>
      %171 = arith.addf %167, %170 : vector<1x256xf32>
      %c89 = arith.constant 89 : index
      %172 = memref.load %arg3[%c89] : memref<144xf32, #tpu.memory_space<smem>>
      %173 = vector.broadcast %172 : f32 to vector<1x256xf32>
      %174 = arith.mulf %173, %98 : vector<1x256xf32>
      %175 = arith.addf %171, %174 : vector<1x256xf32>
      %176 = arith.addf %151, %163 : vector<1x256xf32>
      %177 = arith.addf %176, %175 : vector<1x256xf32>
      %c0_32 = arith.constant 0 : index
      %c0_33 = arith.constant 0 : index
      %c0_34 = arith.constant 0 : index
      %c0_35 = arith.constant 0 : index
      %178 = vector.load %arg4[%c0_32, %c0_33, %c0_34, %c0_35] : memref<1x1x4x256xf32, #tpu.memory_space<vmem>>, vector<1x1x1x256xf32>
      %179 = vector.shape_cast %178 : vector<1x1x1x256xf32> to vector<1x256xf32>
      %180 = vector.shape_cast %177 : vector<1x256xf32> to vector<1x1x1x256xf32>
      tpu.vector_store %arg4[%c0_32, %c0_33, %c0_34, %c0_35], %180 {strides = array<i32>} : memref<1x1x4x256xf32, #tpu.memory_space<vmem>>, vector<1x1x1x256xf32>,
      %cst_36 = arith.constant 0.000000e+00 : f32
      %181 = vector.broadcast %cst_36 : f32 to vector<1x256xf32>
      %cst_37 = arith.constant 0.000000e+00 : f32
      %182 = vector.broadcast %cst_37 : f32 to vector<1x256xf32>
      %cst_38 = arith.constant 0.000000e+00 : f32
      %183 = vector.broadcast %cst_38 : f32 to vector<1x256xf32>
      %c90 = arith.constant 90 : index
      %184 = memref.load %arg3[%c90] : memref<144xf32, #tpu.memory_space<smem>>
      %185 = vector.broadcast %184 : f32 to vector<1x256xf32>
      %186 = arith.mulf %185, %37 : vector<1x256xf32>
      %187 = arith.addf %181, %186 : vector<1x256xf32>
      %c91 = arith.constant 91 : index
      %188 = memref.load %arg3[%c91] : memref<144xf32, #tpu.memory_space<smem>>
      %189 = vector.broadcast %188 : f32 to vector<1x256xf32>
      %190 = arith.mulf %189, %42 : vector<1x256xf32>
      %191 = arith.addf %187, %190 : vector<1x256xf32>
      %c92 = arith.constant 92 : index
      %192 = memref.load %arg3[%c92] : memref<144xf32, #tpu.memory_space<smem>>
      %193 = vector.broadcast %192 : f32 to vector<1x256xf32>
      %194 = arith.mulf %193, %51 : vector<1x256xf32>
      %195 = arith.addf %191, %194 : vector<1x256xf32>
      %c93 = arith.constant 93 : index
      %196 = memref.load %arg3[%c93] : memref<144xf32, #tpu.memory_space<smem>>
      %197 = vector.broadcast %196 : f32 to vector<1x256xf32>
      %198 = arith.mulf %197, %60 : vector<1x256xf32>
      %199 = arith.addf %182, %198 : vector<1x256xf32>
      %c94_39 = arith.constant 94 : index
      %200 = memref.load %arg3[%c94_39] : memref<144xf32, #tpu.memory_space<smem>>
      %201 = vector.broadcast %200 : f32 to vector<1x256xf32>
      %202 = arith.mulf %201, %65 : vector<1x256xf32>
      %203 = arith.addf %199, %202 : vector<1x256xf32>
      %c95 = arith.constant 95 : index
      %204 = memref.load %arg3[%c95] : memref<144xf32, #tpu.memory_space<smem>>
      %205 = vector.broadcast %204 : f32 to vector<1x256xf32>
      %206 = arith.mulf %205, %74 : vector<1x256xf32>
      %207 = arith.addf %203, %206 : vector<1x256xf32>
      %c96_40 = arith.constant 96 : index
      %208 = memref.load %arg3[%c96_40] : memref<144xf32, #tpu.memory_space<smem>>
      %209 = vector.broadcast %208 : f32 to vector<1x256xf32>
      %210 = arith.mulf %209, %83 : vector<1x256xf32>
      %211 = arith.addf %183, %210 : vector<1x256xf32>
      %c97 = arith.constant 97 : index
      %212 = memref.load %arg3[%c97] : memref<144xf32, #tpu.memory_space<smem>>
      %213 = vector.broadcast %212 : f32 to vector<1x256xf32>
      %214 = arith.mulf %213, %88 : vector<1x256xf32>
      %215 = arith.addf %211, %214 : vector<1x256xf32>
      %c98_41 = arith.constant 98 : index
      %216 = memref.load %arg3[%c98_41] : memref<144xf32, #tpu.memory_space<smem>>
      %217 = vector.broadcast %216 : f32 to vector<1x256xf32>
      %218 = arith.mulf %217, %97 : vector<1x256xf32>
      %219 = arith.addf %215, %218 : vector<1x256xf32>
      %c99 = arith.constant 99 : index
      %220 = memref.load %arg3[%c99] : memref<144xf32, #tpu.memory_space<smem>>
      %221 = vector.broadcast %220 : f32 to vector<1x256xf32>
      %222 = arith.mulf %221, %38 : vector<1x256xf32>
      %223 = arith.addf %195, %222 : vector<1x256xf32>
      %c100 = arith.constant 100 : index
      %224 = memref.load %arg3[%c100] : memref<144xf32, #tpu.memory_space<smem>>
      %225 = vector.broadcast %224 : f32 to vector<1x256xf32>
      %226 = arith.mulf %225, %43 : vector<1x256xf32>
      %227 = arith.addf %223, %226 : vector<1x256xf32>
      %c101 = arith.constant 101 : index
      %228 = memref.load %arg3[%c101] : memref<144xf32, #tpu.memory_space<smem>>
      %229 = vector.broadcast %228 : f32 to vector<1x256xf32>
      %230 = arith.mulf %229, %52 : vector<1x256xf32>
      %231 = arith.addf %227, %230 : vector<1x256xf32>
      %c102 = arith.constant 102 : index
      %232 = memref.load %arg3[%c102] : memref<144xf32, #tpu.memory_space<smem>>
      %233 = vector.broadcast %232 : f32 to vector<1x256xf32>
      %234 = arith.mulf %233, %61 : vector<1x256xf32>
      %235 = arith.addf %207, %234 : vector<1x256xf32>
      %c103 = arith.constant 103 : index
      %236 = memref.load %arg3[%c103] : memref<144xf32, #tpu.memory_space<smem>>
      %237 = vector.broadcast %236 : f32 to vector<1x256xf32>
      %238 = arith.mulf %237, %66 : vector<1x256xf32>
      %239 = arith.addf %235, %238 : vector<1x256xf32>
      %c104 = arith.constant 104 : index
      %240 = memref.load %arg3[%c104] : memref<144xf32, #tpu.memory_space<smem>>
      %241 = vector.broadcast %240 : f32 to vector<1x256xf32>
      %242 = arith.mulf %241, %75 : vector<1x256xf32>
      %243 = arith.addf %239, %242 : vector<1x256xf32>
      %c105 = arith.constant 105 : index
      %244 = memref.load %arg3[%c105] : memref<144xf32, #tpu.memory_space<smem>>
      %245 = vector.broadcast %244 : f32 to vector<1x256xf32>
      %246 = arith.mulf %245, %84 : vector<1x256xf32>
      %247 = arith.addf %219, %246 : vector<1x256xf32>
      %c106 = arith.constant 106 : index
      %248 = memref.load %arg3[%c106] : memref<144xf32, #tpu.memory_space<smem>>
      %249 = vector.broadcast %248 : f32 to vector<1x256xf32>
      %250 = arith.mulf %249, %89 : vector<1x256xf32>
      %251 = arith.addf %247, %250 : vector<1x256xf32>
      %c107 = arith.constant 107 : index
      %252 = memref.load %arg3[%c107] : memref<144xf32, #tpu.memory_space<smem>>
      %253 = vector.broadcast %252 : f32 to vector<1x256xf32>
      %254 = arith.mulf %253, %98 : vector<1x256xf32>
      %255 = arith.addf %251, %254 : vector<1x256xf32>
      %256 = arith.addf %231, %243 : vector<1x256xf32>
      %257 = arith.addf %256, %255 : vector<1x256xf32>
      %c0_42 = arith.constant 0 : index
      %c0_43 = arith.constant 0 : index
      %c1 = arith.constant 1 : index
      %c0_44 = arith.constant 0 : index
      %258 = vector.load %arg4[%c0_42, %c0_43, %c1, %c0_44] : memref<1x1x4x256xf32, #tpu.memory_space<vmem>>, vector<1x1x1x256xf32>
      %259 = vector.shape_cast %258 : vector<1x1x1x256xf32> to vector<1x256xf32>
      %260 = vector.shape_cast %257 : vector<1x256xf32> to vector<1x1x1x256xf32>
      tpu.vector_store %arg4[%c0_42, %c0_43, %c1, %c0_44], %260 {strides = array<i32>} : memref<1x1x4x256xf32, #tpu.memory_space<vmem>>, vector<1x1x1x256xf32>,
      %cst_45 = arith.constant 0.000000e+00 : f32
      %261 = vector.broadcast %cst_45 : f32 to vector<1x256xf32>
      %cst_46 = arith.constant 0.000000e+00 : f32
      %262 = vector.broadcast %cst_46 : f32 to vector<1x256xf32>
      %cst_47 = arith.constant 0.000000e+00 : f32
      %263 = vector.broadcast %cst_47 : f32 to vector<1x256xf32>
      %c108 = arith.constant 108 : index
      %264 = memref.load %arg3[%c108] : memref<144xf32, #tpu.memory_space<smem>>
      %265 = vector.broadcast %264 : f32 to vector<1x256xf32>
      %266 = arith.mulf %265, %39 : vector<1x256xf32>
      %267 = arith.addf %261, %266 : vector<1x256xf32>
      %c109 = arith.constant 109 : index
      %268 = memref.load %arg3[%c109] : memref<144xf32, #tpu.memory_space<smem>>
      %269 = vector.broadcast %268 : f32 to vector<1x256xf32>
      %270 = arith.mulf %269, %44 : vector<1x256xf32>
      %271 = arith.addf %267, %270 : vector<1x256xf32>
      %c110 = arith.constant 110 : index
      %272 = memref.load %arg3[%c110] : memref<144xf32, #tpu.memory_space<smem>>
      %273 = vector.broadcast %272 : f32 to vector<1x256xf32>
      %274 = arith.mulf %273, %53 : vector<1x256xf32>
      %275 = arith.addf %271, %274 : vector<1x256xf32>
      %c111 = arith.constant 111 : index
      %276 = memref.load %arg3[%c111] : memref<144xf32, #tpu.memory_space<smem>>
      %277 = vector.broadcast %276 : f32 to vector<1x256xf32>
      %278 = arith.mulf %277, %62 : vector<1x256xf32>
      %279 = arith.addf %262, %278 : vector<1x256xf32>
      %c112 = arith.constant 112 : index
      %280 = memref.load %arg3[%c112] : memref<144xf32, #tpu.memory_space<smem>>
      %281 = vector.broadcast %280 : f32 to vector<1x256xf32>
      %282 = arith.mulf %281, %67 : vector<1x256xf32>
      %283 = arith.addf %279, %282 : vector<1x256xf32>
      %c113 = arith.constant 113 : index
      %284 = memref.load %arg3[%c113] : memref<144xf32, #tpu.memory_space<smem>>
      %285 = vector.broadcast %284 : f32 to vector<1x256xf32>
      %286 = arith.mulf %285, %76 : vector<1x256xf32>
      %287 = arith.addf %283, %286 : vector<1x256xf32>
      %c114 = arith.constant 114 : index
      %288 = memref.load %arg3[%c114] : memref<144xf32, #tpu.memory_space<smem>>
      %289 = vector.broadcast %288 : f32 to vector<1x256xf32>
      %290 = arith.mulf %289, %85 : vector<1x256xf32>
      %291 = arith.addf %263, %290 : vector<1x256xf32>
      %c115 = arith.constant 115 : index
      %292 = memref.load %arg3[%c115] : memref<144xf32, #tpu.memory_space<smem>>
      %293 = vector.broadcast %292 : f32 to vector<1x256xf32>
      %294 = arith.mulf %293, %90 : vector<1x256xf32>
      %295 = arith.addf %291, %294 : vector<1x256xf32>
      %c116 = arith.constant 116 : index
      %296 = memref.load %arg3[%c116] : memref<144xf32, #tpu.memory_space<smem>>
      %297 = vector.broadcast %296 : f32 to vector<1x256xf32>
      %298 = arith.mulf %297, %99 : vector<1x256xf32>
      %299 = arith.addf %295, %298 : vector<1x256xf32>
      %c117 = arith.constant 117 : index
      %300 = memref.load %arg3[%c117] : memref<144xf32, #tpu.memory_space<smem>>
      %301 = vector.broadcast %300 : f32 to vector<1x256xf32>
      %302 = arith.mulf %301, %40 : vector<1x256xf32>
      %303 = arith.addf %275, %302 : vector<1x256xf32>
      %c118 = arith.constant 118 : index
      %304 = memref.load %arg3[%c118] : memref<144xf32, #tpu.memory_space<smem>>
      %305 = vector.broadcast %304 : f32 to vector<1x256xf32>
      %306 = arith.mulf %305, %45 : vector<1x256xf32>
      %307 = arith.addf %303, %306 : vector<1x256xf32>
      %c119 = arith.constant 119 : index
      %308 = memref.load %arg3[%c119] : memref<144xf32, #tpu.memory_space<smem>>
      %309 = vector.broadcast %308 : f32 to vector<1x256xf32>
      %310 = arith.mulf %309, %54 : vector<1x256xf32>
      %311 = arith.addf %307, %310 : vector<1x256xf32>
      %c120 = arith.constant 120 : index
      %312 = memref.load %arg3[%c120] : memref<144xf32, #tpu.memory_space<smem>>
      %313 = vector.broadcast %312 : f32 to vector<1x256xf32>
      %314 = arith.mulf %313, %63 : vector<1x256xf32>
      %315 = arith.addf %287, %314 : vector<1x256xf32>
      %c121 = arith.constant 121 : index
      %316 = memref.load %arg3[%c121] : memref<144xf32, #tpu.memory_space<smem>>
      %317 = vector.broadcast %316 : f32 to vector<1x256xf32>
      %318 = arith.mulf %317, %68 : vector<1x256xf32>
      %319 = arith.addf %315, %318 : vector<1x256xf32>
      %c122 = arith.constant 122 : index
      %320 = memref.load %arg3[%c122] : memref<144xf32, #tpu.memory_space<smem>>
      %321 = vector.broadcast %320 : f32 to vector<1x256xf32>
      %322 = arith.mulf %321, %77 : vector<1x256xf32>
      %323 = arith.addf %319, %322 : vector<1x256xf32>
      %c123 = arith.constant 123 : index
      %324 = memref.load %arg3[%c123] : memref<144xf32, #tpu.memory_space<smem>>
      %325 = vector.broadcast %324 : f32 to vector<1x256xf32>
      %326 = arith.mulf %325, %86 : vector<1x256xf32>
      %327 = arith.addf %299, %326 : vector<1x256xf32>
      %c124 = arith.constant 124 : index
      %328 = memref.load %arg3[%c124] : memref<144xf32, #tpu.memory_space<smem>>
      %329 = vector.broadcast %328 : f32 to vector<1x256xf32>
      %330 = arith.mulf %329, %91 : vector<1x256xf32>
      %331 = arith.addf %327, %330 : vector<1x256xf32>
      %c125 = arith.constant 125 : index
      %332 = memref.load %arg3[%c125] : memref<144xf32, #tpu.memory_space<smem>>
      %333 = vector.broadcast %332 : f32 to vector<1x256xf32>
      %334 = arith.mulf %333, %100 : vector<1x256xf32>
      %335 = arith.addf %331, %334 : vector<1x256xf32>
      %336 = arith.addf %311, %323 : vector<1x256xf32>
      %337 = arith.addf %336, %335 : vector<1x256xf32>
      %c0_48 = arith.constant 0 : index
      %c0_49 = arith.constant 0 : index
      %c2 = arith.constant 2 : index
      %c0_50 = arith.constant 0 : index
      %338 = vector.load %arg4[%c0_48, %c0_49, %c2, %c0_50] : memref<1x1x4x256xf32, #tpu.memory_space<vmem>>, vector<1x1x1x256xf32>
      %339 = vector.shape_cast %338 : vector<1x1x1x256xf32> to vector<1x256xf32>
      %340 = vector.shape_cast %337 : vector<1x256xf32> to vector<1x1x1x256xf32>
      tpu.vector_store %arg4[%c0_48, %c0_49, %c2, %c0_50], %340 {strides = array<i32>} : memref<1x1x4x256xf32, #tpu.memory_space<vmem>>, vector<1x1x1x256xf32>,
      %cst_51 = arith.constant 0.000000e+00 : f32
      %341 = vector.broadcast %cst_51 : f32 to vector<1x256xf32>
      %cst_52 = arith.constant 0.000000e+00 : f32
      %342 = vector.broadcast %cst_52 : f32 to vector<1x256xf32>
      %cst_53 = arith.constant 0.000000e+00 : f32
      %343 = vector.broadcast %cst_53 : f32 to vector<1x256xf32>
      %c126_54 = arith.constant 126 : index
      %344 = memref.load %arg3[%c126_54] : memref<144xf32, #tpu.memory_space<smem>>
      %345 = vector.broadcast %344 : f32 to vector<1x256xf32>
      %346 = arith.mulf %345, %39 : vector<1x256xf32>
      %347 = arith.addf %341, %346 : vector<1x256xf32>
      %c127 = arith.constant 127 : index
      %348 = memref.load %arg3[%c127] : memref<144xf32, #tpu.memory_space<smem>>
      %349 = vector.broadcast %348 : f32 to vector<1x256xf32>
      %350 = arith.mulf %349, %44 : vector<1x256xf32>
      %351 = arith.addf %347, %350 : vector<1x256xf32>
      %c128_55 = arith.constant 128 : index
      %352 = memref.load %arg3[%c128_55] : memref<144xf32, #tpu.memory_space<smem>>
      %353 = vector.broadcast %352 : f32 to vector<1x256xf32>
      %354 = arith.mulf %353, %53 : vector<1x256xf32>
      %355 = arith.addf %351, %354 : vector<1x256xf32>
      %c129 = arith.constant 129 : index
      %356 = memref.load %arg3[%c129] : memref<144xf32, #tpu.memory_space<smem>>
      %357 = vector.broadcast %356 : f32 to vector<1x256xf32>
      %358 = arith.mulf %357, %62 : vector<1x256xf32>
      %359 = arith.addf %342, %358 : vector<1x256xf32>
      %c130_56 = arith.constant 130 : index
      %360 = memref.load %arg3[%c130_56] : memref<144xf32, #tpu.memory_space<smem>>
      %361 = vector.broadcast %360 : f32 to vector<1x256xf32>
      %362 = arith.mulf %361, %67 : vector<1x256xf32>
      %363 = arith.addf %359, %362 : vector<1x256xf32>
      %c131 = arith.constant 131 : index
      %364 = memref.load %arg3[%c131] : memref<144xf32, #tpu.memory_space<smem>>
      %365 = vector.broadcast %364 : f32 to vector<1x256xf32>
      %366 = arith.mulf %365, %76 : vector<1x256xf32>
      %367 = arith.addf %363, %366 : vector<1x256xf32>
      %c132 = arith.constant 132 : index
      %368 = memref.load %arg3[%c132] : memref<144xf32, #tpu.memory_space<smem>>
      %369 = vector.broadcast %368 : f32 to vector<1x256xf32>
      %370 = arith.mulf %369, %85 : vector<1x256xf32>
      %371 = arith.addf %343, %370 : vector<1x256xf32>
      %c133 = arith.constant 133 : index
      %372 = memref.load %arg3[%c133] : memref<144xf32, #tpu.memory_space<smem>>
      %373 = vector.broadcast %372 : f32 to vector<1x256xf32>
      %374 = arith.mulf %373, %90 : vector<1x256xf32>
      %375 = arith.addf %371, %374 : vector<1x256xf32>
      %c134 = arith.constant 134 : index
      %376 = memref.load %arg3[%c134] : memref<144xf32, #tpu.memory_space<smem>>
      %377 = vector.broadcast %376 : f32 to vector<1x256xf32>
      %378 = arith.mulf %377, %99 : vector<1x256xf32>
      %379 = arith.addf %375, %378 : vector<1x256xf32>
      %c135 = arith.constant 135 : index
      %380 = memref.load %arg3[%c135] : memref<144xf32, #tpu.memory_space<smem>>
      %381 = vector.broadcast %380 : f32 to vector<1x256xf32>
      %382 = arith.mulf %381, %40 : vector<1x256xf32>
      %383 = arith.addf %355, %382 : vector<1x256xf32>
      %c136 = arith.constant 136 : index
      %384 = memref.load %arg3[%c136] : memref<144xf32, #tpu.memory_space<smem>>
      %385 = vector.broadcast %384 : f32 to vector<1x256xf32>
      %386 = arith.mulf %385, %45 : vector<1x256xf32>
      %387 = arith.addf %383, %386 : vector<1x256xf32>
      %c137 = arith.constant 137 : index
      %388 = memref.load %arg3[%c137] : memref<144xf32, #tpu.memory_space<smem>>
      %389 = vector.broadcast %388 : f32 to vector<1x256xf32>
      %390 = arith.mulf %389, %54 : vector<1x256xf32>
      %391 = arith.addf %387, %390 : vector<1x256xf32>
      %c138 = arith.constant 138 : index
      %392 = memref.load %arg3[%c138] : memref<144xf32, #tpu.memory_space<smem>>
      %393 = vector.broadcast %392 : f32 to vector<1x256xf32>
      %394 = arith.mulf %393, %63 : vector<1x256xf32>
      %395 = arith.addf %367, %394 : vector<1x256xf32>
      %c139 = arith.constant 139 : index
      %396 = memref.load %arg3[%c139] : memref<144xf32, #tpu.memory_space<smem>>
      %397 = vector.broadcast %396 : f32 to vector<1x256xf32>
      %398 = arith.mulf %397, %68 : vector<1x256xf32>
      %399 = arith.addf %395, %398 : vector<1x256xf32>
      %c140 = arith.constant 140 : index
      %400 = memref.load %arg3[%c140] : memref<144xf32, #tpu.memory_space<smem>>
      %401 = vector.broadcast %400 : f32 to vector<1x256xf32>
      %402 = arith.mulf %401, %77 : vector<1x256xf32>
      %403 = arith.addf %399, %402 : vector<1x256xf32>
      %c141 = arith.constant 141 : index
      %404 = memref.load %arg3[%c141] : memref<144xf32, #tpu.memory_space<smem>>
      %405 = vector.broadcast %404 : f32 to vector<1x256xf32>
      %406 = arith.mulf %405, %86 : vector<1x256xf32>
      %407 = arith.addf %379, %406 : vector<1x256xf32>
      %c142 = arith.constant 142 : index
      %408 = memref.load %arg3[%c142] : memref<144xf32, #tpu.memory_space<smem>>
      %409 = vector.broadcast %408 : f32 to vector<1x256xf32>
      %410 = arith.mulf %409, %91 : vector<1x256xf32>
      %411 = arith.addf %407, %410 : vector<1x256xf32>
      %c143 = arith.constant 143 : index
      %412 = memref.load %arg3[%c143] : memref<144xf32, #tpu.memory_space<smem>>
      %413 = vector.broadcast %412 : f32 to vector<1x256xf32>
      %414 = arith.mulf %413, %100 : vector<1x256xf32>
      %415 = arith.addf %411, %414 : vector<1x256xf32>
      %416 = arith.addf %391, %403 : vector<1x256xf32>
      %417 = arith.addf %416, %415 : vector<1x256xf32>
      %c0_57 = arith.constant 0 : index
      %c0_58 = arith.constant 0 : index
      %c3 = arith.constant 3 : index
      %c0_59 = arith.constant 0 : index
      %418 = vector.load %arg4[%c0_57, %c0_58, %c3, %c0_59] : memref<1x1x4x256xf32, #tpu.memory_space<vmem>>, vector<1x1x1x256xf32>
      %419 = vector.shape_cast %418 : vector<1x1x1x256xf32> to vector<1x256xf32>
      %420 = vector.shape_cast %417 : vector<1x256xf32> to vector<1x1x1x256xf32>
      tpu.vector_store %arg4[%c0_57, %c0_58, %c3, %c0_59], %420 {strides = array<i32>} : memref<1x1x4x256xf32, #tpu.memory_space<vmem>>, vector<1x1x1x256xf32>,
    } else {
    }
    return
  }
  func.func @transform_0(%arg0: i32, %arg1: i32) -> (i32, i32, i32, i32) {
    %c0_i32 = arith.constant 0 : i32
    %c0_i32_0 = arith.constant 0 : i32
    %c0_i32_1 = arith.constant 0 : i32
    return %arg0, %arg1, %c0_i32, %c0_i32_0 : i32, i32, i32, i32
  }
  func.func @transform_1(%arg0: i32, %arg1: i32) -> i32 {
    %c0_i32 = arith.constant 0 : i32
    %c0_i32_0 = arith.constant 0 : i32
    return %c0_i32 : i32
  }
  func.func @transform_2(%arg0: i32, %arg1: i32) -> (i32, i32, i32, i32) {
    %c0_i32 = arith.constant 0 : i32
    %c0_i32_0 = arith.constant 0 : i32
    %c0_i32_1 = arith.constant 0 : i32
    return %arg0, %arg1, %c0_i32, %c0_i32_0 : i32, i32, i32, i32
  }
}

</mosaic_0001>

<llo_original>
// kernel: tpu_custom_call.1
$region0: #{tpu_custom_call.1}
  #allocation0 [shape = 'u32[]', space=smem, size = 0x4, offset = 0x4, fixed_abs, tag = 'smem constant byte address 0x4 - core index']
  #allocation1 [shape = 'u32[72,128]{1,0:T(1,128)}', space=vmem, size = 0x9000, scoped, tag = 'internal scratch']
  #allocation2 [shape = 'f32[4,512]{1,0:T(4,128)}', space=vmem, size = 0x2000, scoped, tag = 'scratch operand']
  %s0 = inlined_call_operand.hbm [shape: f32[2,2,4,256], index: 0, kind: input, shape index: {}]
  %s1 = inlined_call_operand.hbm [shape: f32[144], index: 1, kind: input, shape index: {}]
  %s2 = inlined_call_operand.hbm [shape: f32[2,2,4,256], index: 2, kind: output, shape index: {}]
  %s3 = sld [smem:[#allocation0]]
  $region57: #{tpu_custom_call.1} parent=0
    _
  %s5 = ssub.s32 1, %s3
  %s6 = scalar_select 0, %s5, %s3
  $region1: #{tpu_custom_call.1} parent=0
    #allocation3 [shape = 'u8[8192]{0}', space=vmem, size = 0x2000, scoped, tag = 'input window, operand 0']
    #allocation4 [shape = 's32[2]{0}', space=sflag, size = 0x8, scoped, tag = 'scoped memory for tpu_custom_call.1']
    #allocation5 [shape = 's32[2]{0}', space=sflag, size = 0x8, scoped, tag = 'scoped memory for tpu_custom_call.1']
    #allocation6 [shape = 's32[2]{0}', space=sflag, size = 0x8, scoped, tag = 'scoped memory for tpu_custom_call.1']
    #allocation7 [shape = 'u8[1024]{0}', space=smem, size = 0x400, scoped, tag = 'input window, operand 1, single buffered']
    #allocation8 [shape = 'u8[8192]{0}', space=vmem, size = 0x2000, scoped, tag = 'output window, operand 0']
    %7 = vsyncpa [#allocation4], 0
    %s8 = scalar_lea.sflag [#allocation4], 1
    %9 = vsyncpa %s8, 0
    %10 = vsyncpa [#allocation6], 0
    %11 = vsyncpa [#allocation5], 0
    %s12 = scalar_lea.sflag [#allocation5], 1
    %13 = vsyncpa %s12, 0
    loop: start=0, step=1, limit=6
    $region2: #{tpu_custom_call.1} parent=1 // loop_pre_header
      _
    $region3: #{tpu_custom_call.1} parent=1 // loop_header
      %s15 = sphi 0, %s19
      %p16 = scmp.ge.s32.totalorder %s15, 6
      %s22 = sphi 0, %s34
      %s23 = sphi 0, %s30
      %s24 = sphi 0, %s22
      %s25 = sphi 0, %s23
      %s26 = sphi 0, %s24
      %s27 = sphi 0, %s25
      %s39 = sphi 0, %s41
      %s42 = sphi 0, %s39
      %s43 = sphi 0, %s42
      %s59 = sphi 0, %s43
      %s63 = sphi 0, %s63
      %s65 = sphi 0, %s63
      %s66 = sphi 0, %s65
      %s80 = sphi 0, %s66
      %s88 = sphi 0, %s90
      %s91 = sphi 0, %s88
      %s92 = sphi 0, %s91
      %s108 = sphi 0, %s92
    $region4: #{tpu_custom_call.1} parent=1 // loop_header_branch
      %18 = sbr.rel (%p16) target = $region8
    $region5: #{tpu_custom_call.1} parent=1 // loop_body
      %s20 = ssub.s32 %s15, 1
      %s21 = ssub.s32 %s15, 2
      %s28 = sadd.s32 1, %s23
      %p29 = scmp.ge.s32.totalorder %s28, 2
      %s30 = scalar_select %p29, 0, %s28
      %s31 = sadd.s32 1, %s22
      %s32 = scalar_select %p29, %s31, %s22
      %p33 = scmp.ge.s32.totalorder %s32, 2
      %s34 = scalar_select %p33, 0, %s32
      %s35 = ssub.s32 %s22, %s34
      %s36 = ssub.s32 %s23, %s30
      %s37 = sor.u32 %s35, %s36
      %p38 = scmp.eq.s32.totalorder %s37, 0
      %s40 = sadd.s32 %s39, 1
      %s41 = scalar_select %p38, %s39, %s40
      %p44 = pneg %p38
      %p45 = scmp.eq.s32.totalorder %s15, 3
      %p46 = por %p44, %p45
      %p47 = scmp.ne.s32.totalorder %s39, %s42
      %p48 = scmp.eq.s32.totalorder %s15, 0
      %p49 = por %p47, %p48
      %p50 = scmp.ne.s32.totalorder %s39, %s42
      %p51 = scmp.eq.s32.totalorder %s20, 3
      %p52 = por %p50, %p51
      %p53 = scmp.ne.s32.totalorder %s42, %s43
      %p54 = scmp.eq.s32.totalorder %s20, 0
      %p55 = por %p53, %p54
      %p56 = scmp.ne.s32.totalorder %s42, %s43
      %p57 = scmp.eq.s32.totalorder %s21, 3
      %p58 = por %p56, %p57
      %p60 = scmp.ne.s32.totalorder %s43, %s59
      %p61 = scmp.eq.s32.totalorder %s21, 0
      %p62 = por %p60, %p61
      %s64 = sadd.s32 %s63, 1
      %p67 = scmp.eq.s32.totalorder %s15, 3
      %p68 = scmp.ne.s32.totalorder %s63, %s65
      %p69 = scmp.eq.s32.totalorder %s15, 0
      %p70 = por %p68, %p69
      %p71 = scmp.ne.s32.totalorder %s63, %s65
      %p72 = scmp.eq.s32.totalorder %s20, 3
      %p73 = por %p71, %p72
      %p74 = scmp.ne.s32.totalorder %s65, %s66
      %p75 = scmp.eq.s32.totalorder %s20, 0
      %p76 = por %p74, %p75
      %p77 = scmp.ne.s32.totalorder %s65, %s66
      %p78 = scmp.eq.s32.totalorder %s21, 3
      %p79 = por %p77, %p78
      %p81 = scmp.ne.s32.totalorder %s66, %s80
      %p82 = scmp.eq.s32.totalorder %s21, 0
      %p83 = por %p81, %p82
      %s84 = ssub.s32 %s22, %s34
      %s85 = ssub.s32 %s23, %s30
      %s86 = sor.u32 %s84, %s85
      %p87 = scmp.eq.s32.totalorder %s86, 0
      %s89 = sadd.s32 %s88, 1
      %s90 = scalar_select %p87, %s88, %s89
      %p93 = pneg %p87
      %p94 = scmp.eq.s32.totalorder %s15, 3
      %p95 = por %p93, %p94
      %p96 = scmp.ne.s32.totalorder %s88, %s91
      %p97 = scmp.eq.s32.totalorder %s15, 0
      %p98 = por %p96, %p97
      %p99 = scmp.ne.s32.totalorder %s88, %s91
      %p100 = scmp.eq.s32.totalorder %s20, 3
      %p101 = por %p99, %p100
      %p102 = scmp.ne.s32.totalorder %s91, %s92
      %p103 = scmp.eq.s32.totalorder %s20, 0
      %p104 = por %p102, %p103
      %p105 = scmp.ne.s32.totalorder %s91, %s92
      %p106 = scmp.eq.s32.totalorder %s21, 3
      %p107 = por %p105, %p106
      %p109 = scmp.ne.s32.totalorder %s92, %s108
      %p110 = scmp.eq.s32.totalorder %s21, 0
      %p111 = por %p109, %p110
      %p112 = scmp.le.s32.totalorder 1, %s15
      %p113 = scmp.lt.s32.totalorder %s15, 5
      %p114 = pnand %p112, %p113
      %p115 = pneg %p114
      // Predicated region
      $region9: #{tpu_custom_call.1} parent=5 // pred_check
        _
      $region10: #{tpu_custom_call.1} parent=5 // pred_check_branch
        %117 = sbr.rel (%p114) target = $region12
      $region11: #{tpu_custom_call.1} parent=5 // pred_region
        %s118 = ssub.s32 %s15, 1
        // Predicated region
        $region13: #{tpu_custom_call.1} parent=11 // pred_check
          %p119 = pneg %p76
        $region14: #{tpu_custom_call.1} parent=11 // pred_check_branch
          %121 = sbr.rel (%p119) target = $region16
        $region15: #{tpu_custom_call.1} parent=11 // pred_region
          %123 = vsyncadd [#allocation6], 0
          %s125 = sshll.u32 %s1, 4
          %s126 = int_to_ptr.hbm [resolvable:$true] %s125
          %128 = dma.hbm_to_smem %s126, 32, [#allocation7], [#allocation6]
        $region16: #{tpu_custom_call.1} parent=11 // pred_fallthru
          _
      $region12: #{tpu_custom_call.1} parent=5 // pred_fallthru
        _
      %p129 = scmp.lt.s32.totalorder %s15, 4
      // Predicated region
      $region17: #{tpu_custom_call.1} parent=5 // pred_check
        %p130 = pneg %p129
      $region18: #{tpu_custom_call.1} parent=5 // pred_check_branch
        %132 = sbr.rel (%p130) target = $region20
      $region19: #{tpu_custom_call.1} parent=5 // pred_region
        // Predicated region
        $region21: #{tpu_custom_call.1} parent=19 // pred_check
          %p133 = pneg %p49
        $region22: #{tpu_custom_call.1} parent=19 // pred_check_branch
          %135 = sbr.rel (%p133) target = $region24
        $region23: #{tpu_custom_call.1} parent=19 // pred_region
          %s136 = sand.u32 %s39, 1
          %s137 = scalar_lea.sflag [#allocation4], %s136
          %s138 = sand.u32 %s39, 1
          %s139 = smul.addr %s138, 8
          %s140 = scalar_lea.vmem [#allocation3], %s139
          %142 = vsyncadd %s137, 0
          %s143 = smul.addr %s23, 2
          %s144 = smul.addr %s22, 4
          %s145 = sadd.s32 %s143, %s144
          %s146 = smul.addr %s145, 4
          %s147 = scalar_lea.hbm %s0, %s146
          %s149 = sshll.u32 %s147, 4
          %s150 = int_to_ptr.hbm [resolvable:$true] %s149
          %s151 = sshll.u32 %s140, 4
          %s152 = int_to_ptr.vmem [resolvable:$true] %s151
          %154 = dma.hbm_to_vmem [thread:$0]  %s150, 128, %s152, %s137
        $region24: #{tpu_custom_call.1} parent=19 // pred_fallthru
          _
      $region20: #{tpu_custom_call.1} parent=5 // pred_fallthru
        _
      %p155 = scmp.le.s32.totalorder 1, %s15
      %p156 = scmp.lt.s32.totalorder %s15, 5
      %p157 = pnand %p155, %p156
      %p158 = pneg %p157
      // Predicated region
      $region25: #{tpu_custom_call.1} parent=5 // pred_check
        _
      $region26: #{tpu_custom_call.1} parent=5 // pred_check_branch
        %160 = sbr.rel (%p157) target = $region28
      $region27: #{tpu_custom_call.1} parent=5 // pred_region
        %s161 = ssub.s32 %s15, 1
        %s162 = sand.u32 %s42, 1
        %s163 = scalar_lea.sflag [#allocation4], %s162
        %s164 = sand.u32 %s42, 1
        %s165 = smul.addr %s164, 8
        %s166 = scalar_lea.vmem [#allocation3], %s165
        // Predicated region
        $region29: #{tpu_custom_call.1} parent=27 // pred_check
          %p167 = pneg %p55
        $region30: #{tpu_custom_call.1} parent=27 // pred_check_branch
          %169 = sbr.rel (%p167) target = $region32
        $region31: #{tpu_custom_call.1} parent=27 // pred_region
          %171 = dma.done %s163, 128
        $region32: #{tpu_custom_call.1} parent=27 // pred_fallthru
          _
        // Predicated region
        $region33: #{tpu_custom_call.1} parent=27 // pred_check
          %p172 = pneg %p76
        $region34: #{tpu_custom_call.1} parent=27 // pred_check_branch
          %174 = sbr.rel (%p172) target = $region36
        $region35: #{tpu_custom_call.1} parent=27 // pred_region
          %176 = dma.done [#allocation6], 32
        $region36: #{tpu_custom_call.1} parent=27 // pred_fallthru
          _
        %177 = sfence
        %s178 = sand.u32 %s42, 1
        %s179 = scalar_lea.sflag [#allocation4], %s178
        %s180 = sand.u32 %s42, 1
        %s181 = smul.addr %s180, 8
        %s182 = scalar_lea.vmem [#allocation3], %s181
        %p183 = pneg %p55
        %p184 = pneg %p52
        %p185 = pneg %p76
        %p186 = pneg %p73
        %p187 = pneg %p104
        %p188 = pneg %p101
        %s189 = sand.u32 %s91, 1
        %s190 = scalar_lea.sflag [#allocation5], %s189
        %s191 = sand.u32 %s91, 1
        %s192 = smul.addr %s191, 8
        %s193 = scalar_lea.vmem [#allocation8], %s192
        %194 = vst [vmem:[#allocation2] sm:$0xff] 0.0
        %195 = vst [vmem:[#allocation2 + $0x8] sm:$0xff] 0.0
        %v196 = vld [vmem:[%s166] sm:$0xff]
        %197 = vst [vmem:[#allocation2 + $0x4] sm:$0xff] %v196
        %v198 = vlaneseq
        %v199 = vand.u32 %v198, 127
        %v200 = vadd.s32 %v199, 128
        %vm201 = vcmp.lt.s32.totalorder %v199, 0
        %v202 = vsub.s32 0, %v199
        %v203 = vsel %vm201, %v202, %v199
        %v204 = vshrl.u32 %v203, 4
        %v205 = vand.u32 %v203, 15
        %v206 = vsub.s32 0, %v205
        %v207 = vsel %vm201, %v206, %v205
        %vm208 = vcmp.lt.s32.totalorder %v200, 0
        %v209 = vsub.s32 0, %v200
        %v210 = vsel %vm208, %v209, %v200
        %v211 = vshrl.u32 %v210, 4
        %v212 = vand.u32 %v210, 15
        %v213 = vsub.s32 0, %v212
        %v214 = vsel %vm208, %v213, %v212
        %vm215 = vcmp.ne.s32.totalorder %v207, 0
        %vm216 = vcmp.ne.s32.totalorder %v214, 0
        %vm217 = vcmp.lt.s32.totalorder %v207, 0
        %vm218 = vcmp.lt.s32.totalorder %v214, 0
        %vm219 = vmand %vm217, %vm215
        %vm220 = vmand %vm218, %vm216
        %v221 = vadd.s32 %v207, 16
        %v222 = vadd.s32 %v214, 16
        %v223 = vsel %vm219, %v221, %v207
        %v224 = vsel %vm220, %v222, %v214
        %p225 = scmp.eq.s32.totalorder %s25, 0
        // Predicated region
        $region37: #{tpu_custom_call.1} parent=27 // pred_check
          %p226 = pneg %p225
        $region38: #{tpu_custom_call.1} parent=27 // pred_check_branch
          %228 = sbr.rel (%p226) target = $region40
        $region39: #{tpu_custom_call.1} parent=27 // pred_region
          %vm229 = vcmp.ge.s32.totalorder %v223, 1
          %vm230 = vcmp.ge.s32.totalorder %v224, 1
          %vm231 = vcmp.lt.s32.totalorder %v223, 15
          %vm232 = vcmp.lt.s32.totalorder %v224, 15
          %v233 = vld [vmem:[#allocation2] sm:$0xff]
          %v234 = vld [vmem:[#allocation2 + $0x8] sm:$0xf]
          %v235 = vsel %vm229, 1, 0
          %v236 = vsel %vm230, 1, 0
          %vm237 = vcmp.eq.s32.totalorder %v235, 1
          %vm238 = vcmp.eq.s32.totalorder %v236, 1
          %241 = vst [vmem:[#allocation1] ss:$2 sm:$0xff] %v233
          %s242 = scalar_lea.vmem [#allocation1], 16
          %243 = vst [vmem:[%s242] ss:$2 sm:$0xff] %v234
          %v244 = vld.sshfl [vmem:[#allocation1] sm:$0xff pattern:$0x75316420]
          %v245 = vld.sshfl [vmem:[#allocation1 + $0x8] sm:$0xff pattern:$0x75316420]
          %v246 = vld.sshfl [vmem:[#allocation1 + $0x10] sm:$0xff pattern:$0x75316420]
          %247 = vrot.lane.b32.xlu0 %v244, 17
          %v248 = vpop.permute.xlu0 %247
          %249 = vrot.lane.b32.xlu0 %v245, 17
          %v250 = vpop.permute.xlu0 %249
          %251 = vrot.lane.b32.xlu0 %v246, 17
          %v252 = vpop.permute.xlu0 %251
          %vm253 = vcmask 138240
          %v254 = vsel %vm253, %v248, %v250
          %v255 = vsel %vm253, %v250, %v252
          %v258 = vsel %vm237, %v254, 0.0
          %v259 = vsel %vm238, %v255, 0.0
          %v260 = vld [vmem:[#allocation2] sm:$0xff]
          %v261 = vld [vmem:[#allocation2 + $0x8] sm:$0xf]
          %v262 = vsel %vm231, 1, 0
          %v263 = vsel %vm232, 1, 0
          %vm264 = vcmp.eq.s32.totalorder %v262, 1
          %vm265 = vcmp.eq.s32.totalorder %v263, 1
          %268 = vst [vmem:[#allocation1] ss:$2 sm:$0xff] %v260
          %s269 = scalar_lea.vmem [#allocation1], 16
          %270 = vst [vmem:[%s269] ss:$2 sm:$0xff] %v261
          %v271 = vld.sshfl [vmem:[#allocation1] sm:$0xff pattern:$0x75316420]
          %v272 = vld.sshfl [vmem:[#allocation1 + $0x8] sm:$0xff pattern:$0x75316420]
          %v273 = vld.sshfl [vmem:[#allocation1 + $0x10] sm:$0xff pattern:$0x75316420]
          %274 = vrot.lane.b32.xlu0 %v271, 15
          %v275 = vpop.permute.xlu0 %274
          %276 = vrot.lane.b32.xlu0 %v272, 15
          %v277 = vpop.permute.xlu0 %276
          %278 = vrot.lane.b32.xlu0 %v273, 15
          %v279 = vpop.permute.xlu0 %278
          %vm280 = vcmask 121856
          %v281 = vsel %vm280, %v275, %v277
          %v282 = vsel %vm280, %v277, %v279
          %v285 = vsel %vm264, %v281, 0.0
          %v286 = vsel %vm265, %v282, 0.0
          %v287 = vld [vmem:[#allocation2] sm:$0xff]
          %v288 = vld [vmem:[#allocation2 + $0x8] sm:$0xf]
          %291 = vst [vmem:[#allocation1] ss:$2 sm:$0xff] %v287
          %s292 = scalar_lea.vmem [#allocation1], 16
          %293 = vst [vmem:[%s292] ss:$2 sm:$0xff] %v288
          %v294 = vld.sshfl [vmem:[#allocation1] sm:$0xff pattern:$0x75316420]
          %v295 = vld.sshfl [vmem:[#allocation1 + $0x8] sm:$0xff pattern:$0x75316420]
          %v296 = vld.sshfl [vmem:[#allocation1 + $0x10] sm:$0xff pattern:$0x75316420]
          %297 = vrot.lane.b32.xlu0 %v294, 1
          %v298 = vpop.permute.xlu0 %297
          %299 = vrot.lane.b32.xlu0 %v295, 1
          %v300 = vpop.permute.xlu0 %299
          %301 = vrot.lane.b32.xlu0 %v296, 1
          %v302 = vpop.permute.xlu0 %301
          %vm303 = vcmask 7168
          %v304 = vsel %vm303, %v298, %v300
          %v305 = vsel %vm303, %v300, %v302
          %v308 = vsel %vm237, %v304, 0.0
          %v309 = vsel %vm238, %v305, 0.0
          %v310 = vld [vmem:[#allocation2 + $0x4] sm:$0xff]
          %v311 = vld [vmem:[#allocation2 + $0x4] sm:$0xff]
          %v312 = vld [vmem:[#allocation2 + $0xc] sm:$0xf]
          %315 = vst [vmem:[#allocation1] ss:$2 sm:$0xff] %v311
          %s316 = scalar_lea.vmem [#allocation1], 16
          %317 = vst [vmem:[%s316] ss:$2 sm:$0xff] %v312
          %v318 = vld.sshfl [vmem:[#allocation1] sm:$0xff pattern:$0x75316420]
          %v319 = vld.sshfl [vmem:[#allocation1 + $0x8] sm:$0xff pattern:$0x75316420]
          %v320 = vld.sshfl [vmem:[#allocation1 + $0x10] sm:$0xff pattern:$0x75316420]
          %321 = vrot.lane.b32.xlu0 %v318, 127
          %v322 = vpop.permute.xlu0 %321
          %323 = vrot.lane.b32.xlu0 %v319, 127
          %v324 = vpop.permute.xlu0 %323
          %325 = vrot.lane.b32.xlu0 %v320, 127
          %v326 = vpop.permute.xlu0 %325
          %vm327 = vcmask 1039360
          %v328 = vsel %vm327, %v322, %v324
          %v329 = vsel %vm327, %v324, %v326
          %v332 = vsel %vm264, %v328, 0.0
          %v333 = vsel %vm265, %v329, 0.0
          %v334 = vld [vmem:[#allocation2 + $0x4] sm:$0xff]
          %v335 = vld [vmem:[#allocation2 + $0xc] sm:$0xf]
          %338 = vst [vmem:[#allocation1] ss:$2 sm:$0xff] %v334
          %s339 = scalar_lea.vmem [#allocation1], 16
          %340 = vst [vmem:[%s339] ss:$2 sm:$0xff] %v335
          %v341 = vld.sshfl [vmem:[#allocation1] sm:$0xff pattern:$0x75316420]
          %v342 = vld.sshfl [vmem:[#allocation1 + $0x8] sm:$0xff pattern:$0x75316420]
          %v343 = vld.sshfl [vmem:[#allocation1 + $0x10] sm:$0xff pattern:$0x75316420]
          %344 = vrot.lane.b32.xlu0 %v341, 113
          %v345 = vpop.permute.xlu0 %344
          %346 = vrot.lane.b32.xlu0 %v342, 113
          %v347 = vpop.permute.xlu0 %346
          %348 = vrot.lane.b32.xlu0 %v343, 113
          %v349 = vpop.permute.xlu0 %348
          %vm350 = vcmask 924672
          %v351 = vsel %vm350, %v345, %v347
          %v352 = vsel %vm350, %v347, %v349
          %v355 = vsel %vm237, %v351, 0.0
          %v356 = vsel %vm238, %v352, 0.0
          %v357 = vld [vmem:[#allocation2 + $0x4] sm:$0xff]
          %v358 = vld [vmem:[#allocation2 + $0xc] sm:$0xf]
          %361 = vst [vmem:[#allocation1] ss:$2 sm:$0xff] %v357
          %s362 = scalar_lea.vmem [#allocation1], 16
          %363 = vst [vmem:[%s362] ss:$2 sm:$0xff] %v358
          %v364 = vld.sshfl [vmem:[#allocation1] sm:$0xff pattern:$0x75316420]
          %v365 = vld.sshfl [vmem:[#allocation1 + $0x8] sm:$0xff pattern:$0x75316420]
          %v366 = vld.sshfl [vmem:[#allocation1 + $0x10] sm:$0xff pattern:$0x75316420]
          %367 = vrot.lane.b32.xlu0 %v364, 111
          %v368 = vpop.permute.xlu0 %367
          %369 = vrot.lane.b32.xlu0 %v365, 111
          %v370 = vpop.permute.xlu0 %369
          %371 = vrot.lane.b32.xlu0 %v366, 111
          %v372 = vpop.permute.xlu0 %371
          %vm373 = vcmask 908288
          %v374 = vsel %vm373, %v368, %v370
          %v375 = vsel %vm373, %v370, %v372
          %v378 = vsel %vm264, %v374, 0.0
          %v379 = vsel %vm265, %v375, 0.0
          %s380 = sld [smem:[#allocation7]]
          %v381 = vstv %s380
          %v382 = vmul.f32 %v381, %v258
          %v383 = vmul.f32 %v381, %v259
          %v384 = vadd.f32 %v382, 0.0
          %v385 = vadd.f32 %v383, 0.0
          %s386 = sld [smem:[#allocation7 + $0x1]]
          %v387 = vstv %s386
          %v388 = vmul.f32 %v387, %v260
          %v389 = vmul.f32 %v387, %v261
          %v392 = vperm.slane %v388, 0
          %v393 = vperm.slane %v388, 4
          %v394 = vperm.slane %v389, 0
          %395 = vrot.lane.b32.xlu0 %v392, 16
          %v396 = vpop.permute.xlu0 %395
          %397 = vrot.lane.b32.xlu0 %v393, 16
          %v398 = vpop.permute.xlu0 %397
          %399 = vrot.lane.b32.xlu0 %v394, 16
          %v400 = vpop.permute.xlu0 %399
          %vm401 = vcmask 130048
          %v402 = vsel %vm401, %v396, %v398
          %v403 = vsel %vm401, %v398, %v400
          %v406 = vadd.f32 %v384, %v402
          %v407 = vadd.f32 %v385, %v403
          %s408 = sld [smem:[#allocation7 + $0x2]]
          %v409 = vstv %s408
          %v410 = vmul.f32 %v409, %v285
          %v411 = vmul.f32 %v409, %v286
          %v412 = vadd.f32 %v406, %v410
          %v413 = vadd.f32 %v407, %v411
          %s414 = sld [smem:[#allocation7 + $0x3]]
          %v415 = vstv %s414
          %v416 = vmul.f32 %v415, %v308
          %v417 = vmul.f32 %v415, %v309
          %v418 = vadd.f32 %v416, 0.0
          %v419 = vadd.f32 %v417, 0.0
          %s420 = sld [smem:[#allocation7 + $0x4]]
          %v421 = vstv %s420
          %v422 = vmul.f32 %v421, %v310
          %v424 = vperm.slane %v422, 0
          %v425 = vperm.slane %v422, 4
          %v428 = vadd.f32 %v418, %v424
          %v429 = vadd.f32 %v419, %v425
          %s430 = sld [smem:[#allocation7 + $0x5]]
          %v431 = vstv %s430
          %v432 = vmul.f32 %v431, %v332
          %v433 = vmul.f32 %v431, %v333
          %v434 = vadd.f32 %v428, %v432
          %v435 = vadd.f32 %v429, %v433
          %s436 = sld [smem:[#allocation7 + $0x6]]
          %v437 = vstv %s436
          %v438 = vmul.f32 %v437, %v355
          %v439 = vmul.f32 %v437, %v356
          %v440 = vadd.f32 %v438, 0.0
          %v441 = vadd.f32 %v439, 0.0
          %s442 = sld [smem:[#allocation7 + $0x7]]
          %v443 = vstv %s442
          %v444 = vmul.f32 %v443, %v357
          %v445 = vmul.f32 %v443, %v358
          %v448 = vperm.slane %v444, 0
          %v449 = vperm.slane %v444, 4
          %v450 = vperm.slane %v445, 0
          %451 = vrot.lane.b32.xlu0 %v448, 112
          %v452 = vpop.permute.xlu0 %451
          %453 = vrot.lane.b32.xlu0 %v449, 112
          %v454 = vpop.permute.xlu0 %453
          %455 = vrot.lane.b32.xlu0 %v450, 112
          %v456 = vpop.permute.xlu0 %455
          %vm457 = vcmask 916480
          %v458 = vsel %vm457, %v452, %v454
          %v459 = vsel %vm457, %v454, %v456
          %v462 = vadd.f32 %v440, %v458
          %v463 = vadd.f32 %v441, %v459
          %s464 = sld [smem:[#allocation7 + $0x8]]
          %v465 = vstv %s464
          %v466 = vmul.f32 %v465, %v378
          %v467 = vmul.f32 %v465, %v379
          %v468 = vadd.f32 %v462, %v466
          %v469 = vadd.f32 %v463, %v467
          %s470 = sld [smem:[#allocation7 + $0x9]]
          %v471 = vstv %s470
          %v472 = vmul.f32 %v471, %v258
          %v473 = vmul.f32 %v471, %v259
          %v476 = vrot.slane %v472, 1
          %v477 = vrot.slane %v473, 1
          %v480 = vadd.f32 %v412, %v476
          %v481 = vadd.f32 %v413, %v477
          %s482 = sld [smem:[#allocation7 + $0xa]]
          %v483 = vstv %s482
          %v484 = vmul.f32 %v483, %v260
          %v485 = vmul.f32 %v483, %v261
          %v488 = vperm.slane %v484, 1
          %v489 = vperm.slane %v484, 5
          %v490 = vperm.slane %v485, 1
          %491 = vrot.lane.b32.xlu0 %v488, 16
          %v492 = vpop.permute.xlu0 %491
          %493 = vrot.lane.b32.xlu0 %v489, 16
          %v494 = vpop.permute.xlu0 %493
          %495 = vrot.lane.b32.xlu0 %v490, 16
          %v496 = vpop.permute.xlu0 %495
          %v497 = vsel %vm401, %v492, %v494
          %v498 = vsel %vm401, %v494, %v496
          %v501 = vadd.f32 %v480, %v497
          %v502 = vadd.f32 %v481, %v498
          %s503 = sld [smem:[#allocation7 + $0xb]]
          %v504 = vstv %s503
          %v505 = vmul.f32 %v504, %v285
          %v506 = vmul.f32 %v504, %v286
          %v509 = vrot.slane %v505, 1
          %v510 = vrot.slane %v506, 1
          %v513 = vadd.f32 %v501, %v509
          %v514 = vadd.f32 %v502, %v510
          %s515 = sld [smem:[#allocation7 + $0xc]]
          %v516 = vstv %s515
          %v517 = vmul.f32 %v516, %v308
          %v518 = vmul.f32 %v516, %v309
          %v521 = vrot.slane %v517, 1
          %v522 = vrot.slane %v518, 1
          %v525 = vadd.f32 %v434, %v521
          %v526 = vadd.f32 %v435, %v522
          %s527 = sld [smem:[#allocation7 + $0xd]]
          %v528 = vstv %s527
          %v529 = vmul.f32 %v528, %v310
          %v531 = vperm.slane %v529, 1
          %v532 = vperm.slane %v529, 5
          %v535 = vadd.f32 %v525, %v531
          %v536 = vadd.f32 %v526, %v532
          %s537 = sld [smem:[#allocation7 + $0xe]]
          %v538 = vstv %s537
          %v539 = vmul.f32 %v538, %v332
          %v540 = vmul.f32 %v538, %v333
          %v543 = vrot.slane %v539, 1
          %v544 = vrot.slane %v540, 1
          %v547 = vadd.f32 %v535, %v543
          %v548 = vadd.f32 %v536, %v544
          %s549 = sld [smem:[#allocation7 + $0xf]]
          %v550 = vstv %s549
          %v551 = vmul.f32 %v550, %v355
          %v552 = vmul.f32 %v550, %v356
          %v555 = vrot.slane %v551, 1
          %v556 = vrot.slane %v552, 1
          %v559 = vadd.f32 %v468, %v555
          %v560 = vadd.f32 %v469, %v556
          %s561 = sld [smem:[#allocation7 + $0x10]]
          %v562 = vstv %s561
          %v563 = vmul.f32 %v562, %v357
          %v564 = vmul.f32 %v562, %v358
          %v567 = vperm.slane %v563, 1
          %v568 = vperm.slane %v563, 5
          %v569 = vperm.slane %v564, 1
          %570 = vrot.lane.b32.xlu0 %v567, 112
          %v571 = vpop.permute.xlu0 %570
          %572 = vrot.lane.b32.xlu0 %v568, 112
          %v573 = vpop.permute.xlu0 %572
          %574 = vrot.lane.b32.xlu0 %v569, 112
          %v575 = vpop.permute.xlu0 %574
          %v576 = vsel %vm457, %v571, %v573
          %v577 = vsel %vm457, %v573, %v575
          %v580 = vadd.f32 %v559, %v576
          %v581 = vadd.f32 %v560, %v577
          %s582 = sld [smem:[#allocation7 + $0x11]]
          %v583 = vstv %s582
          %v584 = vmul.f32 %v583, %v378
          %v585 = vmul.f32 %v583, %v379
          %v588 = vrot.slane %v584, 1
          %v589 = vrot.slane %v585, 1
          %v592 = vadd.f32 %v580, %v588
          %v593 = vadd.f32 %v581, %v589
          %v594 = vadd.f32 %v513, %v547
          %v595 = vadd.f32 %v514, %v548
          %v596 = vadd.f32 %v594, %v592
          %v597 = vadd.f32 %v595, %v593
          %v600 = vrot.slane %v597, 7
          %vm601 = vcmask 1040384
          %v602 = vsel %vm601, %v596, %v600
          %v604 = vlaneseq
          %vm605 = vcmp.ge.s32.totalorder %v604, 0
          %vm606 = vcmp.lt.s32.totalorder %v604, 256
          %vm607 = vmand %vm605, %vm606
          %608 = vst.msk [vmem:[%s193] ss:$4 sm:$0x3] %vm607, %v602
          %s609 = sld [smem:[#allocation7 + $0x12]]
          %v610 = vstv %s609
          %v611 = vmul.f32 %v610, %v258
          %v612 = vmul.f32 %v610, %v259
          %v613 = vadd.f32 %v611, 0.0
          %v614 = vadd.f32 %v612, 0.0
          %s615 = sld [smem:[#allocation7 + $0x13]]
          %v616 = vstv %s615
          %v617 = vmul.f32 %v616, %v260
          %v618 = vmul.f32 %v616, %v261
          %v621 = vperm.slane %v617, 0
          %v622 = vperm.slane %v617, 4
          %v623 = vperm.slane %v618, 0
          %624 = vrot.lane.b32.xlu0 %v621, 16
          %v625 = vpop.permute.xlu0 %624
          %626 = vrot.lane.b32.xlu0 %v622, 16
          %v627 = vpop.permute.xlu0 %626
          %628 = vrot.lane.b32.xlu0 %v623, 16
          %v629 = vpop.permute.xlu0 %628
          %v630 = vsel %vm401, %v625, %v627
          %v631 = vsel %vm401, %v627, %v629
          %v634 = vadd.f32 %v613, %v630
          %v635 = vadd.f32 %v614, %v631
          %s636 = sld [smem:[#allocation7 + $0x14]]
          %v637 = vstv %s636
          %v638 = vmul.f32 %v637, %v285
          %v639 = vmul.f32 %v637, %v286
          %v640 = vadd.f32 %v634, %v638
          %v641 = vadd.f32 %v635, %v639
          %s642 = sld [smem:[#allocation7 + $0x15]]
          %v643 = vstv %s642
          %v644 = vmul.f32 %v643, %v308
          %v645 = vmul.f32 %v643, %v309
          %v646 = vadd.f32 %v644, 0.0
          %v647 = vadd.f32 %v645, 0.0
          %s648 = sld [smem:[#allocation7 + $0x16]]
          %v649 = vstv %s648
          %v650 = vmul.f32 %v649, %v310
          %v652 = vperm.slane %v650, 0
          %v653 = vperm.slane %v650, 4
          %v656 = vadd.f32 %v646, %v652
          %v657 = vadd.f32 %v647, %v653
          %s658 = sld [smem:[#allocation7 + $0x17]]
          %v659 = vstv %s658
          %v660 = vmul.f32 %v659, %v332
          %v661 = vmul.f32 %v659, %v333
          %v662 = vadd.f32 %v656, %v660
          %v663 = vadd.f32 %v657, %v661
          %s664 = sld [smem:[#allocation7 + $0x18]]
          %v665 = vstv %s664
          %v666 = vmul.f32 %v665, %v355
          %v667 = vmul.f32 %v665, %v356
          %v668 = vadd.f32 %v666, 0.0
          %v669 = vadd.f32 %v667, 0.0
          %s670 = sld [smem:[#allocation7 + $0x19]]
          %v671 = vstv %s670
          %v672 = vmul.f32 %v671, %v357
          %v673 = vmul.f32 %v671, %v358
          %v676 = vperm.slane %v672, 0
          %v677 = vperm.slane %v672, 4
          %v678 = vperm.slane %v673, 0
          %679 = vrot.lane.b32.xlu0 %v676, 112
          %v680 = vpop.permute.xlu0 %679
          %681 = vrot.lane.b32.xlu0 %v677, 112
          %v682 = vpop.permute.xlu0 %681
          %683 = vrot.lane.b32.xlu0 %v678, 112
          %v684 = vpop.permute.xlu0 %683
          %v685 = vsel %vm457, %v680, %v682
          %v686 = vsel %vm457, %v682, %v684
          %v689 = vadd.f32 %v668, %v685
          %v690 = vadd.f32 %v669, %v686
          %s691 = sld [smem:[#allocation7 + $0x1a]]
          %v692 = vstv %s691
          %v693 = vmul.f32 %v692, %v378
          %v694 = vmul.f32 %v692, %v379
          %v695 = vadd.f32 %v689, %v693
          %v696 = vadd.f32 %v690, %v694
          %s697 = sld [smem:[#allocation7 + $0x1b]]
          %v698 = vstv %s697
          %v699 = vmul.f32 %v698, %v258
          %v700 = vmul.f32 %v698, %v259
          %v703 = vrot.slane %v699, 1
          %v704 = vrot.slane %v700, 1
          %v707 = vadd.f32 %v640, %v703
          %v708 = vadd.f32 %v641, %v704
          %s709 = sld [smem:[#allocation7 + $0x1c]]
          %v710 = vstv %s709
          %v711 = vmul.f32 %v710, %v260
          %v712 = vmul.f32 %v710, %v261
          %v715 = vperm.slane %v711, 1
          %v716 = vperm.slane %v711, 5
          %v717 = vperm.slane %v712, 1
          %718 = vrot.lane.b32.xlu0 %v715, 16
          %v719 = vpop.permute.xlu0 %718
          %720 = vrot.lane.b32.xlu0 %v716, 16
          %v721 = vpop.permute.xlu0 %720
          %722 = vrot.lane.b32.xlu0 %v717, 16
          %v723 = vpop.permute.xlu0 %722
          %v724 = vsel %vm401, %v719, %v721
          %v725 = vsel %vm401, %v721, %v723
          %v728 = vadd.f32 %v707, %v724
          %v729 = vadd.f32 %v708, %v725
          %s730 = sld [smem:[#allocation7 + $0x1d]]
          %v731 = vstv %s730
          %v732 = vmul.f32 %v731, %v285
          %v733 = vmul.f32 %v731, %v286
          %v736 = vrot.slane %v732, 1
          %v737 = vrot.slane %v733, 1
          %v740 = vadd.f32 %v728, %v736
          %v741 = vadd.f32 %v729, %v737
          %s742 = sld [smem:[#allocation7 + $0x1e]]
          %v743 = vstv %s742
          %v744 = vmul.f32 %v743, %v308
          %v745 = vmul.f32 %v743, %v309
          %v748 = vrot.slane %v744, 1
          %v749 = vrot.slane %v745, 1
          %v752 = vadd.f32 %v662, %v748
          %v753 = vadd.f32 %v663, %v749
          %s754 = sld [smem:[#allocation7 + $0x1f]]
          %v755 = vstv %s754
          %v756 = vmul.f32 %v755, %v310
          %v758 = vperm.slane %v756, 1
          %v759 = vperm.slane %v756, 5
          %v762 = vadd.f32 %v752, %v758
          %v763 = vadd.f32 %v753, %v759
          %s764 = sld [smem:[#allocation7 + $0x20]]
          %v765 = vstv %s764
          %v766 = vmul.f32 %v765, %v332
          %v767 = vmul.f32 %v765, %v333
          %v770 = vrot.slane %v766, 1
          %v771 = vrot.slane %v767, 1
          %v774 = vadd.f32 %v762, %v770
          %v775 = vadd.f32 %v763, %v771
          %s776 = sld [smem:[#allocation7 + $0x21]]
          %v777 = vstv %s776
          %v778 = vmul.f32 %v777, %v355
          %v779 = vmul.f32 %v777, %v356
          %v782 = vrot.slane %v778, 1
          %v783 = vrot.slane %v779, 1
          %v786 = vadd.f32 %v695, %v782
          %v787 = vadd.f32 %v696, %v783
          %s788 = sld [smem:[#allocation7 + $0x22]]
          %v789 = vstv %s788
          %v790 = vmul.f32 %v789, %v357
          %v791 = vmul.f32 %v789, %v358
          %v794 = vperm.slane %v790, 1
          %v795 = vperm.slane %v790, 5
          %v796 = vperm.slane %v791, 1
          %797 = vrot.lane.b32.xlu0 %v794, 112
          %v798 = vpop.permute.xlu0 %797
          %799 = vrot.lane.b32.xlu0 %v795, 112
          %v800 = vpop.permute.xlu0 %799
          %801 = vrot.lane.b32.xlu0 %v796, 112
          %v802 = vpop.permute.xlu0 %801
          %v803 = vsel %vm457, %v798, %v800
          %v804 = vsel %vm457, %v800, %v802
          %v807 = vadd.f32 %v786, %v803
          %v808 = vadd.f32 %v787, %v804
          %s809 = sld [smem:[#allocation7 + $0x23]]
          %v810 = vstv %s809
          %v811 = vmul.f32 %v810, %v378
          %v812 = vmul.f32 %v810, %v379
          %v815 = vrot.slane %v811, 1
          %v816 = vrot.slane %v812, 1
          %v819 = vadd.f32 %v807, %v815
          %v820 = vadd.f32 %v808, %v816
          %v821 = vadd.f32 %v740, %v774
          %v822 = vadd.f32 %v741, %v775
          %v823 = vadd.f32 %v821, %v819
          %v824 = vadd.f32 %v822, %v820
          %v827 = vrot.slane %v824, 7
          %v828 = vsel %vm601, %v823, %v827
          %s830 = scalar_lea.vmem %s193, 1 [#allocation8]
          %831 = vst.msk [vmem:[%s830] ss:$4 sm:$0x3] %vm607, %v828
          %s832 = sld [smem:[#allocation7 + $0x24]]
          %v833 = vstv %s832
          %v834 = vmul.f32 %v833, %v258
          %v835 = vmul.f32 %v833, %v259
          %v836 = vadd.f32 %v834, 0.0
          %v837 = vadd.f32 %v835, 0.0
          %s838 = sld [smem:[#allocation7 + $0x25]]
          %v839 = vstv %s838
          %v840 = vmul.f32 %v839, %v260
          %v841 = vmul.f32 %v839, %v261
          %v844 = vperm.slane %v840, 2
          %v845 = vperm.slane %v840, 6
          %v846 = vperm.slane %v841, 2
          %847 = vrot.lane.b32.xlu0 %v844, 16
          %v848 = vpop.permute.xlu0 %847
          %849 = vrot.lane.b32.xlu0 %v845, 16
          %v850 = vpop.permute.xlu0 %849
          %851 = vrot.lane.b32.xlu0 %v846, 16
          %v852 = vpop.permute.xlu0 %851
          %v853 = vsel %vm401, %v848, %v850
          %v854 = vsel %vm401, %v850, %v852
          %v857 = vadd.f32 %v836, %v853
          %v858 = vadd.f32 %v837, %v854
          %s859 = sld [smem:[#allocation7 + $0x26]]
          %v860 = vstv %s859
          %v861 = vmul.f32 %v860, %v285
          %v862 = vmul.f32 %v860, %v286
          %v863 = vadd.f32 %v857, %v861
          %v864 = vadd.f32 %v858, %v862
          %s865 = sld [smem:[#allocation7 + $0x27]]
          %v866 = vstv %s865
          %v867 = vmul.f32 %v866, %v308
          %v868 = vmul.f32 %v866, %v309
          %v869 = vadd.f32 %v867, 0.0
          %v870 = vadd.f32 %v868, 0.0
          %s871 = sld [smem:[#allocation7 + $0x28]]
          %v872 = vstv %s871
          %v873 = vmul.f32 %v872, %v310
          %v875 = vperm.slane %v873, 2
          %v876 = vperm.slane %v873, 6
          %v879 = vadd.f32 %v869, %v875
          %v880 = vadd.f32 %v870, %v876
          %s881 = sld [smem:[#allocation7 + $0x29]]
          %v882 = vstv %s881
          %v883 = vmul.f32 %v882, %v332
          %v884 = vmul.f32 %v882, %v333
          %v885 = vadd.f32 %v879, %v883
          %v886 = vadd.f32 %v880, %v884
          %s887 = sld [smem:[#allocation7 + $0x2a]]
          %v888 = vstv %s887
          %v889 = vmul.f32 %v888, %v355
          %v890 = vmul.f32 %v888, %v356
          %v891 = vadd.f32 %v889, 0.0
          %v892 = vadd.f32 %v890, 0.0
          %s893 = sld [smem:[#allocation7 + $0x2b]]
          %v894 = vstv %s893
          %v895 = vmul.f32 %v894, %v357
          %v896 = vmul.f32 %v894, %v358
          %v899 = vperm.slane %v895, 2
          %v900 = vperm.slane %v895, 6
          %v901 = vperm.slane %v896, 2
          %902 = vrot.lane.b32.xlu0 %v899, 112
          %v903 = vpop.permute.xlu0 %902
          %904 = vrot.lane.b32.xlu0 %v900, 112
          %v905 = vpop.permute.xlu0 %904
          %906 = vrot.lane.b32.xlu0 %v901, 112
          %v907 = vpop.permute.xlu0 %906
          %v908 = vsel %vm457, %v903, %v905
          %v909 = vsel %vm457, %v905, %v907
          %v912 = vadd.f32 %v891, %v908
          %v913 = vadd.f32 %v892, %v909
          %s914 = sld [smem:[#allocation7 + $0x2c]]
          %v915 = vstv %s914
          %v916 = vmul.f32 %v915, %v378
          %v917 = vmul.f32 %v915, %v379
          %v918 = vadd.f32 %v912, %v916
          %v919 = vadd.f32 %v913, %v917
          %s920 = sld [smem:[#allocation7 + $0x2d]]
          %v921 = vstv %s920
          %v922 = vmul.f32 %v921, %v258
          %v923 = vmul.f32 %v921, %v259
          %v926 = vrot.slane %v922, 1
          %v927 = vrot.slane %v923, 1
          %v930 = vadd.f32 %v863, %v926
          %v931 = vadd.f32 %v864, %v927
          %s932 = sld [smem:[#allocation7 + $0x2e]]
          %v933 = vstv %s932
          %v934 = vmul.f32 %v933, %v260
          %v935 = vmul.f32 %v933, %v261
          %v938 = vperm.slane %v934, 3
          %v939 = vperm.slane %v934, 7
          %v940 = vperm.slane %v935, 3
          %941 = vrot.lane.b32.xlu0 %v938, 16
          %v942 = vpop.permute.xlu0 %941
          %943 = vrot.lane.b32.xlu0 %v939, 16
          %v944 = vpop.permute.xlu0 %943
          %945 = vrot.lane.b32.xlu0 %v940, 16
          %v946 = vpop.permute.xlu0 %945
          %v947 = vsel %vm401, %v942, %v944
          %v948 = vsel %vm401, %v944, %v946
          %v951 = vadd.f32 %v930, %v947
          %v952 = vadd.f32 %v931, %v948
          %s953 = sld [smem:[#allocation7 + $0x2f]]
          %v954 = vstv %s953
          %v955 = vmul.f32 %v954, %v285
          %v956 = vmul.f32 %v954, %v286
          %v959 = vrot.slane %v955, 1
          %v960 = vrot.slane %v956, 1
          %v963 = vadd.f32 %v951, %v959
          %v964 = vadd.f32 %v952, %v960
          %s965 = sld [smem:[#allocation7 + $0x30]]
          %v966 = vstv %s965
          %v967 = vmul.f32 %v966, %v308
          %v968 = vmul.f32 %v966, %v309
          %v971 = vrot.slane %v967, 1
          %v972 = vrot.slane %v968, 1
          %v975 = vadd.f32 %v885, %v971
          %v976 = vadd.f32 %v886, %v972
          %s977 = sld [smem:[#allocation7 + $0x31]]
          %v978 = vstv %s977
          %v979 = vmul.f32 %v978, %v310
          %v981 = vperm.slane %v979, 3
          %v982 = vperm.slane %v979, 7
          %v985 = vadd.f32 %v975, %v981
          %v986 = vadd.f32 %v976, %v982
          %s987 = sld [smem:[#allocation7 + $0x32]]
          %v988 = vstv %s987
          %v989 = vmul.f32 %v988, %v332
          %v990 = vmul.f32 %v988, %v333
          %v993 = vrot.slane %v989, 1
          %v994 = vrot.slane %v990, 1
          %v997 = vadd.f32 %v985, %v993
          %v998 = vadd.f32 %v986, %v994
          %s999 = sld [smem:[#allocation7 + $0x33]]
          %v1000 = vstv %s999
          %v1001 = vmul.f32 %v1000, %v355
          %v1002 = vmul.f32 %v1000, %v356
          %v1005 = vrot.slane %v1001, 1
          %v1006 = vrot.slane %v1002, 1
          %v1009 = vadd.f32 %v918, %v1005
          %v1010 = vadd.f32 %v919, %v1006
          %s1011 = sld [smem:[#allocation7 + $0x34]]
          %v1012 = vstv %s1011
          %v1013 = vmul.f32 %v1012, %v357
          %v1014 = vmul.f32 %v1012, %v358
          %v1017 = vperm.slane %v1013, 3
          %v1018 = vperm.slane %v1013, 7
          %v1019 = vperm.slane %v1014, 3
          %1020 = vrot.lane.b32.xlu0 %v1017, 112
          %v1021 = vpop.permute.xlu0 %1020
          %1022 = vrot.lane.b32.xlu0 %v1018, 112
          %v1023 = vpop.permute.xlu0 %1022
          %1024 = vrot.lane.b32.xlu0 %v1019, 112
          %v1025 = vpop.permute.xlu0 %1024
          %v1026 = vsel %vm457, %v1021, %v1023
          %v1027 = vsel %vm457, %v1023, %v1025
          %v1030 = vadd.f32 %v1009, %v1026
          %v1031 = vadd.f32 %v1010, %v1027
          %s1032 = sld [smem:[#allocation7 + $0x35]]
          %v1033 = vstv %s1032
          %v1034 = vmul.f32 %v1033, %v378
          %v1035 = vmul.f32 %v1033, %v379
          %v1038 = vrot.slane %v1034, 1
          %v1039 = vrot.slane %v1035, 1
          %v1042 = vadd.f32 %v1030, %v1038
          %v1043 = vadd.f32 %v1031, %v1039
          %v1044 = vadd.f32 %v963, %v997
          %v1045 = vadd.f32 %v964, %v998
          %v1046 = vadd.f32 %v1044, %v1042
          %v1047 = vadd.f32 %v1045, %v1043
          %1050 = vst [vmem:[#allocation1] sm:$0xff] %v1046
          %1051 = vst [vmem:[#allocation1 + $0x9] sm:$0xff] %v1047
          %s1052 = scalar_lea.vmem [#allocation1], 2
          %v1053 = vld [vmem:[%s1052] ss:$9 sm:$0xff]
          %s1055 = scalar_lea.vmem %s193, 2 [#allocation8]
          %1056 = vst.msk [vmem:[%s1055] ss:$4 sm:$0x3] %vm607, %v1053
          %s1057 = sld [smem:[#allocation7 + $0x36]]
          %v1058 = vstv %s1057
          %v1059 = vmul.f32 %v1058, %v258
          %v1060 = vmul.f32 %v1058, %v259
          %v1061 = vadd.f32 %v1059, 0.0
          %v1062 = vadd.f32 %v1060, 0.0
          %s1063 = sld [smem:[#allocation7 + $0x37]]
          %v1064 = vstv %s1063
          %v1065 = vmul.f32 %v1064, %v260
          %v1066 = vmul.f32 %v1064, %v261
          %v1069 = vperm.slane %v1065, 2
          %v1070 = vperm.slane %v1065, 6
          %v1071 = vperm.slane %v1066, 2
          %1072 = vrot.lane.b32.xlu0 %v1069, 16
          %v1073 = vpop.permute.xlu0 %1072
          %1074 = vrot.lane.b32.xlu0 %v1070, 16
          %v1075 = vpop.permute.xlu0 %1074
          %1076 = vrot.lane.b32.xlu0 %v1071, 16
          %v1077 = vpop.permute.xlu0 %1076
          %v1078 = vsel %vm401, %v1073, %v1075
          %v1079 = vsel %vm401, %v1075, %v1077
          %v1082 = vadd.f32 %v1061, %v1078
          %v1083 = vadd.f32 %v1062, %v1079
          %s1084 = sld [smem:[#allocation7 + $0x38]]
          %v1085 = vstv %s1084
          %v1086 = vmul.f32 %v1085, %v285
          %v1087 = vmul.f32 %v1085, %v286
          %v1088 = vadd.f32 %v1082, %v1086
          %v1089 = vadd.f32 %v1083, %v1087
          %s1090 = sld [smem:[#allocation7 + $0x39]]
          %v1091 = vstv %s1090
          %v1092 = vmul.f32 %v1091, %v308
          %v1093 = vmul.f32 %v1091, %v309
          %v1094 = vadd.f32 %v1092, 0.0
          %v1095 = vadd.f32 %v1093, 0.0
          %s1096 = sld [smem:[#allocation7 + $0x3a]]
          %v1097 = vstv %s1096
          %v1098 = vmul.f32 %v1097, %v310
          %v1100 = vperm.slane %v1098, 2
          %v1101 = vperm.slane %v1098, 6
          %v1104 = vadd.f32 %v1094, %v1100
          %v1105 = vadd.f32 %v1095, %v1101
          %s1106 = sld [smem:[#allocation7 + $0x3b]]
          %v1107 = vstv %s1106
          %v1108 = vmul.f32 %v1107, %v332
          %v1109 = vmul.f32 %v1107, %v333
          %v1110 = vadd.f32 %v1104, %v1108
          %v1111 = vadd.f32 %v1105, %v1109
          %s1112 = sld [smem:[#allocation7 + $0x3c]]
          %v1113 = vstv %s1112
          %v1114 = vmul.f32 %v1113, %v355
          %v1115 = vmul.f32 %v1113, %v356
          %v1116 = vadd.f32 %v1114, 0.0
          %v1117 = vadd.f32 %v1115, 0.0
          %s1118 = sld [smem:[#allocation7 + $0x3d]]
          %v1119 = vstv %s1118
          %v1120 = vmul.f32 %v1119, %v357
          %v1121 = vmul.f32 %v1119, %v358
          %v1124 = vperm.slane %v1120, 2
          %v1125 = vperm.slane %v1120, 6
          %v1126 = vperm.slane %v1121, 2
          %1127 = vrot.lane.b32.xlu0 %v1124, 112
          %v1128 = vpop.permute.xlu0 %1127
          %1129 = vrot.lane.b32.xlu0 %v1125, 112
          %v1130 = vpop.permute.xlu0 %1129
          %1131 = vrot.lane.b32.xlu0 %v1126, 112
          %v1132 = vpop.permute.xlu0 %1131
          %v1133 = vsel %vm457, %v1128, %v1130
          %v1134 = vsel %vm457, %v1130, %v1132
          %v1137 = vadd.f32 %v1116, %v1133
          %v1138 = vadd.f32 %v1117, %v1134
          %s1139 = sld [smem:[#allocation7 + $0x3e]]
          %v1140 = vstv %s1139
          %v1141 = vmul.f32 %v1140, %v378
          %v1142 = vmul.f32 %v1140, %v379
          %v1143 = vadd.f32 %v1137, %v1141
          %v1144 = vadd.f32 %v1138, %v1142
          %s1145 = sld [smem:[#allocation7 + $0x3f]]
          %v1146 = vstv %s1145
          %v1147 = vmul.f32 %v1146, %v258
          %v1148 = vmul.f32 %v1146, %v259
          %v1151 = vrot.slane %v1147, 1
          %v1152 = vrot.slane %v1148, 1
          %v1155 = vadd.f32 %v1088, %v1151
          %v1156 = vadd.f32 %v1089, %v1152
          %s1157 = sld [smem:[#allocation7 + $0x40]]
          %v1158 = vstv %s1157
          %v1159 = vmul.f32 %v1158, %v260
          %v1160 = vmul.f32 %v1158, %v261
          %v1163 = vperm.slane %v1159, 3
          %v1164 = vperm.slane %v1159, 7
          %v1165 = vperm.slane %v1160, 3
          %1166 = vrot.lane.b32.xlu0 %v1163, 16
          %v1167 = vpop.permute.xlu0 %1166
          %1168 = vrot.lane.b32.xlu0 %v1164, 16
          %v1169 = vpop.permute.xlu0 %1168
          %1170 = vrot.lane.b32.xlu0 %v1165, 16
          %v1171 = vpop.permute.xlu0 %1170
          %v1172 = vsel %vm401, %v1167, %v1169
          %v1173 = vsel %vm401, %v1169, %v1171
          %v1176 = vadd.f32 %v1155, %v1172
          %v1177 = vadd.f32 %v1156, %v1173
          %s1178 = sld [smem:[#allocation7 + $0x41]]
          %v1179 = vstv %s1178
          %v1180 = vmul.f32 %v1179, %v285
          %v1181 = vmul.f32 %v1179, %v286
          %v1184 = vrot.slane %v1180, 1
          %v1185 = vrot.slane %v1181, 1
          %v1188 = vadd.f32 %v1176, %v1184
          %v1189 = vadd.f32 %v1177, %v1185
          %s1190 = sld [smem:[#allocation7 + $0x42]]
          %v1191 = vstv %s1190
          %v1192 = vmul.f32 %v1191, %v308
          %v1193 = vmul.f32 %v1191, %v309
          %v1196 = vrot.slane %v1192, 1
          %v1197 = vrot.slane %v1193, 1
          %v1200 = vadd.f32 %v1110, %v1196
          %v1201 = vadd.f32 %v1111, %v1197
          %s1202 = sld [smem:[#allocation7 + $0x43]]
          %v1203 = vstv %s1202
          %v1204 = vmul.f32 %v1203, %v310
          %v1206 = vperm.slane %v1204, 3
          %v1207 = vperm.slane %v1204, 7
          %v1210 = vadd.f32 %v1200, %v1206
          %v1211 = vadd.f32 %v1201, %v1207
          %s1212 = sld [smem:[#allocation7 + $0x44]]
          %v1213 = vstv %s1212
          %v1214 = vmul.f32 %v1213, %v332
          %v1215 = vmul.f32 %v1213, %v333
          %v1218 = vrot.slane %v1214, 1
          %v1219 = vrot.slane %v1215, 1
          %v1222 = vadd.f32 %v1210, %v1218
          %v1223 = vadd.f32 %v1211, %v1219
          %s1224 = sld [smem:[#allocation7 + $0x45]]
          %v1225 = vstv %s1224
          %v1226 = vmul.f32 %v1225, %v355
          %v1227 = vmul.f32 %v1225, %v356
          %v1230 = vrot.slane %v1226, 1
          %v1231 = vrot.slane %v1227, 1
          %v1234 = vadd.f32 %v1143, %v1230
          %v1235 = vadd.f32 %v1144, %v1231
          %s1236 = sld [smem:[#allocation7 + $0x46]]
          %v1237 = vstv %s1236
          %v1238 = vmul.f32 %v1237, %v357
          %v1239 = vmul.f32 %v1237, %v358
          %v1242 = vperm.slane %v1238, 3
          %v1243 = vperm.slane %v1238, 7
          %v1244 = vperm.slane %v1239, 3
          %1245 = vrot.lane.b32.xlu0 %v1242, 112
          %v1246 = vpop.permute.xlu0 %1245
          %1247 = vrot.lane.b32.xlu0 %v1243, 112
          %v1248 = vpop.permute.xlu0 %1247
          %1249 = vrot.lane.b32.xlu0 %v1244, 112
          %v1250 = vpop.permute.xlu0 %1249
          %v1251 = vsel %vm457, %v1246, %v1248
          %v1252 = vsel %vm457, %v1248, %v1250
          %v1255 = vadd.f32 %v1234, %v1251
          %v1256 = vadd.f32 %v1235, %v1252
          %s1257 = sld [smem:[#allocation7 + $0x47]]
          %v1258 = vstv %s1257
          %v1259 = vmul.f32 %v1258, %v378
          %v1260 = vmul.f32 %v1258, %v379
          %v1263 = vrot.slane %v1259, 1
          %v1264 = vrot.slane %v1260, 1
          %v1267 = vadd.f32 %v1255, %v1263
          %v1268 = vadd.f32 %v1256, %v1264
          %v1269 = vadd.f32 %v1188, %v1222
          %v1270 = vadd.f32 %v1189, %v1223
          %v1271 = vadd.f32 %v1269, %v1267
          %v1272 = vadd.f32 %v1270, %v1268
          %1275 = vst [vmem:[#allocation1] sm:$0xff] %v1271
          %1276 = vst [vmem:[#allocation1 + $0x9] sm:$0xff] %v1272
          %s1277 = scalar_lea.vmem [#allocation1], 2
          %v1278 = vld [vmem:[%s1277] ss:$9 sm:$0xff]
          %s1280 = scalar_lea.vmem %s193, 3 [#allocation8]
          %1281 = vst.msk [vmem:[%s1280] ss:$4 sm:$0x3] %vm607, %v1278
        $region40: #{tpu_custom_call.1} parent=27 // pred_fallthru
          _
        %p1282 = scmp.eq.s32.totalorder %s25, 1
        // Predicated region
        $region41: #{tpu_custom_call.1} parent=27 // pred_check
          %p1283 = pneg %p1282
        $region42: #{tpu_custom_call.1} parent=27 // pred_check_branch
          %1285 = sbr.rel (%p1283) target = $region44
        $region43: #{tpu_custom_call.1} parent=27 // pred_region
          %vm1286 = vcmp.ge.s32.totalorder %v223, 2
          %vm1287 = vcmp.ge.s32.totalorder %v224, 2
          %vm1288 = vcmp.lt.s32.totalorder %v223, 14
          %vm1289 = vcmp.lt.s32.totalorder %v224, 14
          %v1290 = vld [vmem:[#allocation2] sm:$0xff]
          %v1291 = vld [vmem:[#allocation2 + $0x8] sm:$0xf]
          %v1292 = vsel %vm1286, 1, 0
          %v1293 = vsel %vm1287, 1, 0
          %vm1294 = vcmp.eq.s32.totalorder %v1292, 1
          %vm1295 = vcmp.eq.s32.totalorder %v1293, 1
          %1298 = vst [vmem:[#allocation1] ss:$2 sm:$0xff] %v1290
          %s1299 = scalar_lea.vmem [#allocation1], 16
          %1300 = vst [vmem:[%s1299] ss:$2 sm:$0xff] %v1291
          %v1301 = vld.sshfl [vmem:[#allocation1] sm:$0xff pattern:$0x75316420]
          %v1302 = vld.sshfl [vmem:[#allocation1 + $0x8] sm:$0xff pattern:$0x75316420]
          %v1303 = vld.sshfl [vmem:[#allocation1 + $0x10] sm:$0xff pattern:$0x75316420]
          %1304 = vrot.lane.b32.xlu0 %v1301, 34
          %v1305 = vpop.permute.xlu0 %1304
          %1306 = vrot.lane.b32.xlu0 %v1302, 34
          %v1307 = vpop.permute.xlu0 %1306
          %1308 = vrot.lane.b32.xlu0 %v1303, 34
          %v1309 = vpop.permute.xlu0 %1308
          %vm1310 = vcmask 277504
          %v1311 = vsel %vm1310, %v1305, %v1307
          %v1312 = vsel %vm1310, %v1307, %v1309
          %v1315 = vsel %vm1294, %v1311, 0.0
          %v1316 = vsel %vm1295, %v1312, 0.0
          %v1317 = vld [vmem:[#allocation2] sm:$0xff]
          %v1318 = vld [vmem:[#allocation2 + $0x8] sm:$0xf]
          %v1319 = vsel %vm1288, 1, 0
          %v1320 = vsel %vm1289, 1, 0
          %vm1321 = vcmp.eq.s32.totalorder %v1319, 1
          %vm1322 = vcmp.eq.s32.totalorder %v1320, 1
          %1325 = vst [vmem:[#allocation1] ss:$2 sm:$0xff] %v1317
          %s1326 = scalar_lea.vmem [#allocation1], 16
          %1327 = vst [vmem:[%s1326] ss:$2 sm:$0xff] %v1318
          %v1328 = vld.sshfl [vmem:[#allocation1] sm:$0xff pattern:$0x75316420]
          %v1329 = vld.sshfl [vmem:[#allocation1 + $0x8] sm:$0xff pattern:$0x75316420]
          %v1330 = vld.sshfl [vmem:[#allocation1 + $0x10] sm:$0xff pattern:$0x75316420]
          %1331 = vrot.lane.b32.xlu0 %v1328, 30
          %v1332 = vpop.permute.xlu0 %1331
          %1333 = vrot.lane.b32.xlu0 %v1329, 30
          %v1334 = vpop.permute.xlu0 %1333
          %1335 = vrot.lane.b32.xlu0 %v1330, 30
          %v1336 = vpop.permute.xlu0 %1335
          %vm1337 = vcmask 244736
          %v1338 = vsel %vm1337, %v1332, %v1334
          %v1339 = vsel %vm1337, %v1334, %v1336
          %v1342 = vsel %vm1321, %v1338, 0.0
          %v1343 = vsel %vm1322, %v1339, 0.0
          %v1344 = vld [vmem:[#allocation2] sm:$0xff]
          %v1345 = vld [vmem:[#allocation2 + $0x8] sm:$0xf]
          %1348 = vst [vmem:[#allocation1] ss:$2 sm:$0xff] %v1344
          %s1349 = scalar_lea.vmem [#allocation1], 16
          %1350 = vst [vmem:[%s1349] ss:$2 sm:$0xff] %v1345
          %v1351 = vld.sshfl [vmem:[#allocation1] sm:$0xff pattern:$0x75316420]
          %v1352 = vld.sshfl [vmem:[#allocation1 + $0x8] sm:$0xff pattern:$0x75316420]
          %v1353 = vld.sshfl [vmem:[#allocation1 + $0x10] sm:$0xff pattern:$0x75316420]
          %1354 = vrot.lane.b32.xlu0 %v1351, 2
          %v1355 = vpop.permute.xlu0 %1354
          %1356 = vrot.lane.b32.xlu0 %v1352, 2
          %v1357 = vpop.permute.xlu0 %1356
          %1358 = vrot.lane.b32.xlu0 %v1353, 2
          %v1359 = vpop.permute.xlu0 %1358
          %vm1360 = vcmask 15360
          %v1361 = vsel %vm1360, %v1355, %v1357
          %v1362 = vsel %vm1360, %v1357, %v1359
          %v1365 = vsel %vm1294, %v1361, 0.0
          %v1366 = vsel %vm1295, %v1362, 0.0
          %v1367 = vld [vmem:[#allocation2 + $0x4] sm:$0xff]
          %v1368 = vld [vmem:[#allocation2 + $0x4] sm:$0xff]
          %v1369 = vld [vmem:[#allocation2 + $0xc] sm:$0xf]
          %1372 = vst [vmem:[#allocation1] ss:$2 sm:$0xff] %v1368
          %s1373 = scalar_lea.vmem [#allocation1], 16
          %1374 = vst [vmem:[%s1373] ss:$2 sm:$0xff] %v1369
          %v1375 = vld.sshfl [vmem:[#allocation1] sm:$0xff pattern:$0x75316420]
          %v1376 = vld.sshfl [vmem:[#allocation1 + $0x8] sm:$0xff pattern:$0x75316420]
          %v1377 = vld.sshfl [vmem:[#allocation1 + $0x10] sm:$0xff pattern:$0x75316420]
          %1378 = vrot.lane.b32.xlu0 %v1375, 126
          %v1379 = vpop.permute.xlu0 %1378
          %1380 = vrot.lane.b32.xlu0 %v1376, 126
          %v1381 = vpop.permute.xlu0 %1380
          %1382 = vrot.lane.b32.xlu0 %v1377, 126
          %v1383 = vpop.permute.xlu0 %1382
          %vm1384 = vcmask 1031168
          %v1385 = vsel %vm1384, %v1379, %v1381
          %v1386 = vsel %vm1384, %v1381, %v1383
          %v1389 = vsel %vm1321, %v1385, 0.0
          %v1390 = vsel %vm1322, %v1386, 0.0
          %v1391 = vld [vmem:[#allocation2 + $0x4] sm:$0xff]
          %v1392 = vld [vmem:[#allocation2 + $0xc] sm:$0xf]
          %1395 = vst [vmem:[#allocation1] ss:$2 sm:$0xff] %v1391
          %s1396 = scalar_lea.vmem [#allocation1], 16
          %1397 = vst [vmem:[%s1396] ss:$2 sm:$0xff] %v1392
          %v1398 = vld.sshfl [vmem:[#allocation1] sm:$0xff pattern:$0x75316420]
          %v1399 = vld.sshfl [vmem:[#allocation1 + $0x8] sm:$0xff pattern:$0x75316420]
          %v1400 = vld.sshfl [vmem:[#allocation1 + $0x10] sm:$0xff pattern:$0x75316420]
          %1401 = vrot.lane.b32.xlu0 %v1398, 98
          %v1402 = vpop.permute.xlu0 %1401
          %1403 = vrot.lane.b32.xlu0 %v1399, 98
          %v1404 = vpop.permute.xlu0 %1403
          %1405 = vrot.lane.b32.xlu0 %v1400, 98
          %v1406 = vpop.permute.xlu0 %1405
          %vm1407 = vcmask 801792
          %v1408 = vsel %vm1407, %v1402, %v1404
          %v1409 = vsel %vm1407, %v1404, %v1406
          %v1412 = vsel %vm1294, %v1408, 0.0
          %v1413 = vsel %vm1295, %v1409, 0.0
          %v1414 = vld [vmem:[#allocation2 + $0x4] sm:$0xff]
          %v1415 = vld [vmem:[#allocation2 + $0xc] sm:$0xf]
          %1418 = vst [vmem:[#allocation1] ss:$2 sm:$0xff] %v1414
          %s1419 = scalar_lea.vmem [#allocation1], 16
          %1420 = vst [vmem:[%s1419] ss:$2 sm:$0xff] %v1415
          %v1421 = vld.sshfl [vmem:[#allocation1] sm:$0xff pattern:$0x75316420]
          %v1422 = vld.sshfl [vmem:[#allocation1 + $0x8] sm:$0xff pattern:$0x75316420]
          %v1423 = vld.sshfl [vmem:[#allocation1 + $0x10] sm:$0xff pattern:$0x75316420]
          %1424 = vrot.lane.b32.xlu0 %v1421, 94
          %v1425 = vpop.permute.xlu0 %1424
          %1426 = vrot.lane.b32.xlu0 %v1422, 94
          %v1427 = vpop.permute.xlu0 %1426
          %1428 = vrot.lane.b32.xlu0 %v1423, 94
          %v1429 = vpop.permute.xlu0 %1428
          %vm1430 = vcmask 769024
          %v1431 = vsel %vm1430, %v1425, %v1427
          %v1432 = vsel %vm1430, %v1427, %v1429
          %v1435 = vsel %vm1321, %v1431, 0.0
          %v1436 = vsel %vm1322, %v1432, 0.0
          %s1437 = sld [smem:[#allocation7 + $0x48]]
          %v1438 = vstv %s1437
          %v1439 = vmul.f32 %v1438, %v1315
          %v1440 = vmul.f32 %v1438, %v1316
          %v1441 = vadd.f32 %v1439, 0.0
          %v1442 = vadd.f32 %v1440, 0.0
          %s1443 = sld [smem:[#allocation7 + $0x49]]
          %v1444 = vstv %s1443
          %v1445 = vmul.f32 %v1444, %v1317
          %v1446 = vmul.f32 %v1444, %v1318
          %v1449 = vperm.slane %v1445, 0
          %v1450 = vperm.slane %v1445, 4
          %v1451 = vperm.slane %v1446, 0
          %1452 = vrot.lane.b32.xlu0 %v1449, 32
          %v1453 = vpop.permute.xlu0 %1452
          %1454 = vrot.lane.b32.xlu0 %v1450, 32
          %v1455 = vpop.permute.xlu0 %1454
          %1456 = vrot.lane.b32.xlu0 %v1451, 32
          %v1457 = vpop.permute.xlu0 %1456
          %vm1458 = vcmask 261120
          %v1459 = vsel %vm1458, %v1453, %v1455
          %v1460 = vsel %vm1458, %v1455, %v1457
          %v1463 = vadd.f32 %v1441, %v1459
          %v1464 = vadd.f32 %v1442, %v1460
          %s1465 = sld [smem:[#allocation7 + $0x4a]]
          %v1466 = vstv %s1465
          %v1467 = vmul.f32 %v1466, %v1342
          %v1468 = vmul.f32 %v1466, %v1343
          %v1469 = vadd.f32 %v1463, %v1467
          %v1470 = vadd.f32 %v1464, %v1468
          %s1471 = sld [smem:[#allocation7 + $0x4b]]
          %v1472 = vstv %s1471
          %v1473 = vmul.f32 %v1472, %v1365
          %v1474 = vmul.f32 %v1472, %v1366
          %v1475 = vadd.f32 %v1473, 0.0
          %v1476 = vadd.f32 %v1474, 0.0
          %s1477 = sld [smem:[#allocation7 + $0x4c]]
          %v1478 = vstv %s1477
          %v1479 = vmul.f32 %v1478, %v1367
          %v1481 = vperm.slane %v1479, 0
          %v1482 = vperm.slane %v1479, 4
          %v1485 = vadd.f32 %v1475, %v1481
          %v1486 = vadd.f32 %v1476, %v1482
          %s1487 = sld [smem:[#allocation7 + $0x4d]]
          %v1488 = vstv %s1487
          %v1489 = vmul.f32 %v1488, %v1389
          %v1490 = vmul.f32 %v1488, %v1390
          %v1491 = vadd.f32 %v1485, %v1489
          %v1492 = vadd.f32 %v1486, %v1490
          %s1493 = sld [smem:[#allocation7 + $0x4e]]
          %v1494 = vstv %s1493
          %v1495 = vmul.f32 %v1494, %v1412
          %v1496 = vmul.f32 %v1494, %v1413
          %v1497 = vadd.f32 %v1495, 0.0
          %v1498 = vadd.f32 %v1496, 0.0
          %s1499 = sld [smem:[#allocation7 + $0x4f]]
          %v1500 = vstv %s1499
          %v1501 = vmul.f32 %v1500, %v1414
          %v1502 = vmul.f32 %v1500, %v1415
          %v1505 = vperm.slane %v1501, 0
          %v1506 = vperm.slane %v1501, 4
          %v1507 = vperm.slane %v1502, 0
          %1508 = vrot.lane.b32.xlu0 %v1505, 96
          %v1509 = vpop.permute.xlu0 %1508
          %1510 = vrot.lane.b32.xlu0 %v1506, 96
          %v1511 = vpop.permute.xlu0 %1510
          %1512 = vrot.lane.b32.xlu0 %v1507, 96
          %v1513 = vpop.permute.xlu0 %1512
          %vm1514 = vcmask 785408
          %v1515 = vsel %vm1514, %v1509, %v1511
          %v1516 = vsel %vm1514, %v1511, %v1513
          %v1519 = vadd.f32 %v1497, %v1515
          %v1520 = vadd.f32 %v1498, %v1516
          %s1521 = sld [smem:[#allocation7 + $0x50]]
          %v1522 = vstv %s1521
          %v1523 = vmul.f32 %v1522, %v1435
          %v1524 = vmul.f32 %v1522, %v1436
          %v1525 = vadd.f32 %v1519, %v1523
          %v1526 = vadd.f32 %v1520, %v1524
          %s1527 = sld [smem:[#allocation7 + $0x51]]
          %v1528 = vstv %s1527
          %v1529 = vmul.f32 %v1528, %v1315
          %v1530 = vmul.f32 %v1528, %v1316
          %v1533 = vrot.slane %v1529, 1
          %v1534 = vrot.slane %v1530, 1
          %v1537 = vadd.f32 %v1469, %v1533
          %v1538 = vadd.f32 %v1470, %v1534
          %s1539 = sld [smem:[#allocation7 + $0x52]]
          %v1540 = vstv %s1539
          %v1541 = vmul.f32 %v1540, %v1317
          %v1542 = vmul.f32 %v1540, %v1318
          %v1545 = vperm.slane %v1541, 1
          %v1546 = vperm.slane %v1541, 5
          %v1547 = vperm.slane %v1542, 1
          %1548 = vrot.lane.b32.xlu0 %v1545, 32
          %v1549 = vpop.permute.xlu0 %1548
          %1550 = vrot.lane.b32.xlu0 %v1546, 32
          %v1551 = vpop.permute.xlu0 %1550
          %1552 = vrot.lane.b32.xlu0 %v1547, 32
          %v1553 = vpop.permute.xlu0 %1552
          %v1554 = vsel %vm1458, %v1549, %v1551
          %v1555 = vsel %vm1458, %v1551, %v1553
          %v1558 = vadd.f32 %v1537, %v1554
          %v1559 = vadd.f32 %v1538, %v1555
          %s1560 = sld [smem:[#allocation7 + $0x53]]
          %v1561 = vstv %s1560
          %v1562 = vmul.f32 %v1561, %v1342
          %v1563 = vmul.f32 %v1561, %v1343
          %v1566 = vrot.slane %v1562, 1
          %v1567 = vrot.slane %v1563, 1
          %v1570 = vadd.f32 %v1558, %v1566
          %v1571 = vadd.f32 %v1559, %v1567
          %s1572 = sld [smem:[#allocation7 + $0x54]]
          %v1573 = vstv %s1572
          %v1574 = vmul.f32 %v1573, %v1365
          %v1575 = vmul.f32 %v1573, %v1366
          %v1578 = vrot.slane %v1574, 1
          %v1579 = vrot.slane %v1575, 1
          %v1582 = vadd.f32 %v1491, %v1578
          %v1583 = vadd.f32 %v1492, %v1579
          %s1584 = sld [smem:[#allocation7 + $0x55]]
          %v1585 = vstv %s1584
          %v1586 = vmul.f32 %v1585, %v1367
          %v1588 = vperm.slane %v1586, 1
          %v1589 = vperm.slane %v1586, 5
          %v1592 = vadd.f32 %v1582, %v1588
          %v1593 = vadd.f32 %v1583, %v1589
          %s1594 = sld [smem:[#allocation7 + $0x56]]
          %v1595 = vstv %s1594
          %v1596 = vmul.f32 %v1595, %v1389
          %v1597 = vmul.f32 %v1595, %v1390
          %v1600 = vrot.slane %v1596, 1
          %v1601 = vrot.slane %v1597, 1
          %v1604 = vadd.f32 %v1592, %v1600
          %v1605 = vadd.f32 %v1593, %v1601
          %s1606 = sld [smem:[#allocation7 + $0x57]]
          %v1607 = vstv %s1606
          %v1608 = vmul.f32 %v1607, %v1412
          %v1609 = vmul.f32 %v1607, %v1413
          %v1612 = vrot.slane %v1608, 1
          %v1613 = vrot.slane %v1609, 1
          %v1616 = vadd.f32 %v1525, %v1612
          %v1617 = vadd.f32 %v1526, %v1613
          %s1618 = sld [smem:[#allocation7 + $0x58]]
          %v1619 = vstv %s1618
          %v1620 = vmul.f32 %v1619, %v1414
          %v1621 = vmul.f32 %v1619, %v1415
          %v1624 = vperm.slane %v1620, 1
          %v1625 = vperm.slane %v1620, 5
          %v1626 = vperm.slane %v1621, 1
          %1627 = vrot.lane.b32.xlu0 %v1624, 96
          %v1628 = vpop.permute.xlu0 %1627
          %1629 = vrot.lane.b32.xlu0 %v1625, 96
          %v1630 = vpop.permute.xlu0 %1629
          %1631 = vrot.lane.b32.xlu0 %v1626, 96
          %v1632 = vpop.permute.xlu0 %1631
          %v1633 = vsel %vm1514, %v1628, %v1630
          %v1634 = vsel %vm1514, %v1630, %v1632
          %v1637 = vadd.f32 %v1616, %v1633
          %v1638 = vadd.f32 %v1617, %v1634
          %s1639 = sld [smem:[#allocation7 + $0x59]]
          %v1640 = vstv %s1639
          %v1641 = vmul.f32 %v1640, %v1435
          %v1642 = vmul.f32 %v1640, %v1436
          %v1645 = vrot.slane %v1641, 1
          %v1646 = vrot.slane %v1642, 1
          %v1649 = vadd.f32 %v1637, %v1645
          %v1650 = vadd.f32 %v1638, %v1646
          %v1651 = vadd.f32 %v1570, %v1604
          %v1652 = vadd.f32 %v1571, %v1605
          %v1653 = vadd.f32 %v1651, %v1649
          %v1654 = vadd.f32 %v1652, %v1650
          %v1657 = vrot.slane %v1654, 7
          %vm1658 = vcmask 1040384
          %v1659 = vsel %vm1658, %v1653, %v1657
          %v1661 = vlaneseq
          %vm1662 = vcmp.ge.s32.totalorder %v1661, 0
          %vm1663 = vcmp.lt.s32.totalorder %v1661, 256
          %vm1664 = vmand %vm1662, %vm1663
          %1665 = vst.msk [vmem:[%s193] ss:$4 sm:$0x3] %vm1664, %v1659
          %s1666 = sld [smem:[#allocation7 + $0x5a]]
          %v1667 = vstv %s1666
          %v1668 = vmul.f32 %v1667, %v1315
          %v1669 = vmul.f32 %v1667, %v1316
          %v1670 = vadd.f32 %v1668, 0.0
          %v1671 = vadd.f32 %v1669, 0.0
          %s1672 = sld [smem:[#allocation7 + $0x5b]]
          %v1673 = vstv %s1672
          %v1674 = vmul.f32 %v1673, %v1317
          %v1675 = vmul.f32 %v1673, %v1318
          %v1678 = vperm.slane %v1674, 0
          %v1679 = vperm.slane %v1674, 4
          %v1680 = vperm.slane %v1675, 0
          %1681 = vrot.lane.b32.xlu0 %v1678, 32
          %v1682 = vpop.permute.xlu0 %1681
          %1683 = vrot.lane.b32.xlu0 %v1679, 32
          %v1684 = vpop.permute.xlu0 %1683
          %1685 = vrot.lane.b32.xlu0 %v1680, 32
          %v1686 = vpop.permute.xlu0 %1685
          %v1687 = vsel %vm1458, %v1682, %v1684
          %v1688 = vsel %vm1458, %v1684, %v1686
          %v1691 = vadd.f32 %v1670, %v1687
          %v1692 = vadd.f32 %v1671, %v1688
          %s1693 = sld [smem:[#allocation7 + $0x5c]]
          %v1694 = vstv %s1693
          %v1695 = vmul.f32 %v1694, %v1342
          %v1696 = vmul.f32 %v1694, %v1343
          %v1697 = vadd.f32 %v1691, %v1695
          %v1698 = vadd.f32 %v1692, %v1696
          %s1699 = sld [smem:[#allocation7 + $0x5d]]
          %v1700 = vstv %s1699
          %v1701 = vmul.f32 %v1700, %v1365
          %v1702 = vmul.f32 %v1700, %v1366
          %v1703 = vadd.f32 %v1701, 0.0
          %v1704 = vadd.f32 %v1702, 0.0
          %s1705 = sld [smem:[#allocation7 + $0x5e]]
          %v1706 = vstv %s1705
          %v1707 = vmul.f32 %v1706, %v1367
          %v1709 = vperm.slane %v1707, 0
          %v1710 = vperm.slane %v1707, 4
          %v1713 = vadd.f32 %v1703, %v1709
          %v1714 = vadd.f32 %v1704, %v1710
          %s1715 = sld [smem:[#allocation7 + $0x5f]]
          %v1716 = vstv %s1715
          %v1717 = vmul.f32 %v1716, %v1389
          %v1718 = vmul.f32 %v1716, %v1390
          %v1719 = vadd.f32 %v1713, %v1717
          %v1720 = vadd.f32 %v1714, %v1718
          %s1721 = sld [smem:[#allocation7 + $0x60]]
          %v1722 = vstv %s1721
          %v1723 = vmul.f32 %v1722, %v1412
          %v1724 = vmul.f32 %v1722, %v1413
          %v1725 = vadd.f32 %v1723, 0.0
          %v1726 = vadd.f32 %v1724, 0.0
          %s1727 = sld [smem:[#allocation7 + $0x61]]
          %v1728 = vstv %s1727
          %v1729 = vmul.f32 %v1728, %v1414
          %v1730 = vmul.f32 %v1728, %v1415
          %v1733 = vperm.slane %v1729, 0
          %v1734 = vperm.slane %v1729, 4
          %v1735 = vperm.slane %v1730, 0
          %1736 = vrot.lane.b32.xlu0 %v1733, 96
          %v1737 = vpop.permute.xlu0 %1736
          %1738 = vrot.lane.b32.xlu0 %v1734, 96
          %v1739 = vpop.permute.xlu0 %1738
          %1740 = vrot.lane.b32.xlu0 %v1735, 96
          %v1741 = vpop.permute.xlu0 %1740
          %v1742 = vsel %vm1514, %v1737, %v1739
          %v1743 = vsel %vm1514, %v1739, %v1741
          %v1746 = vadd.f32 %v1725, %v1742
          %v1747 = vadd.f32 %v1726, %v1743
          %s1748 = sld [smem:[#allocation7 + $0x62]]
          %v1749 = vstv %s1748
          %v1750 = vmul.f32 %v1749, %v1435
          %v1751 = vmul.f32 %v1749, %v1436
          %v1752 = vadd.f32 %v1746, %v1750
          %v1753 = vadd.f32 %v1747, %v1751
          %s1754 = sld [smem:[#allocation7 + $0x63]]
          %v1755 = vstv %s1754
          %v1756 = vmul.f32 %v1755, %v1315
          %v1757 = vmul.f32 %v1755, %v1316
          %v1760 = vrot.slane %v1756, 1
          %v1761 = vrot.slane %v1757, 1
          %v1764 = vadd.f32 %v1697, %v1760
          %v1765 = vadd.f32 %v1698, %v1761
          %s1766 = sld [smem:[#allocation7 + $0x64]]
          %v1767 = vstv %s1766
          %v1768 = vmul.f32 %v1767, %v1317
          %v1769 = vmul.f32 %v1767, %v1318
          %v1772 = vperm.slane %v1768, 1
          %v1773 = vperm.slane %v1768, 5
          %v1774 = vperm.slane %v1769, 1
          %1775 = vrot.lane.b32.xlu0 %v1772, 32
          %v1776 = vpop.permute.xlu0 %1775
          %1777 = vrot.lane.b32.xlu0 %v1773, 32
          %v1778 = vpop.permute.xlu0 %1777
          %1779 = vrot.lane.b32.xlu0 %v1774, 32
          %v1780 = vpop.permute.xlu0 %1779
          %v1781 = vsel %vm1458, %v1776, %v1778
          %v1782 = vsel %vm1458, %v1778, %v1780
          %v1785 = vadd.f32 %v1764, %v1781
          %v1786 = vadd.f32 %v1765, %v1782
          %s1787 = sld [smem:[#allocation7 + $0x65]]
          %v1788 = vstv %s1787
          %v1789 = vmul.f32 %v1788, %v1342
          %v1790 = vmul.f32 %v1788, %v1343
          %v1793 = vrot.slane %v1789, 1
          %v1794 = vrot.slane %v1790, 1
          %v1797 = vadd.f32 %v1785, %v1793
          %v1798 = vadd.f32 %v1786, %v1794
          %s1799 = sld [smem:[#allocation7 + $0x66]]
          %v1800 = vstv %s1799
          %v1801 = vmul.f32 %v1800, %v1365
          %v1802 = vmul.f32 %v1800, %v1366
          %v1805 = vrot.slane %v1801, 1
          %v1806 = vrot.slane %v1802, 1
          %v1809 = vadd.f32 %v1719, %v1805
          %v1810 = vadd.f32 %v1720, %v1806
          %s1811 = sld [smem:[#allocation7 + $0x67]]
          %v1812 = vstv %s1811
          %v1813 = vmul.f32 %v1812, %v1367
          %v1815 = vperm.slane %v1813, 1
          %v1816 = vperm.slane %v1813, 5
          %v1819 = vadd.f32 %v1809, %v1815
          %v1820 = vadd.f32 %v1810, %v1816
          %s1821 = sld [smem:[#allocation7 + $0x68]]
          %v1822 = vstv %s1821
          %v1823 = vmul.f32 %v1822, %v1389
          %v1824 = vmul.f32 %v1822, %v1390
          %v1827 = vrot.slane %v1823, 1
          %v1828 = vrot.slane %v1824, 1
          %v1831 = vadd.f32 %v1819, %v1827
          %v1832 = vadd.f32 %v1820, %v1828
          %s1833 = sld [smem:[#allocation7 + $0x69]]
          %v1834 = vstv %s1833
          %v1835 = vmul.f32 %v1834, %v1412
          %v1836 = vmul.f32 %v1834, %v1413
          %v1839 = vrot.slane %v1835, 1
          %v1840 = vrot.slane %v1836, 1
          %v1843 = vadd.f32 %v1752, %v1839
          %v1844 = vadd.f32 %v1753, %v1840
          %s1845 = sld [smem:[#allocation7 + $0x6a]]
          %v1846 = vstv %s1845
          %v1847 = vmul.f32 %v1846, %v1414
          %v1848 = vmul.f32 %v1846, %v1415
          %v1851 = vperm.slane %v1847, 1
          %v1852 = vperm.slane %v1847, 5
          %v1853 = vperm.slane %v1848, 1
          %1854 = vrot.lane.b32.xlu0 %v1851, 96
          %v1855 = vpop.permute.xlu0 %1854
          %1856 = vrot.lane.b32.xlu0 %v1852, 96
          %v1857 = vpop.permute.xlu0 %1856
          %1858 = vrot.lane.b32.xlu0 %v1853, 96
          %v1859 = vpop.permute.xlu0 %1858
          %v1860 = vsel %vm1514, %v1855, %v1857
          %v1861 = vsel %vm1514, %v1857, %v1859
          %v1864 = vadd.f32 %v1843, %v1860
          %v1865 = vadd.f32 %v1844, %v1861
          %s1866 = sld [smem:[#allocation7 + $0x6b]]
          %v1867 = vstv %s1866
          %v1868 = vmul.f32 %v1867, %v1435
          %v1869 = vmul.f32 %v1867, %v1436
          %v1872 = vrot.slane %v1868, 1
          %v1873 = vrot.slane %v1869, 1
          %v1876 = vadd.f32 %v1864, %v1872
          %v1877 = vadd.f32 %v1865, %v1873
          %v1878 = vadd.f32 %v1797, %v1831
          %v1879 = vadd.f32 %v1798, %v1832
          %v1880 = vadd.f32 %v1878, %v1876
          %v1881 = vadd.f32 %v1879, %v1877
          %v1884 = vrot.slane %v1881, 7
          %v1885 = vsel %vm1658, %v1880, %v1884
          %s1887 = scalar_lea.vmem %s193, 1 [#allocation8]
          %1888 = vst.msk [vmem:[%s1887] ss:$4 sm:$0x3] %vm1664, %v1885
          %s1889 = sld [smem:[#allocation7 + $0x6c]]
          %v1890 = vstv %s1889
          %v1891 = vmul.f32 %v1890, %v1315
          %v1892 = vmul.f32 %v1890, %v1316
          %v1893 = vadd.f32 %v1891, 0.0
          %v1894 = vadd.f32 %v1892, 0.0
          %s1895 = sld [smem:[#allocation7 + $0x6d]]
          %v1896 = vstv %s1895
          %v1897 = vmul.f32 %v1896, %v1317
          %v1898 = vmul.f32 %v1896, %v1318
          %v1901 = vperm.slane %v1897, 2
          %v1902 = vperm.slane %v1897, 6
          %v1903 = vperm.slane %v1898, 2
          %1904 = vrot.lane.b32.xlu0 %v1901, 32
          %v1905 = vpop.permute.xlu0 %1904
          %1906 = vrot.lane.b32.xlu0 %v1902, 32
          %v1907 = vpop.permute.xlu0 %1906
          %1908 = vrot.lane.b32.xlu0 %v1903, 32
          %v1909 = vpop.permute.xlu0 %1908
          %v1910 = vsel %vm1458, %v1905, %v1907
          %v1911 = vsel %vm1458, %v1907, %v1909
          %v1914 = vadd.f32 %v1893, %v1910
          %v1915 = vadd.f32 %v1894, %v1911
          %s1916 = sld [smem:[#allocation7 + $0x6e]]
          %v1917 = vstv %s1916
          %v1918 = vmul.f32 %v1917, %v1342
          %v1919 = vmul.f32 %v1917, %v1343
          %v1920 = vadd.f32 %v1914, %v1918
          %v1921 = vadd.f32 %v1915, %v1919
          %s1922 = sld [smem:[#allocation7 + $0x6f]]
          %v1923 = vstv %s1922
          %v1924 = vmul.f32 %v1923, %v1365
          %v1925 = vmul.f32 %v1923, %v1366
          %v1926 = vadd.f32 %v1924, 0.0
          %v1927 = vadd.f32 %v1925, 0.0
          %s1928 = sld [smem:[#allocation7 + $0x70]]
          %v1929 = vstv %s1928
          %v1930 = vmul.f32 %v1929, %v1367
          %v1932 = vperm.slane %v1930, 2
          %v1933 = vperm.slane %v1930, 6
          %v1936 = vadd.f32 %v1926, %v1932
          %v1937 = vadd.f32 %v1927, %v1933
          %s1938 = sld [smem:[#allocation7 + $0x71]]
          %v1939 = vstv %s1938
          %v1940 = vmul.f32 %v1939, %v1389
          %v1941 = vmul.f32 %v1939, %v1390
          %v1942 = vadd.f32 %v1936, %v1940
          %v1943 = vadd.f32 %v1937, %v1941
          %s1944 = sld [smem:[#allocation7 + $0x72]]
          %v1945 = vstv %s1944
          %v1946 = vmul.f32 %v1945, %v1412
          %v1947 = vmul.f32 %v1945, %v1413
          %v1948 = vadd.f32 %v1946, 0.0
          %v1949 = vadd.f32 %v1947, 0.0
          %s1950 = sld [smem:[#allocation7 + $0x73]]
          %v1951 = vstv %s1950
          %v1952 = vmul.f32 %v1951, %v1414
          %v1953 = vmul.f32 %v1951, %v1415
          %v1956 = vperm.slane %v1952, 2
          %v1957 = vperm.slane %v1952, 6
          %v1958 = vperm.slane %v1953, 2
          %1959 = vrot.lane.b32.xlu0 %v1956, 96
          %v1960 = vpop.permute.xlu0 %1959
          %1961 = vrot.lane.b32.xlu0 %v1957, 96
          %v1962 = vpop.permute.xlu0 %1961
          %1963 = vrot.lane.b32.xlu0 %v1958, 96
          %v1964 = vpop.permute.xlu0 %1963
          %v1965 = vsel %vm1514, %v1960, %v1962
          %v1966 = vsel %vm1514, %v1962, %v1964
          %v1969 = vadd.f32 %v1948, %v1965
          %v1970 = vadd.f32 %v1949, %v1966
          %s1971 = sld [smem:[#allocation7 + $0x74]]
          %v1972 = vstv %s1971
          %v1973 = vmul.f32 %v1972, %v1435
          %v1974 = vmul.f32 %v1972, %v1436
          %v1975 = vadd.f32 %v1969, %v1973
          %v1976 = vadd.f32 %v1970, %v1974
          %s1977 = sld [smem:[#allocation7 + $0x75]]
          %v1978 = vstv %s1977
          %v1979 = vmul.f32 %v1978, %v1315
          %v1980 = vmul.f32 %v1978, %v1316
          %v1983 = vrot.slane %v1979, 1
          %v1984 = vrot.slane %v1980, 1
          %v1987 = vadd.f32 %v1920, %v1983
          %v1988 = vadd.f32 %v1921, %v1984
          %s1989 = sld [smem:[#allocation7 + $0x76]]
          %v1990 = vstv %s1989
          %v1991 = vmul.f32 %v1990, %v1317
          %v1992 = vmul.f32 %v1990, %v1318
          %v1995 = vperm.slane %v1991, 3
          %v1996 = vperm.slane %v1991, 7
          %v1997 = vperm.slane %v1992, 3
          %1998 = vrot.lane.b32.xlu0 %v1995, 32
          %v1999 = vpop.permute.xlu0 %1998
          %2000 = vrot.lane.b32.xlu0 %v1996, 32
          %v2001 = vpop.permute.xlu0 %2000
          %2002 = vrot.lane.b32.xlu0 %v1997, 32
          %v2003 = vpop.permute.xlu0 %2002
          %v2004 = vsel %vm1458, %v1999, %v2001
          %v2005 = vsel %vm1458, %v2001, %v2003
          %v2008 = vadd.f32 %v1987, %v2004
          %v2009 = vadd.f32 %v1988, %v2005
          %s2010 = sld [smem:[#allocation7 + $0x77]]
          %v2011 = vstv %s2010
          %v2012 = vmul.f32 %v2011, %v1342
          %v2013 = vmul.f32 %v2011, %v1343
          %v2016 = vrot.slane %v2012, 1
          %v2017 = vrot.slane %v2013, 1
          %v2020 = vadd.f32 %v2008, %v2016
          %v2021 = vadd.f32 %v2009, %v2017
          %s2022 = sld [smem:[#allocation7 + $0x78]]
          %v2023 = vstv %s2022
          %v2024 = vmul.f32 %v2023, %v1365
          %v2025 = vmul.f32 %v2023, %v1366
          %v2028 = vrot.slane %v2024, 1
          %v2029 = vrot.slane %v2025, 1
          %v2032 = vadd.f32 %v1942, %v2028
          %v2033 = vadd.f32 %v1943, %v2029
          %s2034 = sld [smem:[#allocation7 + $0x79]]
          %v2035 = vstv %s2034
          %v2036 = vmul.f32 %v2035, %v1367
          %v2038 = vperm.slane %v2036, 3
          %v2039 = vperm.slane %v2036, 7
          %v2042 = vadd.f32 %v2032, %v2038
          %v2043 = vadd.f32 %v2033, %v2039
          %s2044 = sld [smem:[#allocation7 + $0x7a]]
          %v2045 = vstv %s2044
          %v2046 = vmul.f32 %v2045, %v1389
          %v2047 = vmul.f32 %v2045, %v1390
          %v2050 = vrot.slane %v2046, 1
          %v2051 = vrot.slane %v2047, 1
          %v2054 = vadd.f32 %v2042, %v2050
          %v2055 = vadd.f32 %v2043, %v2051
          %s2056 = sld [smem:[#allocation7 + $0x7b]]
          %v2057 = vstv %s2056
          %v2058 = vmul.f32 %v2057, %v1412
          %v2059 = vmul.f32 %v2057, %v1413
          %v2062 = vrot.slane %v2058, 1
          %v2063 = vrot.slane %v2059, 1
          %v2066 = vadd.f32 %v1975, %v2062
          %v2067 = vadd.f32 %v1976, %v2063
          %s2068 = sld [smem:[#allocation7 + $0x7c]]
          %v2069 = vstv %s2068
          %v2070 = vmul.f32 %v2069, %v1414
          %v2071 = vmul.f32 %v2069, %v1415
          %v2074 = vperm.slane %v2070, 3
          %v2075 = vperm.slane %v2070, 7
          %v2076 = vperm.slane %v2071, 3
          %2077 = vrot.lane.b32.xlu0 %v2074, 96
          %v2078 = vpop.permute.xlu0 %2077
          %2079 = vrot.lane.b32.xlu0 %v2075, 96
          %v2080 = vpop.permute.xlu0 %2079
          %2081 = vrot.lane.b32.xlu0 %v2076, 96
          %v2082 = vpop.permute.xlu0 %2081
          %v2083 = vsel %vm1514, %v2078, %v2080
          %v2084 = vsel %vm1514, %v2080, %v2082
          %v2087 = vadd.f32 %v2066, %v2083
          %v2088 = vadd.f32 %v2067, %v2084
          %s2089 = sld [smem:[#allocation7 + $0x7d]]
          %v2090 = vstv %s2089
          %v2091 = vmul.f32 %v2090, %v1435
          %v2092 = vmul.f32 %v2090, %v1436
          %v2095 = vrot.slane %v2091, 1
          %v2096 = vrot.slane %v2092, 1
          %v2099 = vadd.f32 %v2087, %v2095
          %v2100 = vadd.f32 %v2088, %v2096
          %v2101 = vadd.f32 %v2020, %v2054
          %v2102 = vadd.f32 %v2021, %v2055
          %v2103 = vadd.f32 %v2101, %v2099
          %v2104 = vadd.f32 %v2102, %v2100
          %2107 = vst [vmem:[#allocation1] sm:$0xff] %v2103
          %2108 = vst [vmem:[#allocation1 + $0x9] sm:$0xff] %v2104
          %s2109 = scalar_lea.vmem [#allocation1], 2
          %v2110 = vld [vmem:[%s2109] ss:$9 sm:$0xff]
          %s2112 = scalar_lea.vmem %s193, 2 [#allocation8]
          %2113 = vst.msk [vmem:[%s2112] ss:$4 sm:$0x3] %vm1664, %v2110
          %s2114 = sld [smem:[#allocation7 + $0x7e]]
          %v2115 = vstv %s2114
          %v2116 = vmul.f32 %v2115, %v1315
          %v2117 = vmul.f32 %v2115, %v1316
          %v2118 = vadd.f32 %v2116, 0.0
          %v2119 = vadd.f32 %v2117, 0.0
          %s2120 = sld [smem:[#allocation7 + $0x7f]]
          %v2121 = vstv %s2120
          %v2122 = vmul.f32 %v2121, %v1317
          %v2123 = vmul.f32 %v2121, %v1318
          %v2126 = vperm.slane %v2122, 2
          %v2127 = vperm.slane %v2122, 6
          %v2128 = vperm.slane %v2123, 2
          %2129 = vrot.lane.b32.xlu0 %v2126, 32
          %v2130 = vpop.permute.xlu0 %2129
          %2131 = vrot.lane.b32.xlu0 %v2127, 32
          %v2132 = vpop.permute.xlu0 %2131
          %2133 = vrot.lane.b32.xlu0 %v2128, 32
          %v2134 = vpop.permute.xlu0 %2133
          %v2135 = vsel %vm1458, %v2130, %v2132
          %v2136 = vsel %vm1458, %v2132, %v2134
          %v2139 = vadd.f32 %v2118, %v2135
          %v2140 = vadd.f32 %v2119, %v2136
          %s2141 = sld [smem:[#allocation7 + $0x80]]
          %v2142 = vstv %s2141
          %v2143 = vmul.f32 %v2142, %v1342
          %v2144 = vmul.f32 %v2142, %v1343
          %v2145 = vadd.f32 %v2139, %v2143
          %v2146 = vadd.f32 %v2140, %v2144
          %s2147 = sld [smem:[#allocation7 + $0x81]]
          %v2148 = vstv %s2147
          %v2149 = vmul.f32 %v2148, %v1365
          %v2150 = vmul.f32 %v2148, %v1366
          %v2151 = vadd.f32 %v2149, 0.0
          %v2152 = vadd.f32 %v2150, 0.0
          %s2153 = sld [smem:[#allocation7 + $0x82]]
          %v2154 = vstv %s2153
          %v2155 = vmul.f32 %v2154, %v1367
          %v2157 = vperm.slane %v2155, 2
          %v2158 = vperm.slane %v2155, 6
          %v2161 = vadd.f32 %v2151, %v2157
          %v2162 = vadd.f32 %v2152, %v2158
          %s2163 = sld [smem:[#allocation7 + $0x83]]
          %v2164 = vstv %s2163
          %v2165 = vmul.f32 %v2164, %v1389
          %v2166 = vmul.f32 %v2164, %v1390
          %v2167 = vadd.f32 %v2161, %v2165
          %v2168 = vadd.f32 %v2162, %v2166
          %s2169 = sld [smem:[#allocation7 + $0x84]]
          %v2170 = vstv %s2169
          %v2171 = vmul.f32 %v2170, %v1412
          %v2172 = vmul.f32 %v2170, %v1413
          %v2173 = vadd.f32 %v2171, 0.0
          %v2174 = vadd.f32 %v2172, 0.0
          %s2175 = sld [smem:[#allocation7 + $0x85]]
          %v2176 = vstv %s2175
          %v2177 = vmul.f32 %v2176, %v1414
          %v2178 = vmul.f32 %v2176, %v1415
          %v2181 = vperm.slane %v2177, 2
          %v2182 = vperm.slane %v2177, 6
          %v2183 = vperm.slane %v2178, 2
          %2184 = vrot.lane.b32.xlu0 %v2181, 96
          %v2185 = vpop.permute.xlu0 %2184
          %2186 = vrot.lane.b32.xlu0 %v2182, 96
          %v2187 = vpop.permute.xlu0 %2186
          %2188 = vrot.lane.b32.xlu0 %v2183, 96
          %v2189 = vpop.permute.xlu0 %2188
          %v2190 = vsel %vm1514, %v2185, %v2187
          %v2191 = vsel %vm1514, %v2187, %v2189
          %v2194 = vadd.f32 %v2173, %v2190
          %v2195 = vadd.f32 %v2174, %v2191
          %s2196 = sld [smem:[#allocation7 + $0x86]]
          %v2197 = vstv %s2196
          %v2198 = vmul.f32 %v2197, %v1435
          %v2199 = vmul.f32 %v2197, %v1436
          %v2200 = vadd.f32 %v2194, %v2198
          %v2201 = vadd.f32 %v2195, %v2199
          %s2202 = sld [smem:[#allocation7 + $0x87]]
          %v2203 = vstv %s2202
          %v2204 = vmul.f32 %v2203, %v1315
          %v2205 = vmul.f32 %v2203, %v1316
          %v2208 = vrot.slane %v2204, 1
          %v2209 = vrot.slane %v2205, 1
          %v2212 = vadd.f32 %v2145, %v2208
          %v2213 = vadd.f32 %v2146, %v2209
          %s2214 = sld [smem:[#allocation7 + $0x88]]
          %v2215 = vstv %s2214
          %v2216 = vmul.f32 %v2215, %v1317
          %v2217 = vmul.f32 %v2215, %v1318
          %v2220 = vperm.slane %v2216, 3
          %v2221 = vperm.slane %v2216, 7
          %v2222 = vperm.slane %v2217, 3
          %2223 = vrot.lane.b32.xlu0 %v2220, 32
          %v2224 = vpop.permute.xlu0 %2223
          %2225 = vrot.lane.b32.xlu0 %v2221, 32
          %v2226 = vpop.permute.xlu0 %2225
          %2227 = vrot.lane.b32.xlu0 %v2222, 32
          %v2228 = vpop.permute.xlu0 %2227
          %v2229 = vsel %vm1458, %v2224, %v2226
          %v2230 = vsel %vm1458, %v2226, %v2228
          %v2233 = vadd.f32 %v2212, %v2229
          %v2234 = vadd.f32 %v2213, %v2230
          %s2235 = sld [smem:[#allocation7 + $0x89]]
          %v2236 = vstv %s2235
          %v2237 = vmul.f32 %v2236, %v1342
          %v2238 = vmul.f32 %v2236, %v1343
          %v2241 = vrot.slane %v2237, 1
          %v2242 = vrot.slane %v2238, 1
          %v2245 = vadd.f32 %v2233, %v2241
          %v2246 = vadd.f32 %v2234, %v2242
          %s2247 = sld [smem:[#allocation7 + $0x8a]]
          %v2248 = vstv %s2247
          %v2249 = vmul.f32 %v2248, %v1365
          %v2250 = vmul.f32 %v2248, %v1366
          %v2253 = vrot.slane %v2249, 1
          %v2254 = vrot.slane %v2250, 1
          %v2257 = vadd.f32 %v2167, %v2253
          %v2258 = vadd.f32 %v2168, %v2254
          %s2259 = sld [smem:[#allocation7 + $0x8b]]
          %v2260 = vstv %s2259
          %v2261 = vmul.f32 %v2260, %v1367
          %v2263 = vperm.slane %v2261, 3
          %v2264 = vperm.slane %v2261, 7
          %v2267 = vadd.f32 %v2257, %v2263
          %v2268 = vadd.f32 %v2258, %v2264
          %s2269 = sld [smem:[#allocation7 + $0x8c]]
          %v2270 = vstv %s2269
          %v2271 = vmul.f32 %v2270, %v1389
          %v2272 = vmul.f32 %v2270, %v1390
          %v2275 = vrot.slane %v2271, 1
          %v2276 = vrot.slane %v2272, 1
          %v2279 = vadd.f32 %v2267, %v2275
          %v2280 = vadd.f32 %v2268, %v2276
          %s2281 = sld [smem:[#allocation7 + $0x8d]]
          %v2282 = vstv %s2281
          %v2283 = vmul.f32 %v2282, %v1412
          %v2284 = vmul.f32 %v2282, %v1413
          %v2287 = vrot.slane %v2283, 1
          %v2288 = vrot.slane %v2284, 1
          %v2291 = vadd.f32 %v2200, %v2287
          %v2292 = vadd.f32 %v2201, %v2288
          %s2293 = sld [smem:[#allocation7 + $0x8e]]
          %v2294 = vstv %s2293
          %v2295 = vmul.f32 %v2294, %v1414
          %v2296 = vmul.f32 %v2294, %v1415
          %v2299 = vperm.slane %v2295, 3
          %v2300 = vperm.slane %v2295, 7
          %v2301 = vperm.slane %v2296, 3
          %2302 = vrot.lane.b32.xlu0 %v2299, 96
          %v2303 = vpop.permute.xlu0 %2302
          %2304 = vrot.lane.b32.xlu0 %v2300, 96
          %v2305 = vpop.permute.xlu0 %2304
          %2306 = vrot.lane.b32.xlu0 %v2301, 96
          %v2307 = vpop.permute.xlu0 %2306
          %v2308 = vsel %vm1514, %v2303, %v2305
          %v2309 = vsel %vm1514, %v2305, %v2307
          %v2312 = vadd.f32 %v2291, %v2308
          %v2313 = vadd.f32 %v2292, %v2309
          %s2314 = sld [smem:[#allocation7 + $0x8f]]
          %v2315 = vstv %s2314
          %v2316 = vmul.f32 %v2315, %v1435
          %v2317 = vmul.f32 %v2315, %v1436
          %v2320 = vrot.slane %v2316, 1
          %v2321 = vrot.slane %v2317, 1
          %v2324 = vadd.f32 %v2312, %v2320
          %v2325 = vadd.f32 %v2313, %v2321
          %v2326 = vadd.f32 %v2245, %v2279
          %v2327 = vadd.f32 %v2246, %v2280
          %v2328 = vadd.f32 %v2326, %v2324
          %v2329 = vadd.f32 %v2327, %v2325
          %2332 = vst [vmem:[#allocation1] sm:$0xff] %v2328
          %2333 = vst [vmem:[#allocation1 + $0x9] sm:$0xff] %v2329
          %s2334 = scalar_lea.vmem [#allocation1], 2
          %v2335 = vld [vmem:[%s2334] ss:$9 sm:$0xff]
          %s2337 = scalar_lea.vmem %s193, 3 [#allocation8]
          %2338 = vst.msk [vmem:[%s2337] ss:$4 sm:$0x3] %vm1664, %v2335
        $region44: #{tpu_custom_call.1} parent=27 // pred_fallthru
          _
        %s2339 = sand.u32 %s91, 1
        %s2340 = scalar_lea.sflag [#allocation5], %s2339
        %s2341 = sand.u32 %s91, 1
        %s2342 = smul.addr %s2341, 8
        %s2343 = scalar_lea.vmem [#allocation8], %s2342
        // Predicated region
        $region45: #{tpu_custom_call.1} parent=27 // pred_check
          %p2344 = pneg %p101
        $region46: #{tpu_custom_call.1} parent=27 // pred_check_branch
          %2346 = sbr.rel (%p2344) target = $region48
        $region47: #{tpu_custom_call.1} parent=27 // pred_region
          %2348 = vsyncadd %s2340, 0
          %s2349 = smul.addr %s25, 2
          %s2350 = smul.addr %s24, 4
          %s2351 = sadd.s32 %s2349, %s2350
          %s2352 = smul.addr %s2351, 4
          %s2353 = scalar_lea.hbm %s2, %s2352
          %s2355 = sshll.u32 %s2343, 4
          %s2356 = int_to_ptr.vmem [resolvable:$true] %s2355
          %s2357 = sshll.u32 %s2353, 4
          %s2358 = int_to_ptr.hbm [resolvable:$true] %s2357
          %2360 = dma.vmem_to_hbm [thread:$0]  %s2356, 128, %s2358, %s2340
        $region48: #{tpu_custom_call.1} parent=27 // pred_fallthru
          _
      $region28: #{tpu_custom_call.1} parent=5 // pred_fallthru
        _
      %p2361 = scmp.le.s32.totalorder 2, %s15
      // Predicated region
      $region49: #{tpu_custom_call.1} parent=5 // pred_check
        %p2362 = pneg %p2361
      $region50: #{tpu_custom_call.1} parent=5 // pred_check_branch
        %2364 = sbr.rel (%p2362) target = $region52
      $region51: #{tpu_custom_call.1} parent=5 // pred_region
        %s2365 = ssub.s32 %s15, 2
        // Predicated region
        $region53: #{tpu_custom_call.1} parent=51 // pred_check
          %p2366 = pneg %p107
        $region54: #{tpu_custom_call.1} parent=51 // pred_check_branch
          %2368 = sbr.rel (%p2366) target = $region56
        $region55: #{tpu_custom_call.1} parent=51 // pred_region
          %s2369 = sand.u32 %s92, 1
          %s2370 = scalar_lea.sflag [#allocation5], %s2369
          %s2371 = sand.u32 %s92, 1
          %s2372 = smul.addr %s2371, 8
          %s2373 = scalar_lea.vmem [#allocation8], %s2372
          %2375 = dma.done %s2370, 128
        $region56: #{tpu_custom_call.1} parent=51 // pred_fallthru
          _
      $region52: #{tpu_custom_call.1} parent=5 // pred_fallthru
        _
    $region6: #{tpu_custom_call.1} parent=1 // loop_footer
      %s19 = sadd.s32 1, %s15
    $region7: #{tpu_custom_call.1} parent=1 // loop_footer_branch
      %14 = sbr.rel target = $region3
    $region8: #{tpu_custom_call.1} parent=1 // loop_exit
      _
    %2376 = vsyncpa [#allocation4], 1
    %s2377 = scalar_lea.sflag [#allocation4], 1
    %2378 = vsyncpa %s2377, 1
    %2379 = vsyncpa [#allocation5], 1
    %s2380 = scalar_lea.sflag [#allocation5], 1
    %2381 = vsyncpa %s2380, 1
    %2382 = vsyncpa [#allocation6], 1
    %s2383 = scalar_lea.sflag [#allocation6], 1
    %2384 = vsyncpa %s2383, 1

</llo_original>
